<compile_context>
chip_gen: v7x
topology: tpu7x:2x2x1
jax: 0.10.0
libtpu: 0.0.40
codegen_flags: <defaults>
</compile_context>

<pallas_src>
import functools

import jax
import jax.numpy as jnp
from jax.experimental import pallas as pl
from jax.experimental.pallas import tpu as pltpu


# ----------------------------- fused kernel ----------------------------------

def _confounders_kernel(x_ref, w1_ref, b1_ref, wf_ref, bf_ref,
                        whh0_ref, bhh0n_ref,
                        wih1_ref, bih1_ref, whh1_ref, bhh1n_ref,
                        o_ref, *, T, N, H):
    f32 = jnp.float32

    # ---- GCN layer 1 (node-wise) + fused (GCN layer-2 ∘ GRU-l0 input proj) ----
    x = x_ref[...]                                                    # (T*N, S)
    h = jnp.dot(x, w1_ref[...], preferred_element_type=f32) + b1_ref[...]
    h = jnp.maximum(h, 0.0)
    # gi0 already contains b_ih0 and the recurrent b_hr/b_hz of layer 0.
    gi0 = jnp.dot(h, wf_ref[...], preferred_element_type=f32) + bf_ref[...]  # (T*N, 3H)

    # Weights / pre-broadcast biases (hoisted once; JAX does not CSE broadcasts)
    whh0 = whh0_ref[...]                                              # (H, 3H)
    wih1 = wih1_ref[...]                                              # (H, 3H)
    whh1 = whh1_ref[...]                                              # (H, 3H)
    bhh0_n = jnp.broadcast_to(bhh0n_ref[...], (N, H))                 # (N, H)
    bhh1_n = jnp.broadcast_to(bhh1n_ref[...], (N, H))                 # (N, H)
    bi1 = jnp.broadcast_to(bih1_ref[...], (N, 3 * H))                 # (N, 3H)

    h0 = jnp.zeros((N, H), f32)
    h1 = jnp.zeros((N, H), f32)
    for t in range(T):                     # fully unrolled wavefront over layers
        lo = t * N
        # ---------------- GRU layer 0, step t ----------------
        gi = gi0[lo:lo + N, :]                                        # (N, 3H)
        gh = jnp.dot(h0, whh0, preferred_element_type=f32)            # (N, 3H)
        rz0 = jax.nn.sigmoid(gi[:, :2 * H] + gh[:, :2 * H])
        r0 = rz0[:, :H]
        z0 = rz0[:, H:]
        n0 = jnp.tanh(gi[:, 2 * H:] + r0 * (gh[:, 2 * H:] + bhh0_n))
        h0 = n0 + z0 * (h0 - n0)           # == (1-z)*n + z*h

        # ---------------- GRU layer 1, step t ----------------
        gi1 = jnp.dot(h0, wih1, preferred_element_type=f32) + bi1     # (N, 3H)
        gh1 = jnp.dot(h1, whh1, preferred_element_type=f32)           # (N, 3H)
        rz1 = jax.nn.sigmoid(gi1[:, :2 * H] + gh1[:, :2 * H])
        r1 = rz1[:, :H]
        z1 = rz1[:, H:]
        n1 = jnp.tanh(gi1[:, 2 * H:] + r1 * (gh1[:, 2 * H:] + bhh1_n))
        h1 = n1 + z1 * (h1 - n1)

    # U = output[:, -1] of the top GRU layer.
    o_ref[...] = h1.astype(o_ref.dtype)


# ------------------------------- module forward -------------------------------

def confounders_forward(x, gcn_params, gru_params, emb_size, cf_size):
    """x: (B, T, K, S) float32  ->  U: (B, K, cf_size)."""
    B, T, K, S = x.shape
    N = B * K
    H = cf_size
    E = emb_size
    w1, b1, w2, b2 = gcn_params
    hid = w1.shape[1]
    wih0, whh0, bih0, bhh0, wih1, whh1, bih1, bhh1 = gru_params

    # ---- trace-time weight prep (weights only, tiny) ----
    # Concatenate per-gate weights [r, z, n] along the lane dim.
    wih0_c = jnp.concatenate([wih0[0], wih0[1], wih0[2]], axis=1)     # (E, 3H)
    whh0_c = jnp.concatenate([whh0[0], whh0[1], whh0[2]], axis=1)     # (H, 3H)
    bih0_c = jnp.concatenate([bih0[0], bih0[1], bih0[2]], axis=1)     # (1, 3H)
    wih1_c = jnp.concatenate([wih1[0], wih1[1], wih1[2]], axis=1)     # (H, 3H)
    whh1_c = jnp.concatenate([whh1[0], whh1[1], whh1[2]], axis=1)     # (H, 3H)
    bih1_c = jnp.concatenate([bih1[0], bih1[1], bih1[2]], axis=1)     # (1, 3H)

    zeros_h = jnp.zeros((1, H), jnp.float32)
    bhh0_rz = jnp.concatenate([bhh0[0], bhh0[1], zeros_h], axis=1)    # (1, 3H)
    bhh1_rz = jnp.concatenate([bhh1[0], bhh1[1], zeros_h], axis=1)    # (1, 3H)

    # Fuse GCN layer-2 into GRU layer-0 input projection (no nonlinearity between).
    w_fused = jnp.dot(w2, wih0_c)                                     # (hid, 3H)
    b_fused = jnp.dot(b2, wih0_c) + bih0_c + bhh0_rz                  # (1, 3H)
    bih1_all = bih1_c + bhh1_rz                                       # (1, 3H)
    bhh0_n = bhh0[2]                                                  # (1, H)
    bhh1_n = bhh1[2]                                                  # (1, H)

    # Time-major re-layout of the (tiny) INPUT: (B,T,K,S) -> (T*N, S) with
    # GRU batch index n = b*K + k (matches embeddings.transpose(1,2)
    # .reshape(B*K, T, -1) in the PyTorch reference).
    x_tm = jnp.transpose(x, (1, 0, 2, 3)).reshape(T * N, S)

    kernel = functools.partial(_confounders_kernel, T=T, N=N, H=H)
    U = pl.pallas_call(
        kernel,
        out_shape=jax.ShapeDtypeStruct((N, H), jnp.float32),
        grid_spec=pltpu.PrefetchScalarGridSpec(
            num_scalar_prefetch=0,
            grid=(1,),
            in_specs=[
                pl.BlockSpec((T * N, S), lambda i: (0, 0)),    # x (time-major)
                pl.BlockSpec((S, hid), lambda i: (0, 0)),      # GCN W1
                pl.BlockSpec((1, hid), lambda i: (0, 0)),      # GCN b1
                pl.BlockSpec((hid, 3 * H), lambda i: (0, 0)),  # fused W2@Wih0
                pl.BlockSpec((1, 3 * H), lambda i: (0, 0)),    # fused bias (+b_hr,b_hz)
                pl.BlockSpec((H, 3 * H), lambda i: (0, 0)),    # W_hh layer0 [r|z|n]
                pl.BlockSpec((1, H), lambda i: (0, 0)),        # b_hn layer0
                pl.BlockSpec((H, 3 * H), lambda i: (0, 0)),    # W_ih layer1 [r|z|n]
                pl.BlockSpec((1, 3 * H), lambda i: (0, 0)),    # b_ih1 + b_hr1,b_hz1
                pl.BlockSpec((H, 3 * H), lambda i: (0, 0)),    # W_hh layer1 [r|z|n]
                pl.BlockSpec((1, H), lambda i: (0, 0)),        # b_hn layer1
            ],
            out_specs=pl.BlockSpec((N, H), lambda i: (0, 0)),
        ),
        compiler_params=pltpu.CompilerParams(
            dimension_semantics=("arbitrary",)),
    )(x_tm, w1, b1, w_fused, b_fused, whh0_c, bhh0_n,
      wih1_c, bih1_all, whh1_c, bhh1_n)

    return U.reshape(B, K, H)


# --------------------------------- params ------------------------------------

def _init_params(key, S, hidden, E, H):
    ks = jax.random.split(key, 12)
    sc = 0.1
    gcn = (
        sc * jax.random.normal(ks[0], (S, hidden), jnp.float32),
        sc * jax.random.normal(ks[1], (1, hidden), jnp.float32),
        sc * jax.random.normal(ks[2], (hidden, E), jnp.float32),
        sc * jax.random.normal(ks[3], (1, E), jnp.float32),
    )
    # GRU weights per gate, stacked on a leading [r, z, n] axis and already
    # transposed for right-multiplication:
    #   PyTorch weight_ih_l0 (3H, E)  ->  wih0[g] = weight_ih_l0[g*H:(g+1)*H].T
    gru = (
        sc * jax.random.normal(ks[4], (3, E, H), jnp.float32),   # W_ih layer0
        sc * jax.random.normal(ks[5], (3, H, H), jnp.float32),   # W_hh layer0
        sc * jax.random.normal(ks[6], (3, 1, H), jnp.float32),   # b_ih layer0
        sc * jax.random.normal(ks[7], (3, 1, H), jnp.float32),   # b_hh layer0
        sc * jax.random.normal(ks[8], (3, H, H), jnp.float32),   # W_ih layer1
        sc * jax.random.normal(ks[9], (3, H, H), jnp.float32),   # W_hh layer1
        sc * jax.random.normal(ks[10], (3, 1, H), jnp.float32),  # b_ih layer1
        sc * jax.random.normal(ks[11], (3, 1, H), jnp.float32),  # b_hh layer1
    )
    return gcn, gru


# ----------------------------------- main -------------------------------------

if __name__ == "__main__":
    # Module hyperparameters (small, consistent with the forward pass)
    B, T, K, S = 2, 8, 4, 16          # batch, time, nodes, state_size
    n_layers, hidden_size = 2, 32
    emb_size, cf_size = 32, 16

    key = jax.random.PRNGKey(0)
    kx, kp = jax.random.split(key)
    x = jax.random.normal(kx, (B, T, K, S), jnp.float32)
    gcn_params, gru_params = _init_params(kp, S, hidden_size, emb_size, cf_size)

    fwd = jax.jit(
        lambda xx: confounders_forward(xx, gcn_params, gru_params, emb_size, cf_size))
    U = jax.block_until_ready(fwd(x))
    assert U.shape == (B, K, cf_size), U.shape
    print("KERNEL_OK")
</pallas_src>

<mosaic_0001>
module attributes {stable_mosaic.version = 11 : i64} {
  func.func @_confounders_kernel(%arg0: i32, %arg1: memref<64x16xf32, #tpu.memory_space<vmem>>, %arg2: memref<16x32xf32, #tpu.memory_space<vmem>>, %arg3: memref<1x32xf32, #tpu.memory_space<vmem>>, %arg4: memref<32x48xf32, #tpu.memory_space<vmem>>, %arg5: memref<1x48xf32, #tpu.memory_space<vmem>>, %arg6: memref<16x48xf32, #tpu.memory_space<vmem>>, %arg7: memref<1x16xf32, #tpu.memory_space<vmem>>, %arg8: memref<16x48xf32, #tpu.memory_space<vmem>>, %arg9: memref<1x48xf32, #tpu.memory_space<vmem>>, %arg10: memref<16x48xf32, #tpu.memory_space<vmem>>, %arg11: memref<1x16xf32, #tpu.memory_space<vmem>>, %arg12: memref<8x16xf32, #tpu.memory_space<vmem>>) attributes {dimension_semantics = [#tpu.dimension_semantics<arbitrary>], iteration_bounds = array<i64: 1>, scalar_prefetch = 0 : i64, scratch_operands = 0 : i64, tpu.core_type = #tpu.core_type<tc>, window_params = [{pipeline_mode = #tpu.pipeline_mode<synchronous>, transform_indices = @transform_0, window_bounds = array<i64: 64, 16>}, {pipeline_mode = #tpu.pipeline_mode<synchronous>, transform_indices = @transform_1, window_bounds = array<i64: 16, 32>}, {pipeline_mode = #tpu.pipeline_mode<synchronous>, transform_indices = @transform_2, window_bounds = array<i64: 1, 32>}, {pipeline_mode = #tpu.pipeline_mode<synchronous>, transform_indices = @transform_3, window_bounds = array<i64: 32, 48>}, {pipeline_mode = #tpu.pipeline_mode<synchronous>, transform_indices = @transform_4, window_bounds = array<i64: 1, 48>}, {pipeline_mode = #tpu.pipeline_mode<synchronous>, transform_indices = @transform_5, window_bounds = array<i64: 16, 48>}, {pipeline_mode = #tpu.pipeline_mode<synchronous>, transform_indices = @transform_6, window_bounds = array<i64: 1, 16>}, {pipeline_mode = #tpu.pipeline_mode<synchronous>, transform_indices = @transform_7, window_bounds = array<i64: 16, 48>}, {pipeline_mode = #tpu.pipeline_mode<synchronous>, transform_indices = @transform_8, window_bounds = array<i64: 1, 48>}, {pipeline_mode = #tpu.pipeline_mode<synchronous>, transform_indices = @transform_9, window_bounds = array<i64: 16, 48>}, {pipeline_mode = #tpu.pipeline_mode<synchronous>, transform_indices = @transform_10, window_bounds = array<i64: 1, 16>}, {pipeline_mode = #tpu.pipeline_mode<synchronous>, transform_indices = @transform_11, window_bounds = array<i64: 8, 16>}]} {
    %c0 = arith.constant 0 : index
    %c0_0 = arith.constant 0 : index
    %0 = vector.load %arg1[%c0, %c0_0] : memref<64x16xf32, #tpu.memory_space<vmem>>, vector<64x16xf32>
    %c0_1 = arith.constant 0 : index
    %c0_2 = arith.constant 0 : index
    %1 = vector.load %arg2[%c0_1, %c0_2] : memref<16x32xf32, #tpu.memory_space<vmem>>, vector<16x32xf32>
    %cst = arith.constant dense<0.000000e+00> : vector<64x32xf32>
    %2 = tpu.matmul %0, %1, %cst {dimension_numbers = #tpu.dot_dimension_numbers<[1], [0], [0], [1], [0, 0, 1, 1], [], []>} : vector<64x16xf32>, vector<16x32xf32>, vector<64x32xf32> -> vector<64x32xf32>
    %c0_3 = arith.constant 0 : index
    %c0_4 = arith.constant 0 : index
    %3 = vector.load %arg3[%c0_3, %c0_4] : memref<1x32xf32, #tpu.memory_space<vmem>>, vector<1x32xf32>
    %4 = vector.broadcast %3 : vector<1x32xf32> to vector<64x32xf32>
    %5 = arith.addf %2, %4 : vector<64x32xf32>
    %cst_5 = arith.constant 0.000000e+00 : f32
    %6 = vector.broadcast %cst_5 : f32 to vector<64x32xf32>
    %7 = arith.maximumf %5, %6 : vector<64x32xf32>
    %c0_6 = arith.constant 0 : index
    %c0_7 = arith.constant 0 : index
    %8 = vector.load %arg4[%c0_6, %c0_7] : memref<32x48xf32, #tpu.memory_space<vmem>>, vector<32x48xf32>
    %cst_8 = arith.constant dense<0.000000e+00> : vector<64x48xf32>
    %9 = tpu.matmul %7, %8, %cst_8 {dimension_numbers = #tpu.dot_dimension_numbers<[1], [0], [0], [1], [0, 0, 1, 1], [], []>} : vector<64x32xf32>, vector<32x48xf32>, vector<64x48xf32> -> vector<64x48xf32>
    %c0_9 = arith.constant 0 : index
    %c0_10 = arith.constant 0 : index
    %10 = vector.load %arg5[%c0_9, %c0_10] : memref<1x48xf32, #tpu.memory_space<vmem>>, vector<1x48xf32>
    %11 = vector.broadcast %10 : vector<1x48xf32> to vector<64x48xf32>
    %12 = arith.addf %9, %11 : vector<64x48xf32>
    %c0_11 = arith.constant 0 : index
    %c0_12 = arith.constant 0 : index
    %13 = vector.load %arg6[%c0_11, %c0_12] : memref<16x48xf32, #tpu.memory_space<vmem>>, vector<16x48xf32>
    %c0_13 = arith.constant 0 : index
    %c0_14 = arith.constant 0 : index
    %14 = vector.load %arg8[%c0_13, %c0_14] : memref<16x48xf32, #tpu.memory_space<vmem>>, vector<16x48xf32>
    %c0_15 = arith.constant 0 : index
    %c0_16 = arith.constant 0 : index
    %15 = vector.load %arg10[%c0_15, %c0_16] : memref<16x48xf32, #tpu.memory_space<vmem>>, vector<16x48xf32>
    %c0_17 = arith.constant 0 : index
    %c0_18 = arith.constant 0 : index
    %16 = vector.load %arg7[%c0_17, %c0_18] : memref<1x16xf32, #tpu.memory_space<vmem>>, vector<1x16xf32>
    %17 = vector.shape_cast %16 : vector<1x16xf32> to vector<1x16xf32>
    %18 = vector.broadcast %17 : vector<1x16xf32> to vector<8x16xf32>
    %c0_19 = arith.constant 0 : index
    %c0_20 = arith.constant 0 : index
    %19 = vector.load %arg11[%c0_19, %c0_20] : memref<1x16xf32, #tpu.memory_space<vmem>>, vector<1x16xf32>
    %20 = vector.shape_cast %19 : vector<1x16xf32> to vector<1x16xf32>
    %21 = vector.broadcast %20 : vector<1x16xf32> to vector<8x16xf32>
    %c0_21 = arith.constant 0 : index
    %c0_22 = arith.constant 0 : index
    %22 = vector.load %arg9[%c0_21, %c0_22] : memref<1x48xf32, #tpu.memory_space<vmem>>, vector<1x48xf32>
    %23 = vector.shape_cast %22 : vector<1x48xf32> to vector<1x48xf32>
    %24 = vector.broadcast %23 : vector<1x48xf32> to vector<8x48xf32>
    %cst_23 = arith.constant 0.000000e+00 : f32
    %25 = vector.broadcast %cst_23 : f32 to vector<8x16xf32>
    %cst_24 = arith.constant 0.000000e+00 : f32
    %26 = vector.broadcast %cst_24 : f32 to vector<8x16xf32>
    %27 = vector.extract_strided_slice %12 {offsets = [0, 0], sizes = [8, 48], strides = [1, 1]} : vector<64x48xf32> to vector<8x48xf32>
    %cst_25 = arith.constant dense<0.000000e+00> : vector<8x48xf32>
    %28 = tpu.matmul %25, %13, %cst_25 {dimension_numbers = #tpu.dot_dimension_numbers<[1], [0], [0], [1], [0, 0, 1, 1], [], []>} : vector<8x16xf32>, vector<16x48xf32>, vector<8x48xf32> -> vector<8x48xf32>
    %29 = vector.extract_strided_slice %27 {offsets = [0, 0], sizes = [8, 32], strides = [1, 1]} : vector<8x48xf32> to vector<8x32xf32>
    %30 = vector.extract_strided_slice %28 {offsets = [0, 0], sizes = [8, 32], strides = [1, 1]} : vector<8x48xf32> to vector<8x32xf32>
    %31 = arith.addf %29, %30 : vector<8x32xf32>
    %32 = arith.negf %31 : vector<8x32xf32>
    %33 = math.exp %32 : vector<8x32xf32>
    %cst_26 = arith.constant 1.000000e+00 : f32
    %34 = vector.broadcast %cst_26 : f32 to vector<8x32xf32>
    %35 = arith.addf %34, %33 : vector<8x32xf32>
    %36 = arith.divf %34, %35 : vector<8x32xf32>
    %37 = vector.extract_strided_slice %36 {offsets = [0, 0], sizes = [8, 16], strides = [1, 1]} : vector<8x32xf32> to vector<8x16xf32>
    %38 = vector.extract_strided_slice %36 {offsets = [0, 16], sizes = [8, 16], strides = [1, 1]} : vector<8x32xf32> to vector<8x16xf32>
    %39 = vector.extract_strided_slice %27 {offsets = [0, 32], sizes = [8, 16], strides = [1, 1]} : vector<8x48xf32> to vector<8x16xf32>
    %40 = vector.extract_strided_slice %28 {offsets = [0, 32], sizes = [8, 16], strides = [1, 1]} : vector<8x48xf32> to vector<8x16xf32>
    %41 = arith.addf %40, %18 : vector<8x16xf32>
    %42 = arith.mulf %37, %41 : vector<8x16xf32>
    %43 = arith.addf %39, %42 : vector<8x16xf32>
    %44 = math.tanh %43 : vector<8x16xf32>
    %45 = arith.subf %25, %44 : vector<8x16xf32>
    %46 = arith.mulf %38, %45 : vector<8x16xf32>
    %47 = arith.addf %44, %46 : vector<8x16xf32>
    %cst_27 = arith.constant dense<0.000000e+00> : vector<8x48xf32>
    %48 = tpu.matmul %47, %14, %cst_27 {dimension_numbers = #tpu.dot_dimension_numbers<[1], [0], [0], [1], [0, 0, 1, 1], [], []>} : vector<8x16xf32>, vector<16x48xf32>, vector<8x48xf32> -> vector<8x48xf32>
    %49 = arith.addf %48, %24 : vector<8x48xf32>
    %cst_28 = arith.constant dense<0.000000e+00> : vector<8x48xf32>
    %50 = tpu.matmul %26, %15, %cst_28 {dimension_numbers = #tpu.dot_dimension_numbers<[1], [0], [0], [1], [0, 0, 1, 1], [], []>} : vector<8x16xf32>, vector<16x48xf32>, vector<8x48xf32> -> vector<8x48xf32>
    %51 = vector.extract_strided_slice %49 {offsets = [0, 0], sizes = [8, 32], strides = [1, 1]} : vector<8x48xf32> to vector<8x32xf32>
    %52 = vector.extract_strided_slice %50 {offsets = [0, 0], sizes = [8, 32], strides = [1, 1]} : vector<8x48xf32> to vector<8x32xf32>
    %53 = arith.addf %51, %52 : vector<8x32xf32>
    %54 = arith.negf %53 : vector<8x32xf32>
    %55 = math.exp %54 : vector<8x32xf32>
    %cst_29 = arith.constant 1.000000e+00 : f32
    %56 = vector.broadcast %cst_29 : f32 to vector<8x32xf32>
    %57 = arith.addf %56, %55 : vector<8x32xf32>
    %58 = arith.divf %56, %57 : vector<8x32xf32>
    %59 = vector.extract_strided_slice %58 {offsets = [0, 0], sizes = [8, 16], strides = [1, 1]} : vector<8x32xf32> to vector<8x16xf32>
    %60 = vector.extract_strided_slice %58 {offsets = [0, 16], sizes = [8, 16], strides = [1, 1]} : vector<8x32xf32> to vector<8x16xf32>
    %61 = vector.extract_strided_slice %49 {offsets = [0, 32], sizes = [8, 16], strides = [1, 1]} : vector<8x48xf32> to vector<8x16xf32>
    %62 = vector.extract_strided_slice %50 {offsets = [0, 32], sizes = [8, 16], strides = [1, 1]} : vector<8x48xf32> to vector<8x16xf32>
    %63 = arith.addf %62, %21 : vector<8x16xf32>
    %64 = arith.mulf %59, %63 : vector<8x16xf32>
    %65 = arith.addf %61, %64 : vector<8x16xf32>
    %66 = math.tanh %65 : vector<8x16xf32>
    %67 = arith.subf %26, %66 : vector<8x16xf32>
    %68 = arith.mulf %60, %67 : vector<8x16xf32>
    %69 = arith.addf %66, %68 : vector<8x16xf32>
    %70 = vector.extract_strided_slice %12 {offsets = [8, 0], sizes = [8, 48], strides = [1, 1]} : vector<64x48xf32> to vector<8x48xf32>
    %cst_30 = arith.constant dense<0.000000e+00> : vector<8x48xf32>
    %71 = tpu.matmul %47, %13, %cst_30 {dimension_numbers = #tpu.dot_dimension_numbers<[1], [0], [0], [1], [0, 0, 1, 1], [], []>} : vector<8x16xf32>, vector<16x48xf32>, vector<8x48xf32> -> vector<8x48xf32>
    %72 = vector.extract_strided_slice %70 {offsets = [0, 0], sizes = [8, 32], strides = [1, 1]} : vector<8x48xf32> to vector<8x32xf32>
    %73 = vector.extract_strided_slice %71 {offsets = [0, 0], sizes = [8, 32], strides = [1, 1]} : vector<8x48xf32> to vector<8x32xf32>
    %74 = arith.addf %72, %73 : vector<8x32xf32>
    %75 = arith.negf %74 : vector<8x32xf32>
    %76 = math.exp %75 : vector<8x32xf32>
    %cst_31 = arith.constant 1.000000e+00 : f32
    %77 = vector.broadcast %cst_31 : f32 to vector<8x32xf32>
    %78 = arith.addf %77, %76 : vector<8x32xf32>
    %79 = arith.divf %77, %78 : vector<8x32xf32>
    %80 = vector.extract_strided_slice %79 {offsets = [0, 0], sizes = [8, 16], strides = [1, 1]} : vector<8x32xf32> to vector<8x16xf32>
    %81 = vector.extract_strided_slice %79 {offsets = [0, 16], sizes = [8, 16], strides = [1, 1]} : vector<8x32xf32> to vector<8x16xf32>
    %82 = vector.extract_strided_slice %70 {offsets = [0, 32], sizes = [8, 16], strides = [1, 1]} : vector<8x48xf32> to vector<8x16xf32>
    %83 = vector.extract_strided_slice %71 {offsets = [0, 32], sizes = [8, 16], strides = [1, 1]} : vector<8x48xf32> to vector<8x16xf32>
    %84 = arith.addf %83, %18 : vector<8x16xf32>
    %85 = arith.mulf %80, %84 : vector<8x16xf32>
    %86 = arith.addf %82, %85 : vector<8x16xf32>
    %87 = math.tanh %86 : vector<8x16xf32>
    %88 = arith.subf %47, %87 : vector<8x16xf32>
    %89 = arith.mulf %81, %88 : vector<8x16xf32>
    %90 = arith.addf %87, %89 : vector<8x16xf32>
    %cst_32 = arith.constant dense<0.000000e+00> : vector<8x48xf32>
    %91 = tpu.matmul %90, %14, %cst_32 {dimension_numbers = #tpu.dot_dimension_numbers<[1], [0], [0], [1], [0, 0, 1, 1], [], []>} : vector<8x16xf32>, vector<16x48xf32>, vector<8x48xf32> -> vector<8x48xf32>
    %92 = arith.addf %91, %24 : vector<8x48xf32>
    %cst_33 = arith.constant dense<0.000000e+00> : vector<8x48xf32>
    %93 = tpu.matmul %69, %15, %cst_33 {dimension_numbers = #tpu.dot_dimension_numbers<[1], [0], [0], [1], [0, 0, 1, 1], [], []>} : vector<8x16xf32>, vector<16x48xf32>, vector<8x48xf32> -> vector<8x48xf32>
    %94 = vector.extract_strided_slice %92 {offsets = [0, 0], sizes = [8, 32], strides = [1, 1]} : vector<8x48xf32> to vector<8x32xf32>
    %95 = vector.extract_strided_slice %93 {offsets = [0, 0], sizes = [8, 32], strides = [1, 1]} : vector<8x48xf32> to vector<8x32xf32>
    %96 = arith.addf %94, %95 : vector<8x32xf32>
    %97 = arith.negf %96 : vector<8x32xf32>
    %98 = math.exp %97 : vector<8x32xf32>
    %cst_34 = arith.constant 1.000000e+00 : f32
    %99 = vector.broadcast %cst_34 : f32 to vector<8x32xf32>
    %100 = arith.addf %99, %98 : vector<8x32xf32>
    %101 = arith.divf %99, %100 : vector<8x32xf32>
    %102 = vector.extract_strided_slice %101 {offsets = [0, 0], sizes = [8, 16], strides = [1, 1]} : vector<8x32xf32> to vector<8x16xf32>
    %103 = vector.extract_strided_slice %101 {offsets = [0, 16], sizes = [8, 16], strides = [1, 1]} : vector<8x32xf32> to vector<8x16xf32>
    %104 = vector.extract_strided_slice %92 {offsets = [0, 32], sizes = [8, 16], strides = [1, 1]} : vector<8x48xf32> to vector<8x16xf32>
    %105 = vector.extract_strided_slice %93 {offsets = [0, 32], sizes = [8, 16], strides = [1, 1]} : vector<8x48xf32> to vector<8x16xf32>
    %106 = arith.addf %105, %21 : vector<8x16xf32>
    %107 = arith.mulf %102, %106 : vector<8x16xf32>
    %108 = arith.addf %104, %107 : vector<8x16xf32>
    %109 = math.tanh %108 : vector<8x16xf32>
    %110 = arith.subf %69, %109 : vector<8x16xf32>
    %111 = arith.mulf %103, %110 : vector<8x16xf32>
    %112 = arith.addf %109, %111 : vector<8x16xf32>
    %113 = vector.extract_strided_slice %12 {offsets = [16, 0], sizes = [8, 48], strides = [1, 1]} : vector<64x48xf32> to vector<8x48xf32>
    %cst_35 = arith.constant dense<0.000000e+00> : vector<8x48xf32>
    %114 = tpu.matmul %90, %13, %cst_35 {dimension_numbers = #tpu.dot_dimension_numbers<[1], [0], [0], [1], [0, 0, 1, 1], [], []>} : vector<8x16xf32>, vector<16x48xf32>, vector<8x48xf32> -> vector<8x48xf32>
    %115 = vector.extract_strided_slice %113 {offsets = [0, 0], sizes = [8, 32], strides = [1, 1]} : vector<8x48xf32> to vector<8x32xf32>
    %116 = vector.extract_strided_slice %114 {offsets = [0, 0], sizes = [8, 32], strides = [1, 1]} : vector<8x48xf32> to vector<8x32xf32>
    %117 = arith.addf %115, %116 : vector<8x32xf32>
    %118 = arith.negf %117 : vector<8x32xf32>
    %119 = math.exp %118 : vector<8x32xf32>
    %cst_36 = arith.constant 1.000000e+00 : f32
    %120 = vector.broadcast %cst_36 : f32 to vector<8x32xf32>
    %121 = arith.addf %120, %119 : vector<8x32xf32>
    %122 = arith.divf %120, %121 : vector<8x32xf32>
    %123 = vector.extract_strided_slice %122 {offsets = [0, 0], sizes = [8, 16], strides = [1, 1]} : vector<8x32xf32> to vector<8x16xf32>
    %124 = vector.extract_strided_slice %122 {offsets = [0, 16], sizes = [8, 16], strides = [1, 1]} : vector<8x32xf32> to vector<8x16xf32>
    %125 = vector.extract_strided_slice %113 {offsets = [0, 32], sizes = [8, 16], strides = [1, 1]} : vector<8x48xf32> to vector<8x16xf32>
    %126 = vector.extract_strided_slice %114 {offsets = [0, 32], sizes = [8, 16], strides = [1, 1]} : vector<8x48xf32> to vector<8x16xf32>
    %127 = arith.addf %126, %18 : vector<8x16xf32>
    %128 = arith.mulf %123, %127 : vector<8x16xf32>
    %129 = arith.addf %125, %128 : vector<8x16xf32>
    %130 = math.tanh %129 : vector<8x16xf32>
    %131 = arith.subf %90, %130 : vector<8x16xf32>
    %132 = arith.mulf %124, %131 : vector<8x16xf32>
    %133 = arith.addf %130, %132 : vector<8x16xf32>
    %cst_37 = arith.constant dense<0.000000e+00> : vector<8x48xf32>
    %134 = tpu.matmul %133, %14, %cst_37 {dimension_numbers = #tpu.dot_dimension_numbers<[1], [0], [0], [1], [0, 0, 1, 1], [], []>} : vector<8x16xf32>, vector<16x48xf32>, vector<8x48xf32> -> vector<8x48xf32>
    %135 = arith.addf %134, %24 : vector<8x48xf32>
    %cst_38 = arith.constant dense<0.000000e+00> : vector<8x48xf32>
    %136 = tpu.matmul %112, %15, %cst_38 {dimension_numbers = #tpu.dot_dimension_numbers<[1], [0], [0], [1], [0, 0, 1, 1], [], []>} : vector<8x16xf32>, vector<16x48xf32>, vector<8x48xf32> -> vector<8x48xf32>
    %137 = vector.extract_strided_slice %135 {offsets = [0, 0], sizes = [8, 32], strides = [1, 1]} : vector<8x48xf32> to vector<8x32xf32>
    %138 = vector.extract_strided_slice %136 {offsets = [0, 0], sizes = [8, 32], strides = [1, 1]} : vector<8x48xf32> to vector<8x32xf32>
    %139 = arith.addf %137, %138 : vector<8x32xf32>
    %140 = arith.negf %139 : vector<8x32xf32>
    %141 = math.exp %140 : vector<8x32xf32>
    %cst_39 = arith.constant 1.000000e+00 : f32
    %142 = vector.broadcast %cst_39 : f32 to vector<8x32xf32>
    %143 = arith.addf %142, %141 : vector<8x32xf32>
    %144 = arith.divf %142, %143 : vector<8x32xf32>
    %145 = vector.extract_strided_slice %144 {offsets = [0, 0], sizes = [8, 16], strides = [1, 1]} : vector<8x32xf32> to vector<8x16xf32>
    %146 = vector.extract_strided_slice %144 {offsets = [0, 16], sizes = [8, 16], strides = [1, 1]} : vector<8x32xf32> to vector<8x16xf32>
    %147 = vector.extract_strided_slice %135 {offsets = [0, 32], sizes = [8, 16], strides = [1, 1]} : vector<8x48xf32> to vector<8x16xf32>
    %148 = vector.extract_strided_slice %136 {offsets = [0, 32], sizes = [8, 16], strides = [1, 1]} : vector<8x48xf32> to vector<8x16xf32>
    %149 = arith.addf %148, %21 : vector<8x16xf32>
    %150 = arith.mulf %145, %149 : vector<8x16xf32>
    %151 = arith.addf %147, %150 : vector<8x16xf32>
    %152 = math.tanh %151 : vector<8x16xf32>
    %153 = arith.subf %112, %152 : vector<8x16xf32>
    %154 = arith.mulf %146, %153 : vector<8x16xf32>
    %155 = arith.addf %152, %154 : vector<8x16xf32>
    %156 = vector.extract_strided_slice %12 {offsets = [24, 0], sizes = [8, 48], strides = [1, 1]} : vector<64x48xf32> to vector<8x48xf32>
    %cst_40 = arith.constant dense<0.000000e+00> : vector<8x48xf32>
    %157 = tpu.matmul %133, %13, %cst_40 {dimension_numbers = #tpu.dot_dimension_numbers<[1], [0], [0], [1], [0, 0, 1, 1], [], []>} : vector<8x16xf32>, vector<16x48xf32>, vector<8x48xf32> -> vector<8x48xf32>
    %158 = vector.extract_strided_slice %156 {offsets = [0, 0], sizes = [8, 32], strides = [1, 1]} : vector<8x48xf32> to vector<8x32xf32>
    %159 = vector.extract_strided_slice %157 {offsets = [0, 0], sizes = [8, 32], strides = [1, 1]} : vector<8x48xf32> to vector<8x32xf32>
    %160 = arith.addf %158, %159 : vector<8x32xf32>
    %161 = arith.negf %160 : vector<8x32xf32>
    %162 = math.exp %161 : vector<8x32xf32>
    %cst_41 = arith.constant 1.000000e+00 : f32
    %163 = vector.broadcast %cst_41 : f32 to vector<8x32xf32>
    %164 = arith.addf %163, %162 : vector<8x32xf32>
    %165 = arith.divf %163, %164 : vector<8x32xf32>
    %166 = vector.extract_strided_slice %165 {offsets = [0, 0], sizes = [8, 16], strides = [1, 1]} : vector<8x32xf32> to vector<8x16xf32>
    %167 = vector.extract_strided_slice %165 {offsets = [0, 16], sizes = [8, 16], strides = [1, 1]} : vector<8x32xf32> to vector<8x16xf32>
    %168 = vector.extract_strided_slice %156 {offsets = [0, 32], sizes = [8, 16], strides = [1, 1]} : vector<8x48xf32> to vector<8x16xf32>
    %169 = vector.extract_strided_slice %157 {offsets = [0, 32], sizes = [8, 16], strides = [1, 1]} : vector<8x48xf32> to vector<8x16xf32>
    %170 = arith.addf %169, %18 : vector<8x16xf32>
    %171 = arith.mulf %166, %170 : vector<8x16xf32>
    %172 = arith.addf %168, %171 : vector<8x16xf32>
    %173 = math.tanh %172 : vector<8x16xf32>
    %174 = arith.subf %133, %173 : vector<8x16xf32>
    %175 = arith.mulf %167, %174 : vector<8x16xf32>
    %176 = arith.addf %173, %175 : vector<8x16xf32>
    %cst_42 = arith.constant dense<0.000000e+00> : vector<8x48xf32>
    %177 = tpu.matmul %176, %14, %cst_42 {dimension_numbers = #tpu.dot_dimension_numbers<[1], [0], [0], [1], [0, 0, 1, 1], [], []>} : vector<8x16xf32>, vector<16x48xf32>, vector<8x48xf32> -> vector<8x48xf32>
    %178 = arith.addf %177, %24 : vector<8x48xf32>
    %cst_43 = arith.constant dense<0.000000e+00> : vector<8x48xf32>
    %179 = tpu.matmul %155, %15, %cst_43 {dimension_numbers = #tpu.dot_dimension_numbers<[1], [0], [0], [1], [0, 0, 1, 1], [], []>} : vector<8x16xf32>, vector<16x48xf32>, vector<8x48xf32> -> vector<8x48xf32>
    %180 = vector.extract_strided_slice %178 {offsets = [0, 0], sizes = [8, 32], strides = [1, 1]} : vector<8x48xf32> to vector<8x32xf32>
    %181 = vector.extract_strided_slice %179 {offsets = [0, 0], sizes = [8, 32], strides = [1, 1]} : vector<8x48xf32> to vector<8x32xf32>
    %182 = arith.addf %180, %181 : vector<8x32xf32>
    %183 = arith.negf %182 : vector<8x32xf32>
    %184 = math.exp %183 : vector<8x32xf32>
    %cst_44 = arith.constant 1.000000e+00 : f32
    %185 = vector.broadcast %cst_44 : f32 to vector<8x32xf32>
    %186 = arith.addf %185, %184 : vector<8x32xf32>
    %187 = arith.divf %185, %186 : vector<8x32xf32>
    %188 = vector.extract_strided_slice %187 {offsets = [0, 0], sizes = [8, 16], strides = [1, 1]} : vector<8x32xf32> to vector<8x16xf32>
    %189 = vector.extract_strided_slice %187 {offsets = [0, 16], sizes = [8, 16], strides = [1, 1]} : vector<8x32xf32> to vector<8x16xf32>
    %190 = vector.extract_strided_slice %178 {offsets = [0, 32], sizes = [8, 16], strides = [1, 1]} : vector<8x48xf32> to vector<8x16xf32>
    %191 = vector.extract_strided_slice %179 {offsets = [0, 32], sizes = [8, 16], strides = [1, 1]} : vector<8x48xf32> to vector<8x16xf32>
    %192 = arith.addf %191, %21 : vector<8x16xf32>
    %193 = arith.mulf %188, %192 : vector<8x16xf32>
    %194 = arith.addf %190, %193 : vector<8x16xf32>
    %195 = math.tanh %194 : vector<8x16xf32>
    %196 = arith.subf %155, %195 : vector<8x16xf32>
    %197 = arith.mulf %189, %196 : vector<8x16xf32>
    %198 = arith.addf %195, %197 : vector<8x16xf32>
    %199 = vector.extract_strided_slice %12 {offsets = [32, 0], sizes = [8, 48], strides = [1, 1]} : vector<64x48xf32> to vector<8x48xf32>
    %cst_45 = arith.constant dense<0.000000e+00> : vector<8x48xf32>
    %200 = tpu.matmul %176, %13, %cst_45 {dimension_numbers = #tpu.dot_dimension_numbers<[1], [0], [0], [1], [0, 0, 1, 1], [], []>} : vector<8x16xf32>, vector<16x48xf32>, vector<8x48xf32> -> vector<8x48xf32>
    %201 = vector.extract_strided_slice %199 {offsets = [0, 0], sizes = [8, 32], strides = [1, 1]} : vector<8x48xf32> to vector<8x32xf32>
    %202 = vector.extract_strided_slice %200 {offsets = [0, 0], sizes = [8, 32], strides = [1, 1]} : vector<8x48xf32> to vector<8x32xf32>
    %203 = arith.addf %201, %202 : vector<8x32xf32>
    %204 = arith.negf %203 : vector<8x32xf32>
    %205 = math.exp %204 : vector<8x32xf32>
    %cst_46 = arith.constant 1.000000e+00 : f32
    %206 = vector.broadcast %cst_46 : f32 to vector<8x32xf32>
    %207 = arith.addf %206, %205 : vector<8x32xf32>
    %208 = arith.divf %206, %207 : vector<8x32xf32>
    %209 = vector.extract_strided_slice %208 {offsets = [0, 0], sizes = [8, 16], strides = [1, 1]} : vector<8x32xf32> to vector<8x16xf32>
    %210 = vector.extract_strided_slice %208 {offsets = [0, 16], sizes = [8, 16], strides = [1, 1]} : vector<8x32xf32> to vector<8x16xf32>
    %211 = vector.extract_strided_slice %199 {offsets = [0, 32], sizes = [8, 16], strides = [1, 1]} : vector<8x48xf32> to vector<8x16xf32>
    %212 = vector.extract_strided_slice %200 {offsets = [0, 32], sizes = [8, 16], strides = [1, 1]} : vector<8x48xf32> to vector<8x16xf32>
    %213 = arith.addf %212, %18 : vector<8x16xf32>
    %214 = arith.mulf %209, %213 : vector<8x16xf32>
    %215 = arith.addf %211, %214 : vector<8x16xf32>
    %216 = math.tanh %215 : vector<8x16xf32>
    %217 = arith.subf %176, %216 : vector<8x16xf32>
    %218 = arith.mulf %210, %217 : vector<8x16xf32>
    %219 = arith.addf %216, %218 : vector<8x16xf32>
    %cst_47 = arith.constant dense<0.000000e+00> : vector<8x48xf32>
    %220 = tpu.matmul %219, %14, %cst_47 {dimension_numbers = #tpu.dot_dimension_numbers<[1], [0], [0], [1], [0, 0, 1, 1], [], []>} : vector<8x16xf32>, vector<16x48xf32>, vector<8x48xf32> -> vector<8x48xf32>
    %221 = arith.addf %220, %24 : vector<8x48xf32>
    %cst_48 = arith.constant dense<0.000000e+00> : vector<8x48xf32>
    %222 = tpu.matmul %198, %15, %cst_48 {dimension_numbers = #tpu.dot_dimension_numbers<[1], [0], [0], [1], [0, 0, 1, 1], [], []>} : vector<8x16xf32>, vector<16x48xf32>, vector<8x48xf32> -> vector<8x48xf32>
    %223 = vector.extract_strided_slice %221 {offsets = [0, 0], sizes = [8, 32], strides = [1, 1]} : vector<8x48xf32> to vector<8x32xf32>
    %224 = vector.extract_strided_slice %222 {offsets = [0, 0], sizes = [8, 32], strides = [1, 1]} : vector<8x48xf32> to vector<8x32xf32>
    %225 = arith.addf %223, %224 : vector<8x32xf32>
    %226 = arith.negf %225 : vector<8x32xf32>
    %227 = math.exp %226 : vector<8x32xf32>
    %cst_49 = arith.constant 1.000000e+00 : f32
    %228 = vector.broadcast %cst_49 : f32 to vector<8x32xf32>
    %229 = arith.addf %228, %227 : vector<8x32xf32>
    %230 = arith.divf %228, %229 : vector<8x32xf32>
    %231 = vector.extract_strided_slice %230 {offsets = [0, 0], sizes = [8, 16], strides = [1, 1]} : vector<8x32xf32> to vector<8x16xf32>
    %232 = vector.extract_strided_slice %230 {offsets = [0, 16], sizes = [8, 16], strides = [1, 1]} : vector<8x32xf32> to vector<8x16xf32>
    %233 = vector.extract_strided_slice %221 {offsets = [0, 32], sizes = [8, 16], strides = [1, 1]} : vector<8x48xf32> to vector<8x16xf32>
    %234 = vector.extract_strided_slice %222 {offsets = [0, 32], sizes = [8, 16], strides = [1, 1]} : vector<8x48xf32> to vector<8x16xf32>
    %235 = arith.addf %234, %21 : vector<8x16xf32>
    %236 = arith.mulf %231, %235 : vector<8x16xf32>
    %237 = arith.addf %233, %236 : vector<8x16xf32>
    %238 = math.tanh %237 : vector<8x16xf32>
    %239 = arith.subf %198, %238 : vector<8x16xf32>
    %240 = arith.mulf %232, %239 : vector<8x16xf32>
    %241 = arith.addf %238, %240 : vector<8x16xf32>
    %242 = vector.extract_strided_slice %12 {offsets = [40, 0], sizes = [8, 48], strides = [1, 1]} : vector<64x48xf32> to vector<8x48xf32>
    %cst_50 = arith.constant dense<0.000000e+00> : vector<8x48xf32>
    %243 = tpu.matmul %219, %13, %cst_50 {dimension_numbers = #tpu.dot_dimension_numbers<[1], [0], [0], [1], [0, 0, 1, 1], [], []>} : vector<8x16xf32>, vector<16x48xf32>, vector<8x48xf32> -> vector<8x48xf32>
    %244 = vector.extract_strided_slice %242 {offsets = [0, 0], sizes = [8, 32], strides = [1, 1]} : vector<8x48xf32> to vector<8x32xf32>
    %245 = vector.extract_strided_slice %243 {offsets = [0, 0], sizes = [8, 32], strides = [1, 1]} : vector<8x48xf32> to vector<8x32xf32>
    %246 = arith.addf %244, %245 : vector<8x32xf32>
    %247 = arith.negf %246 : vector<8x32xf32>
    %248 = math.exp %247 : vector<8x32xf32>
    %cst_51 = arith.constant 1.000000e+00 : f32
    %249 = vector.broadcast %cst_51 : f32 to vector<8x32xf32>
    %250 = arith.addf %249, %248 : vector<8x32xf32>
    %251 = arith.divf %249, %250 : vector<8x32xf32>
    %252 = vector.extract_strided_slice %251 {offsets = [0, 0], sizes = [8, 16], strides = [1, 1]} : vector<8x32xf32> to vector<8x16xf32>
    %253 = vector.extract_strided_slice %251 {offsets = [0, 16], sizes = [8, 16], strides = [1, 1]} : vector<8x32xf32> to vector<8x16xf32>
    %254 = vector.extract_strided_slice %242 {offsets = [0, 32], sizes = [8, 16], strides = [1, 1]} : vector<8x48xf32> to vector<8x16xf32>
    %255 = vector.extract_strided_slice %243 {offsets = [0, 32], sizes = [8, 16], strides = [1, 1]} : vector<8x48xf32> to vector<8x16xf32>
    %256 = arith.addf %255, %18 : vector<8x16xf32>
    %257 = arith.mulf %252, %256 : vector<8x16xf32>
    %258 = arith.addf %254, %257 : vector<8x16xf32>
    %259 = math.tanh %258 : vector<8x16xf32>
    %260 = arith.subf %219, %259 : vector<8x16xf32>
    %261 = arith.mulf %253, %260 : vector<8x16xf32>
    %262 = arith.addf %259, %261 : vector<8x16xf32>
    %cst_52 = arith.constant dense<0.000000e+00> : vector<8x48xf32>
    %263 = tpu.matmul %262, %14, %cst_52 {dimension_numbers = #tpu.dot_dimension_numbers<[1], [0], [0], [1], [0, 0, 1, 1], [], []>} : vector<8x16xf32>, vector<16x48xf32>, vector<8x48xf32> -> vector<8x48xf32>
    %264 = arith.addf %263, %24 : vector<8x48xf32>
    %cst_53 = arith.constant dense<0.000000e+00> : vector<8x48xf32>
    %265 = tpu.matmul %241, %15, %cst_53 {dimension_numbers = #tpu.dot_dimension_numbers<[1], [0], [0], [1], [0, 0, 1, 1], [], []>} : vector<8x16xf32>, vector<16x48xf32>, vector<8x48xf32> -> vector<8x48xf32>
    %266 = vector.extract_strided_slice %264 {offsets = [0, 0], sizes = [8, 32], strides = [1, 1]} : vector<8x48xf32> to vector<8x32xf32>
    %267 = vector.extract_strided_slice %265 {offsets = [0, 0], sizes = [8, 32], strides = [1, 1]} : vector<8x48xf32> to vector<8x32xf32>
    %268 = arith.addf %266, %267 : vector<8x32xf32>
    %269 = arith.negf %268 : vector<8x32xf32>
    %270 = math.exp %269 : vector<8x32xf32>
    %cst_54 = arith.constant 1.000000e+00 : f32
    %271 = vector.broadcast %cst_54 : f32 to vector<8x32xf32>
    %272 = arith.addf %271, %270 : vector<8x32xf32>
    %273 = arith.divf %271, %272 : vector<8x32xf32>
    %274 = vector.extract_strided_slice %273 {offsets = [0, 0], sizes = [8, 16], strides = [1, 1]} : vector<8x32xf32> to vector<8x16xf32>
    %275 = vector.extract_strided_slice %273 {offsets = [0, 16], sizes = [8, 16], strides = [1, 1]} : vector<8x32xf32> to vector<8x16xf32>
    %276 = vector.extract_strided_slice %264 {offsets = [0, 32], sizes = [8, 16], strides = [1, 1]} : vector<8x48xf32> to vector<8x16xf32>
    %277 = vector.extract_strided_slice %265 {offsets = [0, 32], sizes = [8, 16], strides = [1, 1]} : vector<8x48xf32> to vector<8x16xf32>
    %278 = arith.addf %277, %21 : vector<8x16xf32>
    %279 = arith.mulf %274, %278 : vector<8x16xf32>
    %280 = arith.addf %276, %279 : vector<8x16xf32>
    %281 = math.tanh %280 : vector<8x16xf32>
    %282 = arith.subf %241, %281 : vector<8x16xf32>
    %283 = arith.mulf %275, %282 : vector<8x16xf32>
    %284 = arith.addf %281, %283 : vector<8x16xf32>
    %285 = vector.extract_strided_slice %12 {offsets = [48, 0], sizes = [8, 48], strides = [1, 1]} : vector<64x48xf32> to vector<8x48xf32>
    %cst_55 = arith.constant dense<0.000000e+00> : vector<8x48xf32>
    %286 = tpu.matmul %262, %13, %cst_55 {dimension_numbers = #tpu.dot_dimension_numbers<[1], [0], [0], [1], [0, 0, 1, 1], [], []>} : vector<8x16xf32>, vector<16x48xf32>, vector<8x48xf32> -> vector<8x48xf32>
    %287 = vector.extract_strided_slice %285 {offsets = [0, 0], sizes = [8, 32], strides = [1, 1]} : vector<8x48xf32> to vector<8x32xf32>
    %288 = vector.extract_strided_slice %286 {offsets = [0, 0], sizes = [8, 32], strides = [1, 1]} : vector<8x48xf32> to vector<8x32xf32>
    %289 = arith.addf %287, %288 : vector<8x32xf32>
    %290 = arith.negf %289 : vector<8x32xf32>
    %291 = math.exp %290 : vector<8x32xf32>
    %cst_56 = arith.constant 1.000000e+00 : f32
    %292 = vector.broadcast %cst_56 : f32 to vector<8x32xf32>
    %293 = arith.addf %292, %291 : vector<8x32xf32>
    %294 = arith.divf %292, %293 : vector<8x32xf32>
    %295 = vector.extract_strided_slice %294 {offsets = [0, 0], sizes = [8, 16], strides = [1, 1]} : vector<8x32xf32> to vector<8x16xf32>
    %296 = vector.extract_strided_slice %294 {offsets = [0, 16], sizes = [8, 16], strides = [1, 1]} : vector<8x32xf32> to vector<8x16xf32>
    %297 = vector.extract_strided_slice %285 {offsets = [0, 32], sizes = [8, 16], strides = [1, 1]} : vector<8x48xf32> to vector<8x16xf32>
    %298 = vector.extract_strided_slice %286 {offsets = [0, 32], sizes = [8, 16], strides = [1, 1]} : vector<8x48xf32> to vector<8x16xf32>
    %299 = arith.addf %298, %18 : vector<8x16xf32>
    %300 = arith.mulf %295, %299 : vector<8x16xf32>
    %301 = arith.addf %297, %300 : vector<8x16xf32>
    %302 = math.tanh %301 : vector<8x16xf32>
    %303 = arith.subf %262, %302 : vector<8x16xf32>
    %304 = arith.mulf %296, %303 : vector<8x16xf32>
    %305 = arith.addf %302, %304 : vector<8x16xf32>
    %cst_57 = arith.constant dense<0.000000e+00> : vector<8x48xf32>
    %306 = tpu.matmul %305, %14, %cst_57 {dimension_numbers = #tpu.dot_dimension_numbers<[1], [0], [0], [1], [0, 0, 1, 1], [], []>} : vector<8x16xf32>, vector<16x48xf32>, vector<8x48xf32> -> vector<8x48xf32>
    %307 = arith.addf %306, %24 : vector<8x48xf32>
    %cst_58 = arith.constant dense<0.000000e+00> : vector<8x48xf32>
    %308 = tpu.matmul %284, %15, %cst_58 {dimension_numbers = #tpu.dot_dimension_numbers<[1], [0], [0], [1], [0, 0, 1, 1], [], []>} : vector<8x16xf32>, vector<16x48xf32>, vector<8x48xf32> -> vector<8x48xf32>
    %309 = vector.extract_strided_slice %307 {offsets = [0, 0], sizes = [8, 32], strides = [1, 1]} : vector<8x48xf32> to vector<8x32xf32>
    %310 = vector.extract_strided_slice %308 {offsets = [0, 0], sizes = [8, 32], strides = [1, 1]} : vector<8x48xf32> to vector<8x32xf32>
    %311 = arith.addf %309, %310 : vector<8x32xf32>
    %312 = arith.negf %311 : vector<8x32xf32>
    %313 = math.exp %312 : vector<8x32xf32>
    %cst_59 = arith.constant 1.000000e+00 : f32
    %314 = vector.broadcast %cst_59 : f32 to vector<8x32xf32>
    %315 = arith.addf %314, %313 : vector<8x32xf32>
    %316 = arith.divf %314, %315 : vector<8x32xf32>
    %317 = vector.extract_strided_slice %316 {offsets = [0, 0], sizes = [8, 16], strides = [1, 1]} : vector<8x32xf32> to vector<8x16xf32>
    %318 = vector.extract_strided_slice %316 {offsets = [0, 16], sizes = [8, 16], strides = [1, 1]} : vector<8x32xf32> to vector<8x16xf32>
    %319 = vector.extract_strided_slice %307 {offsets = [0, 32], sizes = [8, 16], strides = [1, 1]} : vector<8x48xf32> to vector<8x16xf32>
    %320 = vector.extract_strided_slice %308 {offsets = [0, 32], sizes = [8, 16], strides = [1, 1]} : vector<8x48xf32> to vector<8x16xf32>
    %321 = arith.addf %320, %21 : vector<8x16xf32>
    %322 = arith.mulf %317, %321 : vector<8x16xf32>
    %323 = arith.addf %319, %322 : vector<8x16xf32>
    %324 = math.tanh %323 : vector<8x16xf32>
    %325 = arith.subf %284, %324 : vector<8x16xf32>
    %326 = arith.mulf %318, %325 : vector<8x16xf32>
    %327 = arith.addf %324, %326 : vector<8x16xf32>
    %328 = vector.extract_strided_slice %12 {offsets = [56, 0], sizes = [8, 48], strides = [1, 1]} : vector<64x48xf32> to vector<8x48xf32>
    %cst_60 = arith.constant dense<0.000000e+00> : vector<8x48xf32>
    %329 = tpu.matmul %305, %13, %cst_60 {dimension_numbers = #tpu.dot_dimension_numbers<[1], [0], [0], [1], [0, 0, 1, 1], [], []>} : vector<8x16xf32>, vector<16x48xf32>, vector<8x48xf32> -> vector<8x48xf32>
    %330 = vector.extract_strided_slice %328 {offsets = [0, 0], sizes = [8, 32], strides = [1, 1]} : vector<8x48xf32> to vector<8x32xf32>
    %331 = vector.extract_strided_slice %329 {offsets = [0, 0], sizes = [8, 32], strides = [1, 1]} : vector<8x48xf32> to vector<8x32xf32>
    %332 = arith.addf %330, %331 : vector<8x32xf32>
    %333 = arith.negf %332 : vector<8x32xf32>
    %334 = math.exp %333 : vector<8x32xf32>
    %cst_61 = arith.constant 1.000000e+00 : f32
    %335 = vector.broadcast %cst_61 : f32 to vector<8x32xf32>
    %336 = arith.addf %335, %334 : vector<8x32xf32>
    %337 = arith.divf %335, %336 : vector<8x32xf32>
    %338 = vector.extract_strided_slice %337 {offsets = [0, 0], sizes = [8, 16], strides = [1, 1]} : vector<8x32xf32> to vector<8x16xf32>
    %339 = vector.extract_strided_slice %337 {offsets = [0, 16], sizes = [8, 16], strides = [1, 1]} : vector<8x32xf32> to vector<8x16xf32>
    %340 = vector.extract_strided_slice %328 {offsets = [0, 32], sizes = [8, 16], strides = [1, 1]} : vector<8x48xf32> to vector<8x16xf32>
    %341 = vector.extract_strided_slice %329 {offsets = [0, 32], sizes = [8, 16], strides = [1, 1]} : vector<8x48xf32> to vector<8x16xf32>
    %342 = arith.addf %341, %18 : vector<8x16xf32>
    %343 = arith.mulf %338, %342 : vector<8x16xf32>
    %344 = arith.addf %340, %343 : vector<8x16xf32>
    %345 = math.tanh %344 : vector<8x16xf32>
    %346 = arith.subf %305, %345 : vector<8x16xf32>
    %347 = arith.mulf %339, %346 : vector<8x16xf32>
    %348 = arith.addf %345, %347 : vector<8x16xf32>
    %cst_62 = arith.constant dense<0.000000e+00> : vector<8x48xf32>
    %349 = tpu.matmul %348, %14, %cst_62 {dimension_numbers = #tpu.dot_dimension_numbers<[1], [0], [0], [1], [0, 0, 1, 1], [], []>} : vector<8x16xf32>, vector<16x48xf32>, vector<8x48xf32> -> vector<8x48xf32>
    %350 = arith.addf %349, %24 : vector<8x48xf32>
    %cst_63 = arith.constant dense<0.000000e+00> : vector<8x48xf32>
    %351 = tpu.matmul %327, %15, %cst_63 {dimension_numbers = #tpu.dot_dimension_numbers<[1], [0], [0], [1], [0, 0, 1, 1], [], []>} : vector<8x16xf32>, vector<16x48xf32>, vector<8x48xf32> -> vector<8x48xf32>
    %352 = vector.extract_strided_slice %350 {offsets = [0, 0], sizes = [8, 32], strides = [1, 1]} : vector<8x48xf32> to vector<8x32xf32>
    %353 = vector.extract_strided_slice %351 {offsets = [0, 0], sizes = [8, 32], strides = [1, 1]} : vector<8x48xf32> to vector<8x32xf32>
    %354 = arith.addf %352, %353 : vector<8x32xf32>
    %355 = arith.negf %354 : vector<8x32xf32>
    %356 = math.exp %355 : vector<8x32xf32>
    %cst_64 = arith.constant 1.000000e+00 : f32
    %357 = vector.broadcast %cst_64 : f32 to vector<8x32xf32>
    %358 = arith.addf %357, %356 : vector<8x32xf32>
    %359 = arith.divf %357, %358 : vector<8x32xf32>
    %360 = vector.extract_strided_slice %359 {offsets = [0, 0], sizes = [8, 16], strides = [1, 1]} : vector<8x32xf32> to vector<8x16xf32>
    %361 = vector.extract_strided_slice %359 {offsets = [0, 16], sizes = [8, 16], strides = [1, 1]} : vector<8x32xf32> to vector<8x16xf32>
    %362 = vector.extract_strided_slice %350 {offsets = [0, 32], sizes = [8, 16], strides = [1, 1]} : vector<8x48xf32> to vector<8x16xf32>
    %363 = vector.extract_strided_slice %351 {offsets = [0, 32], sizes = [8, 16], strides = [1, 1]} : vector<8x48xf32> to vector<8x16xf32>
    %364 = arith.addf %363, %21 : vector<8x16xf32>
    %365 = arith.mulf %360, %364 : vector<8x16xf32>
    %366 = arith.addf %362, %365 : vector<8x16xf32>
    %367 = math.tanh %366 : vector<8x16xf32>
    %368 = arith.subf %327, %367 : vector<8x16xf32>
    %369 = arith.mulf %361, %368 : vector<8x16xf32>
    %370 = arith.addf %367, %369 : vector<8x16xf32>
    %c0_65 = arith.constant 0 : index
    %c0_66 = arith.constant 0 : index
    %371 = vector.load %arg12[%c0_65, %c0_66] : memref<8x16xf32, #tpu.memory_space<vmem>>, vector<8x16xf32>
    tpu.vector_store %arg12[%c0_65, %c0_66], %370 {strides = array<i32>} : memref<8x16xf32, #tpu.memory_space<vmem>>, vector<8x16xf32>,
    return
  }
  func.func @transform_0(%arg0: i32) -> (i32, i32) {
    %c0_i32 = arith.constant 0 : i32
    %c0_i32_0 = arith.constant 0 : i32
    %c0_i32_1 = arith.constant 0 : i32
    return %c0_i32, %c0_i32_0 : i32, i32
  }
  func.func @transform_1(%arg0: i32) -> (i32, i32) {
    %c0_i32 = arith.constant 0 : i32
    %c0_i32_0 = arith.constant 0 : i32
    %c0_i32_1 = arith.constant 0 : i32
    return %c0_i32, %c0_i32_0 : i32, i32
  }
  func.func @transform_2(%arg0: i32) -> (i32, i32) {
    %c0_i32 = arith.constant 0 : i32
    %c0_i32_0 = arith.constant 0 : i32
    %c0_i32_1 = arith.constant 0 : i32
    return %c0_i32, %c0_i32_0 : i32, i32
  }
  func.func @transform_3(%arg0: i32) -> (i32, i32) {
    %c0_i32 = arith.constant 0 : i32
    %c0_i32_0 = arith.constant 0 : i32
    %c0_i32_1 = arith.constant 0 : i32
    return %c0_i32, %c0_i32_0 : i32, i32
  }
  func.func @transform_4(%arg0: i32) -> (i32, i32) {
    %c0_i32 = arith.constant 0 : i32
    %c0_i32_0 = arith.constant 0 : i32
    %c0_i32_1 = arith.constant 0 : i32
    return %c0_i32, %c0_i32_0 : i32, i32
  }
  func.func @transform_5(%arg0: i32) -> (i32, i32) {
    %c0_i32 = arith.constant 0 : i32
    %c0_i32_0 = arith.constant 0 : i32
    %c0_i32_1 = arith.constant 0 : i32
    return %c0_i32, %c0_i32_0 : i32, i32
  }
  func.func @transform_6(%arg0: i32) -> (i32, i32) {
    %c0_i32 = arith.constant 0 : i32
    %c0_i32_0 = arith.constant 0 : i32
    %c0_i32_1 = arith.constant 0 : i32
    return %c0_i32, %c0_i32_0 : i32, i32
  }
  func.func @transform_7(%arg0: i32) -> (i32, i32) {
    %c0_i32 = arith.constant 0 : i32
    %c0_i32_0 = arith.constant 0 : i32
    %c0_i32_1 = arith.constant 0 : i32
    return %c0_i32, %c0_i32_0 : i32, i32
  }
  func.func @transform_8(%arg0: i32) -> (i32, i32) {
    %c0_i32 = arith.constant 0 : i32
    %c0_i32_0 = arith.constant 0 : i32
    %c0_i32_1 = arith.constant 0 : i32
    return %c0_i32, %c0_i32_0 : i32, i32
  }
  func.func @transform_9(%arg0: i32) -> (i32, i32) {
    %c0_i32 = arith.constant 0 : i32
    %c0_i32_0 = arith.constant 0 : i32
    %c0_i32_1 = arith.constant 0 : i32
    return %c0_i32, %c0_i32_0 : i32, i32
  }
  func.func @transform_10(%arg0: i32) -> (i32, i32) {
    %c0_i32 = arith.constant 0 : i32
    %c0_i32_0 = arith.constant 0 : i32
    %c0_i32_1 = arith.constant 0 : i32
    return %c0_i32, %c0_i32_0 : i32, i32
  }
  func.func @transform_11(%arg0: i32) -> (i32, i32) {
    %c0_i32 = arith.constant 0 : i32
    %c0_i32_0 = arith.constant 0 : i32
    %c0_i32_1 = arith.constant 0 : i32
    return %c0_i32, %c0_i32_0 : i32, i32
  }
}

</mosaic_0001>

<llo_original>
// kernel: _lambda_.1
$region0: #{_lambda_.1}
  #allocation0 [shape = 'u32[]', space=smem, size = 0x4, offset = 0x4, fixed_abs, tag = 'smem constant byte address 0x4 - core index']
  #allocation1 [shape = 'u32[144,128]{1,0:T(1,128)}', space=vmem, size = 0x12000, scoped, tag = 'internal scratch']
  %s0 = inlined_call_operand.vmem [shape: f32[64,16], index: 0, kind: input, shape index: {}]
  %s1 = inlined_call_operand.vmem [shape: f32[16,32], index: 1, kind: input, shape index: {}]
  %s2 = inlined_call_operand.vmem [shape: f32[1,32], index: 2, kind: input, shape index: {}]
  %s3 = inlined_call_operand.vmem [shape: f32[32,48], index: 3, kind: input, shape index: {}]
  %s4 = inlined_call_operand.vmem [shape: f32[1,48], index: 4, kind: input, shape index: {}]
  %s5 = inlined_call_operand.vmem [shape: f32[16,48], index: 5, kind: input, shape index: {}]
  %s6 = inlined_call_operand.vmem [shape: f32[1,16], index: 6, kind: input, shape index: {}]
  %s7 = inlined_call_operand.vmem [shape: f32[16,48], index: 7, kind: input, shape index: {}]
  %s8 = inlined_call_operand.vmem [shape: f32[1,48], index: 8, kind: input, shape index: {}]
  %s9 = inlined_call_operand.vmem [shape: f32[16,48], index: 9, kind: input, shape index: {}]
  %s10 = inlined_call_operand.vmem [shape: f32[1,16], index: 10, kind: input, shape index: {}]
  %s11 = inlined_call_operand.hbm [shape: f32[8,16], index: 11, kind: output, shape index: {}]
  %s12 = sld [smem:[#allocation0]]
  $region54: #{_lambda_.1} parent=0
    _
  %s14 = ssub.s32 1, %s12
  %s15 = scalar_select 0, %s14, %s12
  $region1: #{_lambda_.1} parent=0
    #allocation2 [shape = 'u8[4096]{0}', space=vmem, size = 0x1000, scoped, tag = 'output window, operand 0, single buffered']
    #allocation3 [shape = 's32[1]{0}', space=sflag, size = 0x4, scoped, tag = 'scoped memory for _lambda_.1']
    %16 = vsyncpa [#allocation3], 0
    // Predicated region
    $region2: #{_lambda_.1} parent=1 // pred_check
      _
    $region3: #{_lambda_.1} parent=1 // pred_check_branch
      %18 = sbr.rel (0) target = $region5
    $region4: #{_lambda_.1} parent=1 // pred_region
      _
    $region5: #{_lambda_.1} parent=1 // pred_fallthru
      _
    // Predicated region
    $region6: #{_lambda_.1} parent=1 // pred_check
      _
    $region7: #{_lambda_.1} parent=1 // pred_check_branch
      %20 = sbr.rel (0) target = $region9
    $region8: #{_lambda_.1} parent=1 // pred_region
      _
    $region9: #{_lambda_.1} parent=1 // pred_fallthru
      _
    // Predicated region
    $region10: #{_lambda_.1} parent=1 // pred_check
      _
    $region11: #{_lambda_.1} parent=1 // pred_check_branch
      %22 = sbr.rel (0) target = $region13
    $region12: #{_lambda_.1} parent=1 // pred_region
      _
    $region13: #{_lambda_.1} parent=1 // pred_fallthru
      _
    // Predicated region
    $region14: #{_lambda_.1} parent=1 // pred_check
      _
    $region15: #{_lambda_.1} parent=1 // pred_check_branch
      %24 = sbr.rel (0) target = $region17
    $region16: #{_lambda_.1} parent=1 // pred_region
      _
    $region17: #{_lambda_.1} parent=1 // pred_fallthru
      _
    // Predicated region
    $region18: #{_lambda_.1} parent=1 // pred_check
      _
    $region19: #{_lambda_.1} parent=1 // pred_check_branch
      %26 = sbr.rel (0) target = $region21
    $region20: #{_lambda_.1} parent=1 // pred_region
      _
    $region21: #{_lambda_.1} parent=1 // pred_fallthru
      _
    // Predicated region
    $region22: #{_lambda_.1} parent=1 // pred_check
      _
    $region23: #{_lambda_.1} parent=1 // pred_check_branch
      %28 = sbr.rel (0) target = $region25
    $region24: #{_lambda_.1} parent=1 // pred_region
      _
    $region25: #{_lambda_.1} parent=1 // pred_fallthru
      _
    // Predicated region
    $region26: #{_lambda_.1} parent=1 // pred_check
      _
    $region27: #{_lambda_.1} parent=1 // pred_check_branch
      %30 = sbr.rel (0) target = $region29
    $region28: #{_lambda_.1} parent=1 // pred_region
      _
    $region29: #{_lambda_.1} parent=1 // pred_fallthru
      _
    // Predicated region
    $region30: #{_lambda_.1} parent=1 // pred_check
      _
    $region31: #{_lambda_.1} parent=1 // pred_check_branch
      %32 = sbr.rel (0) target = $region33
    $region32: #{_lambda_.1} parent=1 // pred_region
      _
    $region33: #{_lambda_.1} parent=1 // pred_fallthru
      _
    // Predicated region
    $region34: #{_lambda_.1} parent=1 // pred_check
      _
    $region35: #{_lambda_.1} parent=1 // pred_check_branch
      %34 = sbr.rel (0) target = $region37
    $region36: #{_lambda_.1} parent=1 // pred_region
      _
    $region37: #{_lambda_.1} parent=1 // pred_fallthru
      _
    // Predicated region
    $region38: #{_lambda_.1} parent=1 // pred_check
      _
    $region39: #{_lambda_.1} parent=1 // pred_check_branch
      %36 = sbr.rel (0) target = $region41
    $region40: #{_lambda_.1} parent=1 // pred_region
      _
    $region41: #{_lambda_.1} parent=1 // pred_fallthru
      _
    // Predicated region
    $region42: #{_lambda_.1} parent=1 // pred_check
      _
    $region43: #{_lambda_.1} parent=1 // pred_check_branch
      %38 = sbr.rel (0) target = $region45
    $region44: #{_lambda_.1} parent=1 // pred_region
      _
    $region45: #{_lambda_.1} parent=1 // pred_fallthru
      _
    %v39 = vld [vmem:[%s0] sm:$0xff]
    %v40 = vld [vmem:[%s0 + $0x8] sm:$0xff]
    %v41 = vld [vmem:[%s0 + $0x10] sm:$0xff]
    %v42 = vld [vmem:[%s0 + $0x18] sm:$0xff]
    %v43 = vld [vmem:[%s0 + $0x20] sm:$0xff]
    %v44 = vld [vmem:[%s0 + $0x28] sm:$0xff]
    %v45 = vld [vmem:[%s0 + $0x30] sm:$0xff]
    %v46 = vld [vmem:[%s0 + $0x38] sm:$0xff]
    %v47 = vld [vmem:[%s1] sm:$0xff]
    %v48 = vld [vmem:[%s1 + $0x8] sm:$0xff]
    %v49 = vld [vmem:[%s2] sm:$0x1]
    %v51 = vlaneseq
    %v52 = vshrl.u32 %v51, 7
    %v53 = vsub.s32 0, %v52
    %v54 = vrot.slane %v49, %v53
    %vm56 = vcmask 130048
    %v58 = vsel %vm56, %v39, 0
    %v61 = vsel %vm56, %v40, 0
    %v64 = vsel %vm56, %v41, 0
    %v67 = vsel %vm56, %v42, 0
    %v70 = vsel %vm56, %v43, 0
    %v73 = vsel %vm56, %v44, 0
    %v76 = vsel %vm56, %v45, 0
    %v79 = vsel %vm56, %v46, 0
    %81 = vmatprep.subr.mxu0 0.0
    %82 = vmatpush1.msra.mxu0 %v47
    %83 = vmatprep.subr.mxu0 0.0
    %84 = vmatpush1.msra.mxu0 %v48
    %85 = vmatprep.subr.mxu0 0.0
    %86 = vmatpush1.msra.mxu0 0.0
    %87 = vmatprep.subr.mxu0 0.0
    %88 = vmatpush1.msra.mxu0 0.0
    %89 = vmatprep.subr.mxu0 0.0
    %90 = vmatpush1.msra.mxu0 0.0
    %91 = vmatprep.subr.mxu0 0.0
    %92 = vmatpush1.msra.mxu0 0.0
    %93 = vmatprep.subr.mxu0 0.0
    %94 = vmatpush1.msra.mxu0 0.0
    %95 = vmatprep.subr.mxu0 0.0
    %96 = vmatpush1.msra.mxu0 0.0
    %97 = vmatprep.subr.mxu0 0.0
    %98 = vmatpush1.msra.mxu0 0.0
    %99 = vmatprep.subr.mxu0 0.0
    %100 = vmatpush1.msra.mxu0 0.0
    %101 = vmatprep.subr.mxu0 0.0
    %102 = vmatpush1.msra.mxu0 0.0
    %103 = vmatprep.subr.mxu0 0.0
    %104 = vmatpush1.msra.mxu0 0.0
    %105 = vmatprep.subr.mxu0 0.0
    %106 = vmatpush1.msra.mxu0 0.0
    %107 = vmatprep.subr.mxu0 0.0
    %108 = vmatpush1.msra.mxu0 0.0
    %109 = vmatprep.subr.mxu0 0.0
    %110 = vmatpush1.msra.mxu0 0.0
    %111 = vmatprep.subr.mxu0 0.0
    %112 = vmatpush1.msra.mxu0 0.0
    %113 = vmatprep.subr.mxu0 0.0
    %114 = vmatpush1.msra.mxu0 0.0
    %115 = vmatprep.subr.mxu0 0.0
    %116 = vmatpush1.msra.mxu0 0.0
    %117 = vmatprep.subr.mxu0 0.0
    %118 = vmatpush1.msra.mxu0 0.0
    %119 = vmatprep.subr.mxu0 0.0
    %120 = vmatpush1.msra.mxu0 0.0
    %121 = vmatprep.subr.mxu0 0.0
    %122 = vmatpush1.msra.mxu0 0.0
    %123 = vmatprep.subr.mxu0 0.0
    %124 = vmatpush1.msra.mxu0 0.0
    %125 = vmatprep.subr.mxu0 0.0
    %126 = vmatpush1.msra.mxu0 0.0
    %127 = vmatprep.subr.mxu0 0.0
    %128 = vmatpush1.msra.mxu0 0.0
    %129 = vmatprep.subr.mxu0 0.0
    %130 = vmatpush1.msra.mxu0 0.0
    %131 = vmatprep.subr.mxu0 0.0
    %132 = vmatpush1.msra.mxu0 0.0
    %133 = vmatprep.subr.mxu0 0.0
    %134 = vmatpush1.msra.mxu0 0.0
    %135 = vmatprep.subr.mxu0 0.0
    %136 = vmatpush1.msra.mxu0 0.0
    %137 = vmatprep.subr.mxu0 0.0
    %138 = vmatpush1.msra.mxu0 0.0
    %139 = vmatprep.subr.mxu0 0.0
    %140 = vmatpush1.msra.mxu0 0.0
    %141 = vmatprep.subr.mxu0 0.0
    %142 = vmatpush1.msra.mxu0 0.0
    %143 = vmatprep.subr.mxu0 0.0
    %144 = vmatpush1.msra.mxu0 0.0
    %145 = vmatprep.mubr.f32.mxu0 0.0
    %146 = vmatmul.mubr.f32.gmra.mrb[0].mxu0 %v58
    %v147 = vpop.f32.mrb[0].mxu0
    %v148 = vadd.f32 %v54, %v147
    %v149 = vpop.f32.mrb[0].mxu0
    %150 = vmatprep.mubr.f32.mxu0 0.0
    %151 = vmatmul.mubr.f32.gmra.mrb[0].mxu0 %v61
    %v152 = vpop.f32.mrb[0].mxu0
    %v153 = vadd.f32 %v54, %v152
    %v154 = vpop.f32.mrb[0].mxu0
    %155 = vmatprep.mubr.f32.mxu0 0.0
    %156 = vmatmul.mubr.f32.gmra.mrb[0].mxu0 %v64
    %v157 = vpop.f32.mrb[0].mxu0
    %v158 = vadd.f32 %v54, %v157
    %v159 = vpop.f32.mrb[0].mxu0
    %160 = vmatprep.mubr.f32.mxu0 0.0
    %161 = vmatmul.mubr.f32.gmra.mrb[0].mxu0 %v67
    %v162 = vpop.f32.mrb[0].mxu0
    %v163 = vadd.f32 %v54, %v162
    %v164 = vpop.f32.mrb[0].mxu0
    %165 = vmatprep.mubr.f32.mxu0 0.0
    %166 = vmatmul.mubr.f32.gmra.mrb[0].mxu0 %v70
    %v167 = vpop.f32.mrb[0].mxu0
    %v168 = vadd.f32 %v54, %v167
    %v169 = vpop.f32.mrb[0].mxu0
    %170 = vmatprep.mubr.f32.mxu0 0.0
    %171 = vmatmul.mubr.f32.gmra.mrb[0].mxu0 %v73
    %v172 = vpop.f32.mrb[0].mxu0
    %v173 = vadd.f32 %v54, %v172
    %v174 = vpop.f32.mrb[0].mxu0
    %175 = vmatprep.mubr.f32.mxu0 0.0
    %176 = vmatmul.mubr.f32.gmra.mrb[0].mxu0 %v76
    %v177 = vpop.f32.mrb[0].mxu0
    %v178 = vadd.f32 %v54, %v177
    %v179 = vpop.f32.mrb[0].mxu0
    %180 = vmatprep.mubr.f32.mxu0 0.0
    %181 = vmatmul.mubr.f32.gmra.mrb[0].mxu0 %v79
    %v182 = vpop.f32.mrb[0].mxu0
    %v183 = vadd.f32 %v54, %v182
    %v184 = vpop.f32.mrb[0].mxu0
    %185 = vdwg.mxu0
    %v186 = vmax.f32 %v148, 0.0
    %v187 = vmax.f32 %v153, 0.0
    %v188 = vmax.f32 %v158, 0.0
    %v189 = vmax.f32 %v163, 0.0
    %v190 = vmax.f32 %v168, 0.0
    %v191 = vmax.f32 %v173, 0.0
    %v192 = vmax.f32 %v178, 0.0
    %v193 = vmax.f32 %v183, 0.0
    %v194 = vld [vmem:[%s3] sm:$0xff]
    %v195 = vld [vmem:[%s3 + $0x8] sm:$0xff]
    %v196 = vld [vmem:[%s3 + $0x10] sm:$0xff]
    %v197 = vld [vmem:[%s3 + $0x18] sm:$0xff]
    %v198 = vld [vmem:[%s4] sm:$0x1]
    %v200 = vlaneseq
    %v201 = vshrl.u32 %v200, 7
    %v202 = vsub.s32 0, %v201
    %v203 = vrot.slane %v198, %v202
    %vm205 = vcmask 261120
    %v207 = vsel %vm205, %v186, 0
    %v210 = vsel %vm205, %v187, 0
    %v213 = vsel %vm205, %v188, 0
    %v216 = vsel %vm205, %v189, 0
    %v219 = vsel %vm205, %v190, 0
    %v222 = vsel %vm205, %v191, 0
    %v225 = vsel %vm205, %v192, 0
    %v228 = vsel %vm205, %v193, 0
    %230 = vmatprep.subr.mxu0 0.0
    %231 = vmatpush1.msra.mxu0 %v194
    %232 = vmatprep.subr.mxu0 0.0
    %233 = vmatpush1.msra.mxu0 %v195
    %234 = vmatprep.subr.mxu0 0.0
    %235 = vmatpush1.msra.mxu0 %v196
    %236 = vmatprep.subr.mxu0 0.0
    %237 = vmatpush1.msra.mxu0 %v197
    %238 = vmatprep.subr.mxu0 0.0
    %239 = vmatpush1.msra.mxu0 0.0
    %240 = vmatprep.subr.mxu0 0.0
    %241 = vmatpush1.msra.mxu0 0.0
    %242 = vmatprep.subr.mxu0 0.0
    %243 = vmatpush1.msra.mxu0 0.0
    %244 = vmatprep.subr.mxu0 0.0
    %245 = vmatpush1.msra.mxu0 0.0
    %246 = vmatprep.subr.mxu0 0.0
    %247 = vmatpush1.msra.mxu0 0.0
    %248 = vmatprep.subr.mxu0 0.0
    %249 = vmatpush1.msra.mxu0 0.0
    %250 = vmatprep.subr.mxu0 0.0
    %251 = vmatpush1.msra.mxu0 0.0
    %252 = vmatprep.subr.mxu0 0.0
    %253 = vmatpush1.msra.mxu0 0.0
    %254 = vmatprep.subr.mxu0 0.0
    %255 = vmatpush1.msra.mxu0 0.0
    %256 = vmatprep.subr.mxu0 0.0
    %257 = vmatpush1.msra.mxu0 0.0
    %258 = vmatprep.subr.mxu0 0.0
    %259 = vmatpush1.msra.mxu0 0.0
    %260 = vmatprep.subr.mxu0 0.0
    %261 = vmatpush1.msra.mxu0 0.0
    %262 = vmatprep.subr.mxu0 0.0
    %263 = vmatpush1.msra.mxu0 0.0
    %264 = vmatprep.subr.mxu0 0.0
    %265 = vmatpush1.msra.mxu0 0.0
    %266 = vmatprep.subr.mxu0 0.0
    %267 = vmatpush1.msra.mxu0 0.0
    %268 = vmatprep.subr.mxu0 0.0
    %269 = vmatpush1.msra.mxu0 0.0
    %270 = vmatprep.subr.mxu0 0.0
    %271 = vmatpush1.msra.mxu0 0.0
    %272 = vmatprep.subr.mxu0 0.0
    %273 = vmatpush1.msra.mxu0 0.0
    %274 = vmatprep.subr.mxu0 0.0
    %275 = vmatpush1.msra.mxu0 0.0
    %276 = vmatprep.subr.mxu0 0.0
    %277 = vmatpush1.msra.mxu0 0.0
    %278 = vmatprep.subr.mxu0 0.0
    %279 = vmatpush1.msra.mxu0 0.0
    %280 = vmatprep.subr.mxu0 0.0
    %281 = vmatpush1.msra.mxu0 0.0
    %282 = vmatprep.subr.mxu0 0.0
    %283 = vmatpush1.msra.mxu0 0.0
    %284 = vmatprep.subr.mxu0 0.0
    %285 = vmatpush1.msra.mxu0 0.0
    %286 = vmatprep.subr.mxu0 0.0
    %287 = vmatpush1.msra.mxu0 0.0
    %288 = vmatprep.subr.mxu0 0.0
    %289 = vmatpush1.msra.mxu0 0.0
    %290 = vmatprep.subr.mxu0 0.0
    %291 = vmatpush1.msra.mxu0 0.0
    %292 = vmatprep.subr.mxu0 0.0
    %293 = vmatpush1.msra.mxu0 0.0
    %294 = vmatprep.mubr.f32.mxu0 0.0
    %295 = vmatmul.mubr.f32.gmra.mrb[0].mxu0 %v207
    %v296 = vpop.f32.mrb[0].mxu0
    %v297 = vadd.f32 %v203, %v296
    %v298 = vpop.f32.mrb[0].mxu0
    %299 = vmatprep.mubr.f32.mxu0 0.0
    %300 = vmatmul.mubr.f32.gmra.mrb[0].mxu0 %v210
    %v301 = vpop.f32.mrb[0].mxu0
    %v302 = vadd.f32 %v203, %v301
    %v303 = vpop.f32.mrb[0].mxu0
    %304 = vmatprep.mubr.f32.mxu0 0.0
    %305 = vmatmul.mubr.f32.gmra.mrb[0].mxu0 %v213
    %v306 = vpop.f32.mrb[0].mxu0
    %v307 = vadd.f32 %v203, %v306
    %v308 = vpop.f32.mrb[0].mxu0
    %309 = vmatprep.mubr.f32.mxu0 0.0
    %310 = vmatmul.mubr.f32.gmra.mrb[0].mxu0 %v216
    %v311 = vpop.f32.mrb[0].mxu0
    %v312 = vadd.f32 %v203, %v311
    %v313 = vpop.f32.mrb[0].mxu0
    %314 = vmatprep.mubr.f32.mxu0 0.0
    %315 = vmatmul.mubr.f32.gmra.mrb[0].mxu0 %v219
    %v316 = vpop.f32.mrb[0].mxu0
    %v317 = vadd.f32 %v203, %v316
    %v318 = vpop.f32.mrb[0].mxu0
    %319 = vmatprep.mubr.f32.mxu0 0.0
    %320 = vmatmul.mubr.f32.gmra.mrb[0].mxu0 %v222
    %v321 = vpop.f32.mrb[0].mxu0
    %v322 = vadd.f32 %v203, %v321
    %v323 = vpop.f32.mrb[0].mxu0
    %324 = vmatprep.mubr.f32.mxu0 0.0
    %325 = vmatmul.mubr.f32.gmra.mrb[0].mxu0 %v225
    %v326 = vpop.f32.mrb[0].mxu0
    %v327 = vadd.f32 %v203, %v326
    %v328 = vpop.f32.mrb[0].mxu0
    %329 = vmatprep.mubr.f32.mxu0 0.0
    %330 = vmatmul.mubr.f32.gmra.mrb[0].mxu0 %v228
    %v331 = vpop.f32.mrb[0].mxu0
    %v332 = vadd.f32 %v203, %v331
    %v333 = vpop.f32.mrb[0].mxu0
    %334 = vdwg.mxu0
    %v335 = vld [vmem:[%s5] sm:$0xff]
    %v336 = vld [vmem:[%s5 + $0x8] sm:$0xff]
    %v337 = vld [vmem:[%s7] sm:$0xff]
    %v338 = vld [vmem:[%s7 + $0x8] sm:$0xff]
    %v339 = vld [vmem:[%s9] sm:$0xff]
    %v340 = vld [vmem:[%s9 + $0x8] sm:$0xff]
    %v341 = vld [vmem:[%s6] sm:$0x1]
    %v343 = vlaneseq
    %v344 = vshrl.u32 %v343, 7
    %v345 = vsub.s32 0, %v344
    %v346 = vrot.slane %v341, %v345
    %v347 = vld [vmem:[%s10] sm:$0x1]
    %v349 = vlaneseq
    %v350 = vshrl.u32 %v349, 7
    %v351 = vsub.s32 0, %v350
    %v352 = vrot.slane %v347, %v351
    %v353 = vld [vmem:[%s8] sm:$0x1]
    %v355 = vlaneseq
    %v356 = vshrl.u32 %v355, 7
    %v357 = vsub.s32 0, %v356
    %v358 = vrot.slane %v353, %v357
    %v361 = vsel %vm56, 0.0, 0
    %363 = vmatprep.subr.mxu0 0.0
    %364 = vmatpush1.msra.mxu0 %v335
    %365 = vmatprep.subr.mxu0 0.0
    %366 = vmatpush1.msra.mxu0 %v336
    %367 = vmatprep.subr.mxu0 0.0
    %368 = vmatpush1.msra.mxu0 0.0
    %369 = vmatprep.subr.mxu0 0.0
    %370 = vmatpush1.msra.mxu0 0.0
    %371 = vmatprep.subr.mxu0 0.0
    %372 = vmatpush1.msra.mxu0 0.0
    %373 = vmatprep.subr.mxu0 0.0
    %374 = vmatpush1.msra.mxu0 0.0
    %375 = vmatprep.subr.mxu0 0.0
    %376 = vmatpush1.msra.mxu0 0.0
    %377 = vmatprep.subr.mxu0 0.0
    %378 = vmatpush1.msra.mxu0 0.0
    %379 = vmatprep.subr.mxu0 0.0
    %380 = vmatpush1.msra.mxu0 0.0
    %381 = vmatprep.subr.mxu0 0.0
    %382 = vmatpush1.msra.mxu0 0.0
    %383 = vmatprep.subr.mxu0 0.0
    %384 = vmatpush1.msra.mxu0 0.0
    %385 = vmatprep.subr.mxu0 0.0
    %386 = vmatpush1.msra.mxu0 0.0
    %387 = vmatprep.subr.mxu0 0.0
    %388 = vmatpush1.msra.mxu0 0.0
    %389 = vmatprep.subr.mxu0 0.0
    %390 = vmatpush1.msra.mxu0 0.0
    %391 = vmatprep.subr.mxu0 0.0
    %392 = vmatpush1.msra.mxu0 0.0
    %393 = vmatprep.subr.mxu0 0.0
    %394 = vmatpush1.msra.mxu0 0.0
    %395 = vmatprep.subr.mxu0 0.0
    %396 = vmatpush1.msra.mxu0 0.0
    %397 = vmatprep.subr.mxu0 0.0
    %398 = vmatpush1.msra.mxu0 0.0
    %399 = vmatprep.subr.mxu0 0.0
    %400 = vmatpush1.msra.mxu0 0.0
    %401 = vmatprep.subr.mxu0 0.0
    %402 = vmatpush1.msra.mxu0 0.0
    %403 = vmatprep.subr.mxu0 0.0
    %404 = vmatpush1.msra.mxu0 0.0
    %405 = vmatprep.subr.mxu0 0.0
    %406 = vmatpush1.msra.mxu0 0.0
    %407 = vmatprep.subr.mxu0 0.0
    %408 = vmatpush1.msra.mxu0 0.0
    %409 = vmatprep.subr.mxu0 0.0
    %410 = vmatpush1.msra.mxu0 0.0
    %411 = vmatprep.subr.mxu0 0.0
    %412 = vmatpush1.msra.mxu0 0.0
    %413 = vmatprep.subr.mxu0 0.0
    %414 = vmatpush1.msra.mxu0 0.0
    %415 = vmatprep.subr.mxu0 0.0
    %416 = vmatpush1.msra.mxu0 0.0
    %417 = vmatprep.subr.mxu0 0.0
    %418 = vmatpush1.msra.mxu0 0.0
    %419 = vmatprep.subr.mxu0 0.0
    %420 = vmatpush1.msra.mxu0 0.0
    %421 = vmatprep.subr.mxu0 0.0
    %422 = vmatpush1.msra.mxu0 0.0
    %423 = vmatprep.subr.mxu0 0.0
    %424 = vmatpush1.msra.mxu0 0.0
    %425 = vmatprep.subr.mxu0 0.0
    %426 = vmatpush1.msra.mxu0 0.0
    %427 = vmatprep.mubr.f32.mxu0 0.0
    %428 = vmatmul.mubr.f32.gmra.mrb[0].mxu0 %v361
    %v429 = vpop.f32.mrb[0].mxu0
    %v430 = vadd.f32 0.0, %v429
    %v431 = vpop.f32.mrb[0].mxu0
    %432 = vdwg.mxu0
    %v433 = vadd.f32 %v297, %v430
    %v434 = vxor.u32 %v433, 2147483648
    %v435 = vmul.f32 %v434, 1.442695
    %v436 = vpow.pop %v435
    %v437 = vadd.f32 %v436, 1.0
    %v438 = vrcp.pop %v437
    %v439 = vmul.f32 1.0, %v438
    %440 = vrot.lane.b32.xlu0 %v346, 32
    %v441 = vpop.permute.xlu0 %440
    %v443 = vadd.f32 %v430, %v441
    %445 = vrot.lane.b32.xlu0 %v443, 96
    %v446 = vpop.permute.xlu0 %445
    %v448 = vmul.f32 %v439, %v446
    %450 = vrot.lane.b32.xlu0 %v448, 32
    %v451 = vpop.permute.xlu0 %450
    %v453 = vadd.f32 %v297, %v451
    %v454 = vtanh.pop %v453
    %v455 = vsub.f32 0.0, %v454
    %457 = vrot.lane.b32.xlu0 %v455, 112
    %v458 = vpop.permute.xlu0 %457
    %v460 = vmul.f32 %v439, %v458
    %462 = vrot.lane.b32.xlu0 %v460, 16
    %v463 = vpop.permute.xlu0 %462
    %v465 = vadd.f32 %v454, %v463
    %467 = vrot.lane.b32.xlu0 %v465, 96
    %v468 = vpop.permute.xlu0 %467
    %v469 = vsel %vm56, %v468, 0
    %471 = vmatprep.subr.mxu0 0.0
    %472 = vmatpush1.msra.mxu0 %v337
    %473 = vmatprep.subr.mxu0 0.0
    %474 = vmatpush1.msra.mxu0 %v338
    %475 = vmatprep.subr.mxu0 0.0
    %476 = vmatpush1.msra.mxu0 0.0
    %477 = vmatprep.subr.mxu0 0.0
    %478 = vmatpush1.msra.mxu0 0.0
    %479 = vmatprep.subr.mxu0 0.0
    %480 = vmatpush1.msra.mxu0 0.0
    %481 = vmatprep.subr.mxu0 0.0
    %482 = vmatpush1.msra.mxu0 0.0
    %483 = vmatprep.subr.mxu0 0.0
    %484 = vmatpush1.msra.mxu0 0.0
    %485 = vmatprep.subr.mxu0 0.0
    %486 = vmatpush1.msra.mxu0 0.0
    %487 = vmatprep.subr.mxu0 0.0
    %488 = vmatpush1.msra.mxu0 0.0
    %489 = vmatprep.subr.mxu0 0.0
    %490 = vmatpush1.msra.mxu0 0.0
    %491 = vmatprep.subr.mxu0 0.0
    %492 = vmatpush1.msra.mxu0 0.0
    %493 = vmatprep.subr.mxu0 0.0
    %494 = vmatpush1.msra.mxu0 0.0
    %495 = vmatprep.subr.mxu0 0.0
    %496 = vmatpush1.msra.mxu0 0.0
    %497 = vmatprep.subr.mxu0 0.0
    %498 = vmatpush1.msra.mxu0 0.0
    %499 = vmatprep.subr.mxu0 0.0
    %500 = vmatpush1.msra.mxu0 0.0
    %501 = vmatprep.subr.mxu0 0.0
    %502 = vmatpush1.msra.mxu0 0.0
    %503 = vmatprep.subr.mxu0 0.0
    %504 = vmatpush1.msra.mxu0 0.0
    %505 = vmatprep.subr.mxu0 0.0
    %506 = vmatpush1.msra.mxu0 0.0
    %507 = vmatprep.subr.mxu0 0.0
    %508 = vmatpush1.msra.mxu0 0.0
    %509 = vmatprep.subr.mxu0 0.0
    %510 = vmatpush1.msra.mxu0 0.0
    %511 = vmatprep.subr.mxu0 0.0
    %512 = vmatpush1.msra.mxu0 0.0
    %513 = vmatprep.subr.mxu0 0.0
    %514 = vmatpush1.msra.mxu0 0.0
    %515 = vmatprep.subr.mxu0 0.0
    %516 = vmatpush1.msra.mxu0 0.0
    %517 = vmatprep.subr.mxu0 0.0
    %518 = vmatpush1.msra.mxu0 0.0
    %519 = vmatprep.subr.mxu0 0.0
    %520 = vmatpush1.msra.mxu0 0.0
    %521 = vmatprep.subr.mxu0 0.0
    %522 = vmatpush1.msra.mxu0 0.0
    %523 = vmatprep.subr.mxu0 0.0
    %524 = vmatpush1.msra.mxu0 0.0
    %525 = vmatprep.subr.mxu0 0.0
    %526 = vmatpush1.msra.mxu0 0.0
    %527 = vmatprep.subr.mxu0 0.0
    %528 = vmatpush1.msra.mxu0 0.0
    %529 = vmatprep.subr.mxu0 0.0
    %530 = vmatpush1.msra.mxu0 0.0
    %531 = vmatprep.subr.mxu0 0.0
    %532 = vmatpush1.msra.mxu0 0.0
    %533 = vmatprep.subr.mxu0 0.0
    %534 = vmatpush1.msra.mxu0 0.0
    %535 = vmatprep.mubr.f32.mxu0 0.0
    %536 = vmatmul.mubr.f32.gmra.mrb[0].mxu0 %v469
    %v537 = vpop.f32.mrb[0].mxu0
    %v538 = vadd.f32 %v358, %v537
    %v539 = vpop.f32.mrb[0].mxu0
    %540 = vdwg.mxu0
    %541 = vmatprep.subr.mxu0 0.0
    %542 = vmatpush1.msra.mxu0 %v339
    %543 = vmatprep.subr.mxu0 0.0
    %544 = vmatpush1.msra.mxu0 %v340
    %545 = vmatprep.subr.mxu0 0.0
    %546 = vmatpush1.msra.mxu0 0.0
    %547 = vmatprep.subr.mxu0 0.0
    %548 = vmatpush1.msra.mxu0 0.0
    %549 = vmatprep.subr.mxu0 0.0
    %550 = vmatpush1.msra.mxu0 0.0
    %551 = vmatprep.subr.mxu0 0.0
    %552 = vmatpush1.msra.mxu0 0.0
    %553 = vmatprep.subr.mxu0 0.0
    %554 = vmatpush1.msra.mxu0 0.0
    %555 = vmatprep.subr.mxu0 0.0
    %556 = vmatpush1.msra.mxu0 0.0
    %557 = vmatprep.subr.mxu0 0.0
    %558 = vmatpush1.msra.mxu0 0.0
    %559 = vmatprep.subr.mxu0 0.0
    %560 = vmatpush1.msra.mxu0 0.0
    %561 = vmatprep.subr.mxu0 0.0
    %562 = vmatpush1.msra.mxu0 0.0
    %563 = vmatprep.subr.mxu0 0.0
    %564 = vmatpush1.msra.mxu0 0.0
    %565 = vmatprep.subr.mxu0 0.0
    %566 = vmatpush1.msra.mxu0 0.0
    %567 = vmatprep.subr.mxu0 0.0
    %568 = vmatpush1.msra.mxu0 0.0
    %569 = vmatprep.subr.mxu0 0.0
    %570 = vmatpush1.msra.mxu0 0.0
    %571 = vmatprep.subr.mxu0 0.0
    %572 = vmatpush1.msra.mxu0 0.0
    %573 = vmatprep.subr.mxu0 0.0
    %574 = vmatpush1.msra.mxu0 0.0
    %575 = vmatprep.subr.mxu0 0.0
    %576 = vmatpush1.msra.mxu0 0.0
    %577 = vmatprep.subr.mxu0 0.0
    %578 = vmatpush1.msra.mxu0 0.0
    %579 = vmatprep.subr.mxu0 0.0
    %580 = vmatpush1.msra.mxu0 0.0
    %581 = vmatprep.subr.mxu0 0.0
    %582 = vmatpush1.msra.mxu0 0.0
    %583 = vmatprep.subr.mxu0 0.0
    %584 = vmatpush1.msra.mxu0 0.0
    %585 = vmatprep.subr.mxu0 0.0
    %586 = vmatpush1.msra.mxu0 0.0
    %587 = vmatprep.subr.mxu0 0.0
    %588 = vmatpush1.msra.mxu0 0.0
    %589 = vmatprep.subr.mxu0 0.0
    %590 = vmatpush1.msra.mxu0 0.0
    %591 = vmatprep.subr.mxu0 0.0
    %592 = vmatpush1.msra.mxu0 0.0
    %593 = vmatprep.subr.mxu0 0.0
    %594 = vmatpush1.msra.mxu0 0.0
    %595 = vmatprep.subr.mxu0 0.0
    %596 = vmatpush1.msra.mxu0 0.0
    %597 = vmatprep.subr.mxu0 0.0
    %598 = vmatpush1.msra.mxu0 0.0
    %599 = vmatprep.subr.mxu0 0.0
    %600 = vmatpush1.msra.mxu0 0.0
    %601 = vmatprep.subr.mxu0 0.0
    %602 = vmatpush1.msra.mxu0 0.0
    %603 = vmatprep.subr.mxu0 0.0
    %604 = vmatpush1.msra.mxu0 0.0
    %605 = vmatprep.mubr.f32.mxu0 0.0
    %606 = vmatmul.mubr.f32.gmra.mrb[0].mxu0 %v361
    %v607 = vpop.f32.mrb[0].mxu0
    %v608 = vadd.f32 0.0, %v607
    %v609 = vpop.f32.mrb[0].mxu0
    %610 = vdwg.mxu0
    %v611 = vadd.f32 %v538, %v608
    %v612 = vxor.u32 %v611, 2147483648
    %v613 = vmul.f32 %v612, 1.442695
    %v614 = vpow.pop %v613
    %v615 = vadd.f32 %v614, 1.0
    %v616 = vrcp.pop %v615
    %v617 = vmul.f32 1.0, %v616
    %618 = vrot.lane.b32.xlu0 %v352, 32
    %v619 = vpop.permute.xlu0 %618
    %v621 = vadd.f32 %v608, %v619
    %623 = vrot.lane.b32.xlu0 %v621, 96
    %v624 = vpop.permute.xlu0 %623
    %v626 = vmul.f32 %v617, %v624
    %628 = vrot.lane.b32.xlu0 %v626, 32
    %v629 = vpop.permute.xlu0 %628
    %v631 = vadd.f32 %v538, %v629
    %v632 = vtanh.pop %v631
    %v633 = vsub.f32 0.0, %v632
    %635 = vrot.lane.b32.xlu0 %v633, 112
    %v636 = vpop.permute.xlu0 %635
    %v638 = vmul.f32 %v617, %v636
    %640 = vrot.lane.b32.xlu0 %v638, 16
    %v641 = vpop.permute.xlu0 %640
    %v643 = vadd.f32 %v632, %v641
    %644 = vmatprep.subr.mxu0 0.0
    %645 = vmatpush1.msra.mxu0 %v335
    %646 = vmatprep.subr.mxu0 0.0
    %647 = vmatpush1.msra.mxu0 %v336
    %648 = vmatprep.subr.mxu0 0.0
    %649 = vmatpush1.msra.mxu0 0.0
    %650 = vmatprep.subr.mxu0 0.0
    %651 = vmatpush1.msra.mxu0 0.0
    %652 = vmatprep.subr.mxu0 0.0
    %653 = vmatpush1.msra.mxu0 0.0
    %654 = vmatprep.subr.mxu0 0.0
    %655 = vmatpush1.msra.mxu0 0.0
    %656 = vmatprep.subr.mxu0 0.0
    %657 = vmatpush1.msra.mxu0 0.0
    %658 = vmatprep.subr.mxu0 0.0
    %659 = vmatpush1.msra.mxu0 0.0
    %660 = vmatprep.subr.mxu0 0.0
    %661 = vmatpush1.msra.mxu0 0.0
    %662 = vmatprep.subr.mxu0 0.0
    %663 = vmatpush1.msra.mxu0 0.0
    %664 = vmatprep.subr.mxu0 0.0
    %665 = vmatpush1.msra.mxu0 0.0
    %666 = vmatprep.subr.mxu0 0.0
    %667 = vmatpush1.msra.mxu0 0.0
    %668 = vmatprep.subr.mxu0 0.0
    %669 = vmatpush1.msra.mxu0 0.0
    %670 = vmatprep.subr.mxu0 0.0
    %671 = vmatpush1.msra.mxu0 0.0
    %672 = vmatprep.subr.mxu0 0.0
    %673 = vmatpush1.msra.mxu0 0.0
    %674 = vmatprep.subr.mxu0 0.0
    %675 = vmatpush1.msra.mxu0 0.0
    %676 = vmatprep.subr.mxu0 0.0
    %677 = vmatpush1.msra.mxu0 0.0
    %678 = vmatprep.subr.mxu0 0.0
    %679 = vmatpush1.msra.mxu0 0.0
    %680 = vmatprep.subr.mxu0 0.0
    %681 = vmatpush1.msra.mxu0 0.0
    %682 = vmatprep.subr.mxu0 0.0
    %683 = vmatpush1.msra.mxu0 0.0
    %684 = vmatprep.subr.mxu0 0.0
    %685 = vmatpush1.msra.mxu0 0.0
    %686 = vmatprep.subr.mxu0 0.0
    %687 = vmatpush1.msra.mxu0 0.0
    %688 = vmatprep.subr.mxu0 0.0
    %689 = vmatpush1.msra.mxu0 0.0
    %690 = vmatprep.subr.mxu0 0.0
    %691 = vmatpush1.msra.mxu0 0.0
    %692 = vmatprep.subr.mxu0 0.0
    %693 = vmatpush1.msra.mxu0 0.0
    %694 = vmatprep.subr.mxu0 0.0
    %695 = vmatpush1.msra.mxu0 0.0
    %696 = vmatprep.subr.mxu0 0.0
    %697 = vmatpush1.msra.mxu0 0.0
    %698 = vmatprep.subr.mxu0 0.0
    %699 = vmatpush1.msra.mxu0 0.0
    %700 = vmatprep.subr.mxu0 0.0
    %701 = vmatpush1.msra.mxu0 0.0
    %702 = vmatprep.subr.mxu0 0.0
    %703 = vmatpush1.msra.mxu0 0.0
    %704 = vmatprep.subr.mxu0 0.0
    %705 = vmatpush1.msra.mxu0 0.0
    %706 = vmatprep.subr.mxu0 0.0
    %707 = vmatpush1.msra.mxu0 0.0
    %708 = vmatprep.mubr.f32.mxu0 0.0
    %709 = vmatmul.mubr.f32.gmra.mrb[0].mxu0 %v469
    %v710 = vpop.f32.mrb[0].mxu0
    %v711 = vadd.f32 0.0, %v710
    %v712 = vpop.f32.mrb[0].mxu0
    %713 = vdwg.mxu0
    %v714 = vadd.f32 %v302, %v711
    %v715 = vxor.u32 %v714, 2147483648
    %v716 = vmul.f32 %v715, 1.442695
    %v717 = vpow.pop %v716
    %v718 = vadd.f32 %v717, 1.0
    %v719 = vrcp.pop %v718
    %v720 = vmul.f32 1.0, %v719
    %v721 = vadd.f32 %v711, %v441
    %723 = vrot.lane.b32.xlu0 %v721, 96
    %v724 = vpop.permute.xlu0 %723
    %v726 = vmul.f32 %v720, %v724
    %728 = vrot.lane.b32.xlu0 %v726, 32
    %v729 = vpop.permute.xlu0 %728
    %v731 = vadd.f32 %v302, %v729
    %v732 = vtanh.pop %v731
    %v733 = vsub.f32 %v465, %v732
    %735 = vrot.lane.b32.xlu0 %v733, 112
    %v736 = vpop.permute.xlu0 %735
    %v738 = vmul.f32 %v720, %v736
    %740 = vrot.lane.b32.xlu0 %v738, 16
    %v741 = vpop.permute.xlu0 %740
    %v743 = vadd.f32 %v732, %v741
    %745 = vrot.lane.b32.xlu0 %v743, 96
    %v746 = vpop.permute.xlu0 %745
    %v747 = vsel %vm56, %v746, 0
    %749 = vmatprep.subr.mxu0 0.0
    %750 = vmatpush1.msra.mxu0 %v337
    %751 = vmatprep.subr.mxu0 0.0
    %752 = vmatpush1.msra.mxu0 %v338
    %753 = vmatprep.subr.mxu0 0.0
    %754 = vmatpush1.msra.mxu0 0.0
    %755 = vmatprep.subr.mxu0 0.0
    %756 = vmatpush1.msra.mxu0 0.0
    %757 = vmatprep.subr.mxu0 0.0
    %758 = vmatpush1.msra.mxu0 0.0
    %759 = vmatprep.subr.mxu0 0.0
    %760 = vmatpush1.msra.mxu0 0.0
    %761 = vmatprep.subr.mxu0 0.0
    %762 = vmatpush1.msra.mxu0 0.0
    %763 = vmatprep.subr.mxu0 0.0
    %764 = vmatpush1.msra.mxu0 0.0
    %765 = vmatprep.subr.mxu0 0.0
    %766 = vmatpush1.msra.mxu0 0.0
    %767 = vmatprep.subr.mxu0 0.0
    %768 = vmatpush1.msra.mxu0 0.0
    %769 = vmatprep.subr.mxu0 0.0
    %770 = vmatpush1.msra.mxu0 0.0
    %771 = vmatprep.subr.mxu0 0.0
    %772 = vmatpush1.msra.mxu0 0.0
    %773 = vmatprep.subr.mxu0 0.0
    %774 = vmatpush1.msra.mxu0 0.0
    %775 = vmatprep.subr.mxu0 0.0
    %776 = vmatpush1.msra.mxu0 0.0
    %777 = vmatprep.subr.mxu0 0.0
    %778 = vmatpush1.msra.mxu0 0.0
    %779 = vmatprep.subr.mxu0 0.0
    %780 = vmatpush1.msra.mxu0 0.0
    %781 = vmatprep.subr.mxu0 0.0
    %782 = vmatpush1.msra.mxu0 0.0
    %783 = vmatprep.subr.mxu0 0.0
    %784 = vmatpush1.msra.mxu0 0.0
    %785 = vmatprep.subr.mxu0 0.0
    %786 = vmatpush1.msra.mxu0 0.0
    %787 = vmatprep.subr.mxu0 0.0
    %788 = vmatpush1.msra.mxu0 0.0
    %789 = vmatprep.subr.mxu0 0.0
    %790 = vmatpush1.msra.mxu0 0.0
    %791 = vmatprep.subr.mxu0 0.0
    %792 = vmatpush1.msra.mxu0 0.0
    %793 = vmatprep.subr.mxu0 0.0
    %794 = vmatpush1.msra.mxu0 0.0
    %795 = vmatprep.subr.mxu0 0.0
    %796 = vmatpush1.msra.mxu0 0.0
    %797 = vmatprep.subr.mxu0 0.0
    %798 = vmatpush1.msra.mxu0 0.0
    %799 = vmatprep.subr.mxu0 0.0
    %800 = vmatpush1.msra.mxu0 0.0
    %801 = vmatprep.subr.mxu0 0.0
    %802 = vmatpush1.msra.mxu0 0.0
    %803 = vmatprep.subr.mxu0 0.0
    %804 = vmatpush1.msra.mxu0 0.0
    %805 = vmatprep.subr.mxu0 0.0
    %806 = vmatpush1.msra.mxu0 0.0
    %807 = vmatprep.subr.mxu0 0.0
    %808 = vmatpush1.msra.mxu0 0.0
    %809 = vmatprep.subr.mxu0 0.0
    %810 = vmatpush1.msra.mxu0 0.0
    %811 = vmatprep.subr.mxu0 0.0
    %812 = vmatpush1.msra.mxu0 0.0
    %813 = vmatprep.mubr.f32.mxu0 0.0
    %814 = vmatmul.mubr.f32.gmra.mrb[0].mxu0 %v747
    %v815 = vpop.f32.mrb[0].mxu0
    %v816 = vadd.f32 %v358, %v815
    %v817 = vpop.f32.mrb[0].mxu0
    %818 = vdwg.mxu0
    %820 = vrot.lane.b32.xlu0 %v643, 96
    %v821 = vpop.permute.xlu0 %820
    %v822 = vsel %vm56, %v821, 0
    %824 = vmatprep.subr.mxu0 0.0
    %825 = vmatpush1.msra.mxu0 %v339
    %826 = vmatprep.subr.mxu0 0.0
    %827 = vmatpush1.msra.mxu0 %v340
    %828 = vmatprep.subr.mxu0 0.0
    %829 = vmatpush1.msra.mxu0 0.0
    %830 = vmatprep.subr.mxu0 0.0
    %831 = vmatpush1.msra.mxu0 0.0
    %832 = vmatprep.subr.mxu0 0.0
    %833 = vmatpush1.msra.mxu0 0.0
    %834 = vmatprep.subr.mxu0 0.0
    %835 = vmatpush1.msra.mxu0 0.0
    %836 = vmatprep.subr.mxu0 0.0
    %837 = vmatpush1.msra.mxu0 0.0
    %838 = vmatprep.subr.mxu0 0.0
    %839 = vmatpush1.msra.mxu0 0.0
    %840 = vmatprep.subr.mxu0 0.0
    %841 = vmatpush1.msra.mxu0 0.0
    %842 = vmatprep.subr.mxu0 0.0
    %843 = vmatpush1.msra.mxu0 0.0
    %844 = vmatprep.subr.mxu0 0.0
    %845 = vmatpush1.msra.mxu0 0.0
    %846 = vmatprep.subr.mxu0 0.0
    %847 = vmatpush1.msra.mxu0 0.0
    %848 = vmatprep.subr.mxu0 0.0
    %849 = vmatpush1.msra.mxu0 0.0
    %850 = vmatprep.subr.mxu0 0.0
    %851 = vmatpush1.msra.mxu0 0.0
    %852 = vmatprep.subr.mxu0 0.0
    %853 = vmatpush1.msra.mxu0 0.0
    %854 = vmatprep.subr.mxu0 0.0
    %855 = vmatpush1.msra.mxu0 0.0
    %856 = vmatprep.subr.mxu0 0.0
    %857 = vmatpush1.msra.mxu0 0.0
    %858 = vmatprep.subr.mxu0 0.0
    %859 = vmatpush1.msra.mxu0 0.0
    %860 = vmatprep.subr.mxu0 0.0
    %861 = vmatpush1.msra.mxu0 0.0
    %862 = vmatprep.subr.mxu0 0.0
    %863 = vmatpush1.msra.mxu0 0.0
    %864 = vmatprep.subr.mxu0 0.0
    %865 = vmatpush1.msra.mxu0 0.0
    %866 = vmatprep.subr.mxu0 0.0
    %867 = vmatpush1.msra.mxu0 0.0
    %868 = vmatprep.subr.mxu0 0.0
    %869 = vmatpush1.msra.mxu0 0.0
    %870 = vmatprep.subr.mxu0 0.0
    %871 = vmatpush1.msra.mxu0 0.0
    %872 = vmatprep.subr.mxu0 0.0
    %873 = vmatpush1.msra.mxu0 0.0
    %874 = vmatprep.subr.mxu0 0.0
    %875 = vmatpush1.msra.mxu0 0.0
    %876 = vmatprep.subr.mxu0 0.0
    %877 = vmatpush1.msra.mxu0 0.0
    %878 = vmatprep.subr.mxu0 0.0
    %879 = vmatpush1.msra.mxu0 0.0
    %880 = vmatprep.subr.mxu0 0.0
    %881 = vmatpush1.msra.mxu0 0.0
    %882 = vmatprep.subr.mxu0 0.0
    %883 = vmatpush1.msra.mxu0 0.0
    %884 = vmatprep.subr.mxu0 0.0
    %885 = vmatpush1.msra.mxu0 0.0
    %886 = vmatprep.subr.mxu0 0.0
    %887 = vmatpush1.msra.mxu0 0.0
    %888 = vmatprep.mubr.f32.mxu0 0.0
    %889 = vmatmul.mubr.f32.gmra.mrb[0].mxu0 %v822
    %v890 = vpop.f32.mrb[0].mxu0
    %v891 = vadd.f32 0.0, %v890
    %v892 = vpop.f32.mrb[0].mxu0
    %893 = vdwg.mxu0
    %v894 = vadd.f32 %v816, %v891
    %v895 = vxor.u32 %v894, 2147483648
    %v896 = vmul.f32 %v895, 1.442695
    %v897 = vpow.pop %v896
    %v898 = vadd.f32 %v897, 1.0
    %v899 = vrcp.pop %v898
    %v900 = vmul.f32 1.0, %v899
    %v901 = vadd.f32 %v891, %v619
    %903 = vrot.lane.b32.xlu0 %v901, 96
    %v904 = vpop.permute.xlu0 %903
    %v906 = vmul.f32 %v900, %v904
    %908 = vrot.lane.b32.xlu0 %v906, 32
    %v909 = vpop.permute.xlu0 %908
    %v911 = vadd.f32 %v816, %v909
    %v912 = vtanh.pop %v911
    %v913 = vsub.f32 %v643, %v912
    %915 = vrot.lane.b32.xlu0 %v913, 112
    %v916 = vpop.permute.xlu0 %915
    %v918 = vmul.f32 %v900, %v916
    %920 = vrot.lane.b32.xlu0 %v918, 16
    %v921 = vpop.permute.xlu0 %920
    %v923 = vadd.f32 %v912, %v921
    %924 = vmatprep.subr.mxu0 0.0
    %925 = vmatpush1.msra.mxu0 %v335
    %926 = vmatprep.subr.mxu0 0.0
    %927 = vmatpush1.msra.mxu0 %v336
    %928 = vmatprep.subr.mxu0 0.0
    %929 = vmatpush1.msra.mxu0 0.0
    %930 = vmatprep.subr.mxu0 0.0
    %931 = vmatpush1.msra.mxu0 0.0
    %932 = vmatprep.subr.mxu0 0.0
    %933 = vmatpush1.msra.mxu0 0.0
    %934 = vmatprep.subr.mxu0 0.0
    %935 = vmatpush1.msra.mxu0 0.0
    %936 = vmatprep.subr.mxu0 0.0
    %937 = vmatpush1.msra.mxu0 0.0
    %938 = vmatprep.subr.mxu0 0.0
    %939 = vmatpush1.msra.mxu0 0.0
    %940 = vmatprep.subr.mxu0 0.0
    %941 = vmatpush1.msra.mxu0 0.0
    %942 = vmatprep.subr.mxu0 0.0
    %943 = vmatpush1.msra.mxu0 0.0
    %944 = vmatprep.subr.mxu0 0.0
    %945 = vmatpush1.msra.mxu0 0.0
    %946 = vmatprep.subr.mxu0 0.0
    %947 = vmatpush1.msra.mxu0 0.0
    %948 = vmatprep.subr.mxu0 0.0
    %949 = vmatpush1.msra.mxu0 0.0
    %950 = vmatprep.subr.mxu0 0.0
    %951 = vmatpush1.msra.mxu0 0.0
    %952 = vmatprep.subr.mxu0 0.0
    %953 = vmatpush1.msra.mxu0 0.0
    %954 = vmatprep.subr.mxu0 0.0
    %955 = vmatpush1.msra.mxu0 0.0
    %956 = vmatprep.subr.mxu0 0.0
    %957 = vmatpush1.msra.mxu0 0.0
    %958 = vmatprep.subr.mxu0 0.0
    %959 = vmatpush1.msra.mxu0 0.0
    %960 = vmatprep.subr.mxu0 0.0
    %961 = vmatpush1.msra.mxu0 0.0
    %962 = vmatprep.subr.mxu0 0.0
    %963 = vmatpush1.msra.mxu0 0.0
    %964 = vmatprep.subr.mxu0 0.0
    %965 = vmatpush1.msra.mxu0 0.0
    %966 = vmatprep.subr.mxu0 0.0
    %967 = vmatpush1.msra.mxu0 0.0
    %968 = vmatprep.subr.mxu0 0.0
    %969 = vmatpush1.msra.mxu0 0.0
    %970 = vmatprep.subr.mxu0 0.0
    %971 = vmatpush1.msra.mxu0 0.0
    %972 = vmatprep.subr.mxu0 0.0
    %973 = vmatpush1.msra.mxu0 0.0
    %974 = vmatprep.subr.mxu0 0.0
    %975 = vmatpush1.msra.mxu0 0.0
    %976 = vmatprep.subr.mxu0 0.0
    %977 = vmatpush1.msra.mxu0 0.0
    %978 = vmatprep.subr.mxu0 0.0
    %979 = vmatpush1.msra.mxu0 0.0
    %980 = vmatprep.subr.mxu0 0.0
    %981 = vmatpush1.msra.mxu0 0.0
    %982 = vmatprep.subr.mxu0 0.0
    %983 = vmatpush1.msra.mxu0 0.0
    %984 = vmatprep.subr.mxu0 0.0
    %985 = vmatpush1.msra.mxu0 0.0
    %986 = vmatprep.subr.mxu0 0.0
    %987 = vmatpush1.msra.mxu0 0.0
    %988 = vmatprep.mubr.f32.mxu0 0.0
    %989 = vmatmul.mubr.f32.gmra.mrb[0].mxu0 %v747
    %v990 = vpop.f32.mrb[0].mxu0
    %v991 = vadd.f32 0.0, %v990
    %v992 = vpop.f32.mrb[0].mxu0
    %993 = vdwg.mxu0
    %v994 = vadd.f32 %v307, %v991
    %v995 = vxor.u32 %v994, 2147483648
    %v996 = vmul.f32 %v995, 1.442695
    %v997 = vpow.pop %v996
    %v998 = vadd.f32 %v997, 1.0
    %v999 = vrcp.pop %v998
    %v1000 = vmul.f32 1.0, %v999
    %v1001 = vadd.f32 %v991, %v441
    %1003 = vrot.lane.b32.xlu0 %v1001, 96
    %v1004 = vpop.permute.xlu0 %1003
    %v1006 = vmul.f32 %v1000, %v1004
    %1008 = vrot.lane.b32.xlu0 %v1006, 32
    %v1009 = vpop.permute.xlu0 %1008
    %v1011 = vadd.f32 %v307, %v1009
    %v1012 = vtanh.pop %v1011
    %v1013 = vsub.f32 %v743, %v1012
    %1015 = vrot.lane.b32.xlu0 %v1013, 112
    %v1016 = vpop.permute.xlu0 %1015
    %v1018 = vmul.f32 %v1000, %v1016
    %1020 = vrot.lane.b32.xlu0 %v1018, 16
    %v1021 = vpop.permute.xlu0 %1020
    %v1023 = vadd.f32 %v1012, %v1021
    %1025 = vrot.lane.b32.xlu0 %v1023, 96
    %v1026 = vpop.permute.xlu0 %1025
    %v1027 = vsel %vm56, %v1026, 0
    %1029 = vmatprep.subr.mxu0 0.0
    %1030 = vmatpush1.msra.mxu0 %v337
    %1031 = vmatprep.subr.mxu0 0.0
    %1032 = vmatpush1.msra.mxu0 %v338
    %1033 = vmatprep.subr.mxu0 0.0
    %1034 = vmatpush1.msra.mxu0 0.0
    %1035 = vmatprep.subr.mxu0 0.0
    %1036 = vmatpush1.msra.mxu0 0.0
    %1037 = vmatprep.subr.mxu0 0.0
    %1038 = vmatpush1.msra.mxu0 0.0
    %1039 = vmatprep.subr.mxu0 0.0
    %1040 = vmatpush1.msra.mxu0 0.0
    %1041 = vmatprep.subr.mxu0 0.0
    %1042 = vmatpush1.msra.mxu0 0.0
    %1043 = vmatprep.subr.mxu0 0.0
    %1044 = vmatpush1.msra.mxu0 0.0
    %1045 = vmatprep.subr.mxu0 0.0
    %1046 = vmatpush1.msra.mxu0 0.0
    %1047 = vmatprep.subr.mxu0 0.0
    %1048 = vmatpush1.msra.mxu0 0.0
    %1049 = vmatprep.subr.mxu0 0.0
    %1050 = vmatpush1.msra.mxu0 0.0
    %1051 = vmatprep.subr.mxu0 0.0
    %1052 = vmatpush1.msra.mxu0 0.0
    %1053 = vmatprep.subr.mxu0 0.0
    %1054 = vmatpush1.msra.mxu0 0.0
    %1055 = vmatprep.subr.mxu0 0.0
    %1056 = vmatpush1.msra.mxu0 0.0
    %1057 = vmatprep.subr.mxu0 0.0
    %1058 = vmatpush1.msra.mxu0 0.0
    %1059 = vmatprep.subr.mxu0 0.0
    %1060 = vmatpush1.msra.mxu0 0.0
    %1061 = vmatprep.subr.mxu0 0.0
    %1062 = vmatpush1.msra.mxu0 0.0
    %1063 = vmatprep.subr.mxu0 0.0
    %1064 = vmatpush1.msra.mxu0 0.0
    %1065 = vmatprep.subr.mxu0 0.0
    %1066 = vmatpush1.msra.mxu0 0.0
    %1067 = vmatprep.subr.mxu0 0.0
    %1068 = vmatpush1.msra.mxu0 0.0
    %1069 = vmatprep.subr.mxu0 0.0
    %1070 = vmatpush1.msra.mxu0 0.0
    %1071 = vmatprep.subr.mxu0 0.0
    %1072 = vmatpush1.msra.mxu0 0.0
    %1073 = vmatprep.subr.mxu0 0.0
    %1074 = vmatpush1.msra.mxu0 0.0
    %1075 = vmatprep.subr.mxu0 0.0
    %1076 = vmatpush1.msra.mxu0 0.0
    %1077 = vmatprep.subr.mxu0 0.0
    %1078 = vmatpush1.msra.mxu0 0.0
    %1079 = vmatprep.subr.mxu0 0.0
    %1080 = vmatpush1.msra.mxu0 0.0
    %1081 = vmatprep.subr.mxu0 0.0
    %1082 = vmatpush1.msra.mxu0 0.0
    %1083 = vmatprep.subr.mxu0 0.0
    %1084 = vmatpush1.msra.mxu0 0.0
    %1085 = vmatprep.subr.mxu0 0.0
    %1086 = vmatpush1.msra.mxu0 0.0
    %1087 = vmatprep.subr.mxu0 0.0
    %1088 = vmatpush1.msra.mxu0 0.0
    %1089 = vmatprep.subr.mxu0 0.0
    %1090 = vmatpush1.msra.mxu0 0.0
    %1091 = vmatprep.subr.mxu0 0.0
    %1092 = vmatpush1.msra.mxu0 0.0
    %1093 = vmatprep.mubr.f32.mxu0 0.0
    %1094 = vmatmul.mubr.f32.gmra.mrb[0].mxu0 %v1027
    %v1095 = vpop.f32.mrb[0].mxu0
    %v1096 = vadd.f32 %v358, %v1095
    %v1097 = vpop.f32.mrb[0].mxu0
    %1098 = vdwg.mxu0
    %1100 = vrot.lane.b32.xlu0 %v923, 96
    %v1101 = vpop.permute.xlu0 %1100
    %v1102 = vsel %vm56, %v1101, 0
    %1104 = vmatprep.subr.mxu0 0.0
    %1105 = vmatpush1.msra.mxu0 %v339
    %1106 = vmatprep.subr.mxu0 0.0
    %1107 = vmatpush1.msra.mxu0 %v340
    %1108 = vmatprep.subr.mxu0 0.0
    %1109 = vmatpush1.msra.mxu0 0.0
    %1110 = vmatprep.subr.mxu0 0.0
    %1111 = vmatpush1.msra.mxu0 0.0
    %1112 = vmatprep.subr.mxu0 0.0
    %1113 = vmatpush1.msra.mxu0 0.0
    %1114 = vmatprep.subr.mxu0 0.0
    %1115 = vmatpush1.msra.mxu0 0.0
    %1116 = vmatprep.subr.mxu0 0.0
    %1117 = vmatpush1.msra.mxu0 0.0
    %1118 = vmatprep.subr.mxu0 0.0
    %1119 = vmatpush1.msra.mxu0 0.0
    %1120 = vmatprep.subr.mxu0 0.0
    %1121 = vmatpush1.msra.mxu0 0.0
    %1122 = vmatprep.subr.mxu0 0.0
    %1123 = vmatpush1.msra.mxu0 0.0
    %1124 = vmatprep.subr.mxu0 0.0
    %1125 = vmatpush1.msra.mxu0 0.0
    %1126 = vmatprep.subr.mxu0 0.0
    %1127 = vmatpush1.msra.mxu0 0.0
    %1128 = vmatprep.subr.mxu0 0.0
    %1129 = vmatpush1.msra.mxu0 0.0
    %1130 = vmatprep.subr.mxu0 0.0
    %1131 = vmatpush1.msra.mxu0 0.0
    %1132 = vmatprep.subr.mxu0 0.0
    %1133 = vmatpush1.msra.mxu0 0.0
    %1134 = vmatprep.subr.mxu0 0.0
    %1135 = vmatpush1.msra.mxu0 0.0
    %1136 = vmatprep.subr.mxu0 0.0
    %1137 = vmatpush1.msra.mxu0 0.0
    %1138 = vmatprep.subr.mxu0 0.0
    %1139 = vmatpush1.msra.mxu0 0.0
    %1140 = vmatprep.subr.mxu0 0.0
    %1141 = vmatpush1.msra.mxu0 0.0
    %1142 = vmatprep.subr.mxu0 0.0
    %1143 = vmatpush1.msra.mxu0 0.0
    %1144 = vmatprep.subr.mxu0 0.0
    %1145 = vmatpush1.msra.mxu0 0.0
    %1146 = vmatprep.subr.mxu0 0.0
    %1147 = vmatpush1.msra.mxu0 0.0
    %1148 = vmatprep.subr.mxu0 0.0
    %1149 = vmatpush1.msra.mxu0 0.0
    %1150 = vmatprep.subr.mxu0 0.0
    %1151 = vmatpush1.msra.mxu0 0.0
    %1152 = vmatprep.subr.mxu0 0.0
    %1153 = vmatpush1.msra.mxu0 0.0
    %1154 = vmatprep.subr.mxu0 0.0
    %1155 = vmatpush1.msra.mxu0 0.0
    %1156 = vmatprep.subr.mxu0 0.0
    %1157 = vmatpush1.msra.mxu0 0.0
    %1158 = vmatprep.subr.mxu0 0.0
    %1159 = vmatpush1.msra.mxu0 0.0
    %1160 = vmatprep.subr.mxu0 0.0
    %1161 = vmatpush1.msra.mxu0 0.0
    %1162 = vmatprep.subr.mxu0 0.0
    %1163 = vmatpush1.msra.mxu0 0.0
    %1164 = vmatprep.subr.mxu0 0.0
    %1165 = vmatpush1.msra.mxu0 0.0
    %1166 = vmatprep.subr.mxu0 0.0
    %1167 = vmatpush1.msra.mxu0 0.0
    %1168 = vmatprep.mubr.f32.mxu0 0.0
    %1169 = vmatmul.mubr.f32.gmra.mrb[0].mxu0 %v1102
    %v1170 = vpop.f32.mrb[0].mxu0
    %v1171 = vadd.f32 0.0, %v1170
    %v1172 = vpop.f32.mrb[0].mxu0
    %1173 = vdwg.mxu0
    %v1174 = vadd.f32 %v1096, %v1171
    %v1175 = vxor.u32 %v1174, 2147483648
    %v1176 = vmul.f32 %v1175, 1.442695
    %v1177 = vpow.pop %v1176
    %v1178 = vadd.f32 %v1177, 1.0
    %v1179 = vrcp.pop %v1178
    %v1180 = vmul.f32 1.0, %v1179
    %v1181 = vadd.f32 %v1171, %v619
    %1183 = vrot.lane.b32.xlu0 %v1181, 96
    %v1184 = vpop.permute.xlu0 %1183
    %v1186 = vmul.f32 %v1180, %v1184
    %1188 = vrot.lane.b32.xlu0 %v1186, 32
    %v1189 = vpop.permute.xlu0 %1188
    %v1191 = vadd.f32 %v1096, %v1189
    %v1192 = vtanh.pop %v1191
    %v1193 = vsub.f32 %v923, %v1192
    %1195 = vrot.lane.b32.xlu0 %v1193, 112
    %v1196 = vpop.permute.xlu0 %1195
    %v1198 = vmul.f32 %v1180, %v1196
    %1200 = vrot.lane.b32.xlu0 %v1198, 16
    %v1201 = vpop.permute.xlu0 %1200
    %v1203 = vadd.f32 %v1192, %v1201
    %1204 = vmatprep.subr.mxu0 0.0
    %1205 = vmatpush1.msra.mxu0 %v335
    %1206 = vmatprep.subr.mxu0 0.0
    %1207 = vmatpush1.msra.mxu0 %v336
    %1208 = vmatprep.subr.mxu0 0.0
    %1209 = vmatpush1.msra.mxu0 0.0
    %1210 = vmatprep.subr.mxu0 0.0
    %1211 = vmatpush1.msra.mxu0 0.0
    %1212 = vmatprep.subr.mxu0 0.0
    %1213 = vmatpush1.msra.mxu0 0.0
    %1214 = vmatprep.subr.mxu0 0.0
    %1215 = vmatpush1.msra.mxu0 0.0
    %1216 = vmatprep.subr.mxu0 0.0
    %1217 = vmatpush1.msra.mxu0 0.0
    %1218 = vmatprep.subr.mxu0 0.0
    %1219 = vmatpush1.msra.mxu0 0.0
    %1220 = vmatprep.subr.mxu0 0.0
    %1221 = vmatpush1.msra.mxu0 0.0
    %1222 = vmatprep.subr.mxu0 0.0
    %1223 = vmatpush1.msra.mxu0 0.0
    %1224 = vmatprep.subr.mxu0 0.0
    %1225 = vmatpush1.msra.mxu0 0.0
    %1226 = vmatprep.subr.mxu0 0.0
    %1227 = vmatpush1.msra.mxu0 0.0
    %1228 = vmatprep.subr.mxu0 0.0
    %1229 = vmatpush1.msra.mxu0 0.0
    %1230 = vmatprep.subr.mxu0 0.0
    %1231 = vmatpush1.msra.mxu0 0.0
    %1232 = vmatprep.subr.mxu0 0.0
    %1233 = vmatpush1.msra.mxu0 0.0
    %1234 = vmatprep.subr.mxu0 0.0
    %1235 = vmatpush1.msra.mxu0 0.0
    %1236 = vmatprep.subr.mxu0 0.0
    %1237 = vmatpush1.msra.mxu0 0.0
    %1238 = vmatprep.subr.mxu0 0.0
    %1239 = vmatpush1.msra.mxu0 0.0
    %1240 = vmatprep.subr.mxu0 0.0
    %1241 = vmatpush1.msra.mxu0 0.0
    %1242 = vmatprep.subr.mxu0 0.0
    %1243 = vmatpush1.msra.mxu0 0.0
    %1244 = vmatprep.subr.mxu0 0.0
    %1245 = vmatpush1.msra.mxu0 0.0
    %1246 = vmatprep.subr.mxu0 0.0
    %1247 = vmatpush1.msra.mxu0 0.0
    %1248 = vmatprep.subr.mxu0 0.0
    %1249 = vmatpush1.msra.mxu0 0.0
    %1250 = vmatprep.subr.mxu0 0.0
    %1251 = vmatpush1.msra.mxu0 0.0
    %1252 = vmatprep.subr.mxu0 0.0
    %1253 = vmatpush1.msra.mxu0 0.0
    %1254 = vmatprep.subr.mxu0 0.0
    %1255 = vmatpush1.msra.mxu0 0.0
    %1256 = vmatprep.subr.mxu0 0.0
    %1257 = vmatpush1.msra.mxu0 0.0
    %1258 = vmatprep.subr.mxu0 0.0
    %1259 = vmatpush1.msra.mxu0 0.0
    %1260 = vmatprep.subr.mxu0 0.0
    %1261 = vmatpush1.msra.mxu0 0.0
    %1262 = vmatprep.subr.mxu0 0.0
    %1263 = vmatpush1.msra.mxu0 0.0
    %1264 = vmatprep.subr.mxu0 0.0
    %1265 = vmatpush1.msra.mxu0 0.0
    %1266 = vmatprep.subr.mxu0 0.0
    %1267 = vmatpush1.msra.mxu0 0.0
    %1268 = vmatprep.mubr.f32.mxu0 0.0
    %1269 = vmatmul.mubr.f32.gmra.mrb[0].mxu0 %v1027
    %v1270 = vpop.f32.mrb[0].mxu0
    %v1271 = vadd.f32 0.0, %v1270
    %v1272 = vpop.f32.mrb[0].mxu0
    %1273 = vdwg.mxu0
    %v1274 = vadd.f32 %v312, %v1271
    %v1275 = vxor.u32 %v1274, 2147483648
    %v1276 = vmul.f32 %v1275, 1.442695
    %v1277 = vpow.pop %v1276
    %v1278 = vadd.f32 %v1277, 1.0
    %v1279 = vrcp.pop %v1278
    %v1280 = vmul.f32 1.0, %v1279
    %v1281 = vadd.f32 %v1271, %v441
    %1283 = vrot.lane.b32.xlu0 %v1281, 96
    %v1284 = vpop.permute.xlu0 %1283
    %v1286 = vmul.f32 %v1280, %v1284
    %1288 = vrot.lane.b32.xlu0 %v1286, 32
    %v1289 = vpop.permute.xlu0 %1288
    %v1291 = vadd.f32 %v312, %v1289
    %v1292 = vtanh.pop %v1291
    %v1293 = vsub.f32 %v1023, %v1292
    %1295 = vrot.lane.b32.xlu0 %v1293, 112
    %v1296 = vpop.permute.xlu0 %1295
    %v1298 = vmul.f32 %v1280, %v1296
    %1300 = vrot.lane.b32.xlu0 %v1298, 16
    %v1301 = vpop.permute.xlu0 %1300
    %v1303 = vadd.f32 %v1292, %v1301
    %1305 = vrot.lane.b32.xlu0 %v1303, 96
    %v1306 = vpop.permute.xlu0 %1305
    %v1307 = vsel %vm56, %v1306, 0
    %1309 = vmatprep.subr.mxu0 0.0
    %1310 = vmatpush1.msra.mxu0 %v337
    %1311 = vmatprep.subr.mxu0 0.0
    %1312 = vmatpush1.msra.mxu0 %v338
    %1313 = vmatprep.subr.mxu0 0.0
    %1314 = vmatpush1.msra.mxu0 0.0
    %1315 = vmatprep.subr.mxu0 0.0
    %1316 = vmatpush1.msra.mxu0 0.0
    %1317 = vmatprep.subr.mxu0 0.0
    %1318 = vmatpush1.msra.mxu0 0.0
    %1319 = vmatprep.subr.mxu0 0.0
    %1320 = vmatpush1.msra.mxu0 0.0
    %1321 = vmatprep.subr.mxu0 0.0
    %1322 = vmatpush1.msra.mxu0 0.0
    %1323 = vmatprep.subr.mxu0 0.0
    %1324 = vmatpush1.msra.mxu0 0.0
    %1325 = vmatprep.subr.mxu0 0.0
    %1326 = vmatpush1.msra.mxu0 0.0
    %1327 = vmatprep.subr.mxu0 0.0
    %1328 = vmatpush1.msra.mxu0 0.0
    %1329 = vmatprep.subr.mxu0 0.0
    %1330 = vmatpush1.msra.mxu0 0.0
    %1331 = vmatprep.subr.mxu0 0.0
    %1332 = vmatpush1.msra.mxu0 0.0
    %1333 = vmatprep.subr.mxu0 0.0
    %1334 = vmatpush1.msra.mxu0 0.0
    %1335 = vmatprep.subr.mxu0 0.0
    %1336 = vmatpush1.msra.mxu0 0.0
    %1337 = vmatprep.subr.mxu0 0.0
    %1338 = vmatpush1.msra.mxu0 0.0
    %1339 = vmatprep.subr.mxu0 0.0
    %1340 = vmatpush1.msra.mxu0 0.0
    %1341 = vmatprep.subr.mxu0 0.0
    %1342 = vmatpush1.msra.mxu0 0.0
    %1343 = vmatprep.subr.mxu0 0.0
    %1344 = vmatpush1.msra.mxu0 0.0
    %1345 = vmatprep.subr.mxu0 0.0
    %1346 = vmatpush1.msra.mxu0 0.0
    %1347 = vmatprep.subr.mxu0 0.0
    %1348 = vmatpush1.msra.mxu0 0.0
    %1349 = vmatprep.subr.mxu0 0.0
    %1350 = vmatpush1.msra.mxu0 0.0
    %1351 = vmatprep.subr.mxu0 0.0
    %1352 = vmatpush1.msra.mxu0 0.0
    %1353 = vmatprep.subr.mxu0 0.0
    %1354 = vmatpush1.msra.mxu0 0.0
    %1355 = vmatprep.subr.mxu0 0.0
    %1356 = vmatpush1.msra.mxu0 0.0
    %1357 = vmatprep.subr.mxu0 0.0
    %1358 = vmatpush1.msra.mxu0 0.0
    %1359 = vmatprep.subr.mxu0 0.0
    %1360 = vmatpush1.msra.mxu0 0.0
    %1361 = vmatprep.subr.mxu0 0.0
    %1362 = vmatpush1.msra.mxu0 0.0
    %1363 = vmatprep.subr.mxu0 0.0
    %1364 = vmatpush1.msra.mxu0 0.0
    %1365 = vmatprep.subr.mxu0 0.0
    %1366 = vmatpush1.msra.mxu0 0.0
    %1367 = vmatprep.subr.mxu0 0.0
    %1368 = vmatpush1.msra.mxu0 0.0
    %1369 = vmatprep.subr.mxu0 0.0
    %1370 = vmatpush1.msra.mxu0 0.0
    %1371 = vmatprep.subr.mxu0 0.0
    %1372 = vmatpush1.msra.mxu0 0.0
    %1373 = vmatprep.mubr.f32.mxu0 0.0
    %1374 = vmatmul.mubr.f32.gmra.mrb[0].mxu0 %v1307
    %v1375 = vpop.f32.mrb[0].mxu0
    %v1376 = vadd.f32 %v358, %v1375
    %v1377 = vpop.f32.mrb[0].mxu0
    %1378 = vdwg.mxu0
    %1380 = vrot.lane.b32.xlu0 %v1203, 96
    %v1381 = vpop.permute.xlu0 %1380
    %v1382 = vsel %vm56, %v1381, 0
    %1384 = vmatprep.subr.mxu0 0.0
    %1385 = vmatpush1.msra.mxu0 %v339
    %1386 = vmatprep.subr.mxu0 0.0
    %1387 = vmatpush1.msra.mxu0 %v340
    %1388 = vmatprep.subr.mxu0 0.0
    %1389 = vmatpush1.msra.mxu0 0.0
    %1390 = vmatprep.subr.mxu0 0.0
    %1391 = vmatpush1.msra.mxu0 0.0
    %1392 = vmatprep.subr.mxu0 0.0
    %1393 = vmatpush1.msra.mxu0 0.0
    %1394 = vmatprep.subr.mxu0 0.0
    %1395 = vmatpush1.msra.mxu0 0.0
    %1396 = vmatprep.subr.mxu0 0.0
    %1397 = vmatpush1.msra.mxu0 0.0
    %1398 = vmatprep.subr.mxu0 0.0
    %1399 = vmatpush1.msra.mxu0 0.0
    %1400 = vmatprep.subr.mxu0 0.0
    %1401 = vmatpush1.msra.mxu0 0.0
    %1402 = vmatprep.subr.mxu0 0.0
    %1403 = vmatpush1.msra.mxu0 0.0
    %1404 = vmatprep.subr.mxu0 0.0
    %1405 = vmatpush1.msra.mxu0 0.0
    %1406 = vmatprep.subr.mxu0 0.0
    %1407 = vmatpush1.msra.mxu0 0.0
    %1408 = vmatprep.subr.mxu0 0.0
    %1409 = vmatpush1.msra.mxu0 0.0
    %1410 = vmatprep.subr.mxu0 0.0
    %1411 = vmatpush1.msra.mxu0 0.0
    %1412 = vmatprep.subr.mxu0 0.0
    %1413 = vmatpush1.msra.mxu0 0.0
    %1414 = vmatprep.subr.mxu0 0.0
    %1415 = vmatpush1.msra.mxu0 0.0
    %1416 = vmatprep.subr.mxu0 0.0
    %1417 = vmatpush1.msra.mxu0 0.0
    %1418 = vmatprep.subr.mxu0 0.0
    %1419 = vmatpush1.msra.mxu0 0.0
    %1420 = vmatprep.subr.mxu0 0.0
    %1421 = vmatpush1.msra.mxu0 0.0
    %1422 = vmatprep.subr.mxu0 0.0
    %1423 = vmatpush1.msra.mxu0 0.0
    %1424 = vmatprep.subr.mxu0 0.0
    %1425 = vmatpush1.msra.mxu0 0.0
    %1426 = vmatprep.subr.mxu0 0.0
    %1427 = vmatpush1.msra.mxu0 0.0
    %1428 = vmatprep.subr.mxu0 0.0
    %1429 = vmatpush1.msra.mxu0 0.0
    %1430 = vmatprep.subr.mxu0 0.0
    %1431 = vmatpush1.msra.mxu0 0.0
    %1432 = vmatprep.subr.mxu0 0.0
    %1433 = vmatpush1.msra.mxu0 0.0
    %1434 = vmatprep.subr.mxu0 0.0
    %1435 = vmatpush1.msra.mxu0 0.0
    %1436 = vmatprep.subr.mxu0 0.0
    %1437 = vmatpush1.msra.mxu0 0.0
    %1438 = vmatprep.subr.mxu0 0.0
    %1439 = vmatpush1.msra.mxu0 0.0
    %1440 = vmatprep.subr.mxu0 0.0
    %1441 = vmatpush1.msra.mxu0 0.0
    %1442 = vmatprep.subr.mxu0 0.0
    %1443 = vmatpush1.msra.mxu0 0.0
    %1444 = vmatprep.subr.mxu0 0.0
    %1445 = vmatpush1.msra.mxu0 0.0
    %1446 = vmatprep.subr.mxu0 0.0
    %1447 = vmatpush1.msra.mxu0 0.0
    %1448 = vmatprep.mubr.f32.mxu0 0.0
    %1449 = vmatmul.mubr.f32.gmra.mrb[0].mxu0 %v1382
    %v1450 = vpop.f32.mrb[0].mxu0
    %v1451 = vadd.f32 0.0, %v1450
    %v1452 = vpop.f32.mrb[0].mxu0
    %1453 = vdwg.mxu0
    %v1454 = vadd.f32 %v1376, %v1451
    %v1455 = vxor.u32 %v1454, 2147483648
    %v1456 = vmul.f32 %v1455, 1.442695
    %v1457 = vpow.pop %v1456
    %v1458 = vadd.f32 %v1457, 1.0
    %v1459 = vrcp.pop %v1458
    %v1460 = vmul.f32 1.0, %v1459
    %v1461 = vadd.f32 %v1451, %v619
    %1463 = vrot.lane.b32.xlu0 %v1461, 96
    %v1464 = vpop.permute.xlu0 %1463
    %v1466 = vmul.f32 %v1460, %v1464
    %1468 = vrot.lane.b32.xlu0 %v1466, 32
    %v1469 = vpop.permute.xlu0 %1468
    %v1471 = vadd.f32 %v1376, %v1469
    %v1472 = vtanh.pop %v1471
    %v1473 = vsub.f32 %v1203, %v1472
    %1475 = vrot.lane.b32.xlu0 %v1473, 112
    %v1476 = vpop.permute.xlu0 %1475
    %v1478 = vmul.f32 %v1460, %v1476
    %1480 = vrot.lane.b32.xlu0 %v1478, 16
    %v1481 = vpop.permute.xlu0 %1480
    %v1483 = vadd.f32 %v1472, %v1481
    %1484 = vmatprep.subr.mxu0 0.0
    %1485 = vmatpush1.msra.mxu0 %v335
    %1486 = vmatprep.subr.mxu0 0.0
    %1487 = vmatpush1.msra.mxu0 %v336
    %1488 = vmatprep.subr.mxu0 0.0
    %1489 = vmatpush1.msra.mxu0 0.0
    %1490 = vmatprep.subr.mxu0 0.0
    %1491 = vmatpush1.msra.mxu0 0.0
    %1492 = vmatprep.subr.mxu0 0.0
    %1493 = vmatpush1.msra.mxu0 0.0
    %1494 = vmatprep.subr.mxu0 0.0
    %1495 = vmatpush1.msra.mxu0 0.0
    %1496 = vmatprep.subr.mxu0 0.0
    %1497 = vmatpush1.msra.mxu0 0.0
    %1498 = vmatprep.subr.mxu0 0.0
    %1499 = vmatpush1.msra.mxu0 0.0
    %1500 = vmatprep.subr.mxu0 0.0
    %1501 = vmatpush1.msra.mxu0 0.0
    %1502 = vmatprep.subr.mxu0 0.0
    %1503 = vmatpush1.msra.mxu0 0.0
    %1504 = vmatprep.subr.mxu0 0.0
    %1505 = vmatpush1.msra.mxu0 0.0
    %1506 = vmatprep.subr.mxu0 0.0
    %1507 = vmatpush1.msra.mxu0 0.0
    %1508 = vmatprep.subr.mxu0 0.0
    %1509 = vmatpush1.msra.mxu0 0.0
    %1510 = vmatprep.subr.mxu0 0.0
    %1511 = vmatpush1.msra.mxu0 0.0
    %1512 = vmatprep.subr.mxu0 0.0
    %1513 = vmatpush1.msra.mxu0 0.0
    %1514 = vmatprep.subr.mxu0 0.0
    %1515 = vmatpush1.msra.mxu0 0.0
    %1516 = vmatprep.subr.mxu0 0.0
    %1517 = vmatpush1.msra.mxu0 0.0
    %1518 = vmatprep.subr.mxu0 0.0
    %1519 = vmatpush1.msra.mxu0 0.0
    %1520 = vmatprep.subr.mxu0 0.0
    %1521 = vmatpush1.msra.mxu0 0.0
    %1522 = vmatprep.subr.mxu0 0.0
    %1523 = vmatpush1.msra.mxu0 0.0
    %1524 = vmatprep.subr.mxu0 0.0
    %1525 = vmatpush1.msra.mxu0 0.0
    %1526 = vmatprep.subr.mxu0 0.0
    %1527 = vmatpush1.msra.mxu0 0.0
    %1528 = vmatprep.subr.mxu0 0.0
    %1529 = vmatpush1.msra.mxu0 0.0
    %1530 = vmatprep.subr.mxu0 0.0
    %1531 = vmatpush1.msra.mxu0 0.0
    %1532 = vmatprep.subr.mxu0 0.0
    %1533 = vmatpush1.msra.mxu0 0.0
    %1534 = vmatprep.subr.mxu0 0.0
    %1535 = vmatpush1.msra.mxu0 0.0
    %1536 = vmatprep.subr.mxu0 0.0
    %1537 = vmatpush1.msra.mxu0 0.0
    %1538 = vmatprep.subr.mxu0 0.0
    %1539 = vmatpush1.msra.mxu0 0.0
    %1540 = vmatprep.subr.mxu0 0.0
    %1541 = vmatpush1.msra.mxu0 0.0
    %1542 = vmatprep.subr.mxu0 0.0
    %1543 = vmatpush1.msra.mxu0 0.0
    %1544 = vmatprep.subr.mxu0 0.0
    %1545 = vmatpush1.msra.mxu0 0.0
    %1546 = vmatprep.subr.mxu0 0.0
    %1547 = vmatpush1.msra.mxu0 0.0
    %1548 = vmatprep.mubr.f32.mxu0 0.0
    %1549 = vmatmul.mubr.f32.gmra.mrb[0].mxu0 %v1307
    %v1550 = vpop.f32.mrb[0].mxu0
    %v1551 = vadd.f32 0.0, %v1550
    %v1552 = vpop.f32.mrb[0].mxu0
    %1553 = vdwg.mxu0
    %v1554 = vadd.f32 %v317, %v1551
    %v1555 = vxor.u32 %v1554, 2147483648
    %v1556 = vmul.f32 %v1555, 1.442695
    %v1557 = vpow.pop %v1556
    %v1558 = vadd.f32 %v1557, 1.0
    %v1559 = vrcp.pop %v1558
    %v1560 = vmul.f32 1.0, %v1559
    %v1561 = vadd.f32 %v1551, %v441
    %1563 = vrot.lane.b32.xlu0 %v1561, 96
    %v1564 = vpop.permute.xlu0 %1563
    %v1566 = vmul.f32 %v1560, %v1564
    %1568 = vrot.lane.b32.xlu0 %v1566, 32
    %v1569 = vpop.permute.xlu0 %1568
    %v1571 = vadd.f32 %v317, %v1569
    %v1572 = vtanh.pop %v1571
    %v1573 = vsub.f32 %v1303, %v1572
    %1575 = vrot.lane.b32.xlu0 %v1573, 112
    %v1576 = vpop.permute.xlu0 %1575
    %v1578 = vmul.f32 %v1560, %v1576
    %1580 = vrot.lane.b32.xlu0 %v1578, 16
    %v1581 = vpop.permute.xlu0 %1580
    %v1583 = vadd.f32 %v1572, %v1581
    %1585 = vrot.lane.b32.xlu0 %v1583, 96
    %v1586 = vpop.permute.xlu0 %1585
    %v1587 = vsel %vm56, %v1586, 0
    %1589 = vmatprep.subr.mxu0 0.0
    %1590 = vmatpush1.msra.mxu0 %v337
    %1591 = vmatprep.subr.mxu0 0.0
    %1592 = vmatpush1.msra.mxu0 %v338
    %1593 = vmatprep.subr.mxu0 0.0
    %1594 = vmatpush1.msra.mxu0 0.0
    %1595 = vmatprep.subr.mxu0 0.0
    %1596 = vmatpush1.msra.mxu0 0.0
    %1597 = vmatprep.subr.mxu0 0.0
    %1598 = vmatpush1.msra.mxu0 0.0
    %1599 = vmatprep.subr.mxu0 0.0
    %1600 = vmatpush1.msra.mxu0 0.0
    %1601 = vmatprep.subr.mxu0 0.0
    %1602 = vmatpush1.msra.mxu0 0.0
    %1603 = vmatprep.subr.mxu0 0.0
    %1604 = vmatpush1.msra.mxu0 0.0
    %1605 = vmatprep.subr.mxu0 0.0
    %1606 = vmatpush1.msra.mxu0 0.0
    %1607 = vmatprep.subr.mxu0 0.0
    %1608 = vmatpush1.msra.mxu0 0.0
    %1609 = vmatprep.subr.mxu0 0.0
    %1610 = vmatpush1.msra.mxu0 0.0
    %1611 = vmatprep.subr.mxu0 0.0
    %1612 = vmatpush1.msra.mxu0 0.0
    %1613 = vmatprep.subr.mxu0 0.0
    %1614 = vmatpush1.msra.mxu0 0.0
    %1615 = vmatprep.subr.mxu0 0.0
    %1616 = vmatpush1.msra.mxu0 0.0
    %1617 = vmatprep.subr.mxu0 0.0
    %1618 = vmatpush1.msra.mxu0 0.0
    %1619 = vmatprep.subr.mxu0 0.0
    %1620 = vmatpush1.msra.mxu0 0.0
    %1621 = vmatprep.subr.mxu0 0.0
    %1622 = vmatpush1.msra.mxu0 0.0
    %1623 = vmatprep.subr.mxu0 0.0
    %1624 = vmatpush1.msra.mxu0 0.0
    %1625 = vmatprep.subr.mxu0 0.0
    %1626 = vmatpush1.msra.mxu0 0.0
    %1627 = vmatprep.subr.mxu0 0.0
    %1628 = vmatpush1.msra.mxu0 0.0
    %1629 = vmatprep.subr.mxu0 0.0
    %1630 = vmatpush1.msra.mxu0 0.0
    %1631 = vmatprep.subr.mxu0 0.0
    %1632 = vmatpush1.msra.mxu0 0.0
    %1633 = vmatprep.subr.mxu0 0.0
    %1634 = vmatpush1.msra.mxu0 0.0
    %1635 = vmatprep.subr.mxu0 0.0
    %1636 = vmatpush1.msra.mxu0 0.0
    %1637 = vmatprep.subr.mxu0 0.0
    %1638 = vmatpush1.msra.mxu0 0.0
    %1639 = vmatprep.subr.mxu0 0.0
    %1640 = vmatpush1.msra.mxu0 0.0
    %1641 = vmatprep.subr.mxu0 0.0
    %1642 = vmatpush1.msra.mxu0 0.0
    %1643 = vmatprep.subr.mxu0 0.0
    %1644 = vmatpush1.msra.mxu0 0.0
    %1645 = vmatprep.subr.mxu0 0.0
    %1646 = vmatpush1.msra.mxu0 0.0
    %1647 = vmatprep.subr.mxu0 0.0
    %1648 = vmatpush1.msra.mxu0 0.0
    %1649 = vmatprep.subr.mxu0 0.0
    %1650 = vmatpush1.msra.mxu0 0.0
    %1651 = vmatprep.subr.mxu0 0.0
    %1652 = vmatpush1.msra.mxu0 0.0
    %1653 = vmatprep.mubr.f32.mxu0 0.0
    %1654 = vmatmul.mubr.f32.gmra.mrb[0].mxu0 %v1587
    %v1655 = vpop.f32.mrb[0].mxu0
    %v1656 = vadd.f32 %v358, %v1655
    %v1657 = vpop.f32.mrb[0].mxu0
    %1658 = vdwg.mxu0
    %1660 = vrot.lane.b32.xlu0 %v1483, 96
    %v1661 = vpop.permute.xlu0 %1660
    %v1662 = vsel %vm56, %v1661, 0
    %1664 = vmatprep.subr.mxu0 0.0
    %1665 = vmatpush1.msra.mxu0 %v339
    %1666 = vmatprep.subr.mxu0 0.0
    %1667 = vmatpush1.msra.mxu0 %v340
    %1668 = vmatprep.subr.mxu0 0.0
    %1669 = vmatpush1.msra.mxu0 0.0
    %1670 = vmatprep.subr.mxu0 0.0
    %1671 = vmatpush1.msra.mxu0 0.0
    %1672 = vmatprep.subr.mxu0 0.0
    %1673 = vmatpush1.msra.mxu0 0.0
    %1674 = vmatprep.subr.mxu0 0.0
    %1675 = vmatpush1.msra.mxu0 0.0
    %1676 = vmatprep.subr.mxu0 0.0
    %1677 = vmatpush1.msra.mxu0 0.0
    %1678 = vmatprep.subr.mxu0 0.0
    %1679 = vmatpush1.msra.mxu0 0.0
    %1680 = vmatprep.subr.mxu0 0.0
    %1681 = vmatpush1.msra.mxu0 0.0
    %1682 = vmatprep.subr.mxu0 0.0
    %1683 = vmatpush1.msra.mxu0 0.0
    %1684 = vmatprep.subr.mxu0 0.0
    %1685 = vmatpush1.msra.mxu0 0.0
    %1686 = vmatprep.subr.mxu0 0.0
    %1687 = vmatpush1.msra.mxu0 0.0
    %1688 = vmatprep.subr.mxu0 0.0
    %1689 = vmatpush1.msra.mxu0 0.0
    %1690 = vmatprep.subr.mxu0 0.0
    %1691 = vmatpush1.msra.mxu0 0.0
    %1692 = vmatprep.subr.mxu0 0.0
    %1693 = vmatpush1.msra.mxu0 0.0
    %1694 = vmatprep.subr.mxu0 0.0
    %1695 = vmatpush1.msra.mxu0 0.0
    %1696 = vmatprep.subr.mxu0 0.0
    %1697 = vmatpush1.msra.mxu0 0.0
    %1698 = vmatprep.subr.mxu0 0.0
    %1699 = vmatpush1.msra.mxu0 0.0
    %1700 = vmatprep.subr.mxu0 0.0
    %1701 = vmatpush1.msra.mxu0 0.0
    %1702 = vmatprep.subr.mxu0 0.0
    %1703 = vmatpush1.msra.mxu0 0.0
    %1704 = vmatprep.subr.mxu0 0.0
    %1705 = vmatpush1.msra.mxu0 0.0
    %1706 = vmatprep.subr.mxu0 0.0
    %1707 = vmatpush1.msra.mxu0 0.0
    %1708 = vmatprep.subr.mxu0 0.0
    %1709 = vmatpush1.msra.mxu0 0.0
    %1710 = vmatprep.subr.mxu0 0.0
    %1711 = vmatpush1.msra.mxu0 0.0
    %1712 = vmatprep.subr.mxu0 0.0
    %1713 = vmatpush1.msra.mxu0 0.0
    %1714 = vmatprep.subr.mxu0 0.0
    %1715 = vmatpush1.msra.mxu0 0.0
    %1716 = vmatprep.subr.mxu0 0.0
    %1717 = vmatpush1.msra.mxu0 0.0
    %1718 = vmatprep.subr.mxu0 0.0
    %1719 = vmatpush1.msra.mxu0 0.0
    %1720 = vmatprep.subr.mxu0 0.0
    %1721 = vmatpush1.msra.mxu0 0.0
    %1722 = vmatprep.subr.mxu0 0.0
    %1723 = vmatpush1.msra.mxu0 0.0
    %1724 = vmatprep.subr.mxu0 0.0
    %1725 = vmatpush1.msra.mxu0 0.0
    %1726 = vmatprep.subr.mxu0 0.0
    %1727 = vmatpush1.msra.mxu0 0.0
    %1728 = vmatprep.mubr.f32.mxu0 0.0
    %1729 = vmatmul.mubr.f32.gmra.mrb[0].mxu0 %v1662
    %v1730 = vpop.f32.mrb[0].mxu0
    %v1731 = vadd.f32 0.0, %v1730
    %v1732 = vpop.f32.mrb[0].mxu0
    %1733 = vdwg.mxu0
    %v1734 = vadd.f32 %v1656, %v1731
    %v1735 = vxor.u32 %v1734, 2147483648
    %v1736 = vmul.f32 %v1735, 1.442695
    %v1737 = vpow.pop %v1736
    %v1738 = vadd.f32 %v1737, 1.0
    %v1739 = vrcp.pop %v1738
    %v1740 = vmul.f32 1.0, %v1739
    %v1741 = vadd.f32 %v1731, %v619
    %1743 = vrot.lane.b32.xlu0 %v1741, 96
    %v1744 = vpop.permute.xlu0 %1743
    %v1746 = vmul.f32 %v1740, %v1744
    %1748 = vrot.lane.b32.xlu0 %v1746, 32
    %v1749 = vpop.permute.xlu0 %1748
    %v1751 = vadd.f32 %v1656, %v1749
    %v1752 = vtanh.pop %v1751
    %v1753 = vsub.f32 %v1483, %v1752
    %1755 = vrot.lane.b32.xlu0 %v1753, 112
    %v1756 = vpop.permute.xlu0 %1755
    %v1758 = vmul.f32 %v1740, %v1756
    %1760 = vrot.lane.b32.xlu0 %v1758, 16
    %v1761 = vpop.permute.xlu0 %1760
    %v1763 = vadd.f32 %v1752, %v1761
    %1764 = vmatprep.subr.mxu0 0.0
    %1765 = vmatpush1.msra.mxu0 %v335
    %1766 = vmatprep.subr.mxu0 0.0
    %1767 = vmatpush1.msra.mxu0 %v336
    %1768 = vmatprep.subr.mxu0 0.0
    %1769 = vmatpush1.msra.mxu0 0.0
    %1770 = vmatprep.subr.mxu0 0.0
    %1771 = vmatpush1.msra.mxu0 0.0
    %1772 = vmatprep.subr.mxu0 0.0
    %1773 = vmatpush1.msra.mxu0 0.0
    %1774 = vmatprep.subr.mxu0 0.0
    %1775 = vmatpush1.msra.mxu0 0.0
    %1776 = vmatprep.subr.mxu0 0.0
    %1777 = vmatpush1.msra.mxu0 0.0
    %1778 = vmatprep.subr.mxu0 0.0
    %1779 = vmatpush1.msra.mxu0 0.0
    %1780 = vmatprep.subr.mxu0 0.0
    %1781 = vmatpush1.msra.mxu0 0.0
    %1782 = vmatprep.subr.mxu0 0.0
    %1783 = vmatpush1.msra.mxu0 0.0
    %1784 = vmatprep.subr.mxu0 0.0
    %1785 = vmatpush1.msra.mxu0 0.0
    %1786 = vmatprep.subr.mxu0 0.0
    %1787 = vmatpush1.msra.mxu0 0.0
    %1788 = vmatprep.subr.mxu0 0.0
    %1789 = vmatpush1.msra.mxu0 0.0
    %1790 = vmatprep.subr.mxu0 0.0
    %1791 = vmatpush1.msra.mxu0 0.0
    %1792 = vmatprep.subr.mxu0 0.0
    %1793 = vmatpush1.msra.mxu0 0.0
    %1794 = vmatprep.subr.mxu0 0.0
    %1795 = vmatpush1.msra.mxu0 0.0
    %1796 = vmatprep.subr.mxu0 0.0
    %1797 = vmatpush1.msra.mxu0 0.0
    %1798 = vmatprep.subr.mxu0 0.0
    %1799 = vmatpush1.msra.mxu0 0.0
    %1800 = vmatprep.subr.mxu0 0.0
    %1801 = vmatpush1.msra.mxu0 0.0
    %1802 = vmatprep.subr.mxu0 0.0
    %1803 = vmatpush1.msra.mxu0 0.0
    %1804 = vmatprep.subr.mxu0 0.0
    %1805 = vmatpush1.msra.mxu0 0.0
    %1806 = vmatprep.subr.mxu0 0.0
    %1807 = vmatpush1.msra.mxu0 0.0
    %1808 = vmatprep.subr.mxu0 0.0
    %1809 = vmatpush1.msra.mxu0 0.0
    %1810 = vmatprep.subr.mxu0 0.0
    %1811 = vmatpush1.msra.mxu0 0.0
    %1812 = vmatprep.subr.mxu0 0.0
    %1813 = vmatpush1.msra.mxu0 0.0
    %1814 = vmatprep.subr.mxu0 0.0
    %1815 = vmatpush1.msra.mxu0 0.0
    %1816 = vmatprep.subr.mxu0 0.0
    %1817 = vmatpush1.msra.mxu0 0.0
    %1818 = vmatprep.subr.mxu0 0.0
    %1819 = vmatpush1.msra.mxu0 0.0
    %1820 = vmatprep.subr.mxu0 0.0
    %1821 = vmatpush1.msra.mxu0 0.0
    %1822 = vmatprep.subr.mxu0 0.0
    %1823 = vmatpush1.msra.mxu0 0.0
    %1824 = vmatprep.subr.mxu0 0.0
    %1825 = vmatpush1.msra.mxu0 0.0
    %1826 = vmatprep.subr.mxu0 0.0
    %1827 = vmatpush1.msra.mxu0 0.0
    %1828 = vmatprep.mubr.f32.mxu0 0.0
    %1829 = vmatmul.mubr.f32.gmra.mrb[0].mxu0 %v1587
    %v1830 = vpop.f32.mrb[0].mxu0
    %v1831 = vadd.f32 0.0, %v1830
    %v1832 = vpop.f32.mrb[0].mxu0
    %1833 = vdwg.mxu0
    %v1834 = vadd.f32 %v322, %v1831
    %v1835 = vxor.u32 %v1834, 2147483648
    %v1836 = vmul.f32 %v1835, 1.442695
    %v1837 = vpow.pop %v1836
    %v1838 = vadd.f32 %v1837, 1.0
    %v1839 = vrcp.pop %v1838
    %v1840 = vmul.f32 1.0, %v1839
    %v1841 = vadd.f32 %v1831, %v441
    %1843 = vrot.lane.b32.xlu0 %v1841, 96
    %v1844 = vpop.permute.xlu0 %1843
    %v1846 = vmul.f32 %v1840, %v1844
    %1848 = vrot.lane.b32.xlu0 %v1846, 32
    %v1849 = vpop.permute.xlu0 %1848
    %v1851 = vadd.f32 %v322, %v1849
    %v1852 = vtanh.pop %v1851
    %v1853 = vsub.f32 %v1583, %v1852
    %1855 = vrot.lane.b32.xlu0 %v1853, 112
    %v1856 = vpop.permute.xlu0 %1855
    %v1858 = vmul.f32 %v1840, %v1856
    %1860 = vrot.lane.b32.xlu0 %v1858, 16
    %v1861 = vpop.permute.xlu0 %1860
    %v1863 = vadd.f32 %v1852, %v1861
    %1865 = vrot.lane.b32.xlu0 %v1863, 96
    %v1866 = vpop.permute.xlu0 %1865
    %v1867 = vsel %vm56, %v1866, 0
    %1869 = vmatprep.subr.mxu0 0.0
    %1870 = vmatpush1.msra.mxu0 %v337
    %1871 = vmatprep.subr.mxu0 0.0
    %1872 = vmatpush1.msra.mxu0 %v338
    %1873 = vmatprep.subr.mxu0 0.0
    %1874 = vmatpush1.msra.mxu0 0.0
    %1875 = vmatprep.subr.mxu0 0.0
    %1876 = vmatpush1.msra.mxu0 0.0
    %1877 = vmatprep.subr.mxu0 0.0
    %1878 = vmatpush1.msra.mxu0 0.0
    %1879 = vmatprep.subr.mxu0 0.0
    %1880 = vmatpush1.msra.mxu0 0.0
    %1881 = vmatprep.subr.mxu0 0.0
    %1882 = vmatpush1.msra.mxu0 0.0
    %1883 = vmatprep.subr.mxu0 0.0
    %1884 = vmatpush1.msra.mxu0 0.0
    %1885 = vmatprep.subr.mxu0 0.0
    %1886 = vmatpush1.msra.mxu0 0.0
    %1887 = vmatprep.subr.mxu0 0.0
    %1888 = vmatpush1.msra.mxu0 0.0
    %1889 = vmatprep.subr.mxu0 0.0
    %1890 = vmatpush1.msra.mxu0 0.0
    %1891 = vmatprep.subr.mxu0 0.0
    %1892 = vmatpush1.msra.mxu0 0.0
    %1893 = vmatprep.subr.mxu0 0.0
    %1894 = vmatpush1.msra.mxu0 0.0
    %1895 = vmatprep.subr.mxu0 0.0
    %1896 = vmatpush1.msra.mxu0 0.0
    %1897 = vmatprep.subr.mxu0 0.0
    %1898 = vmatpush1.msra.mxu0 0.0
    %1899 = vmatprep.subr.mxu0 0.0
    %1900 = vmatpush1.msra.mxu0 0.0
    %1901 = vmatprep.subr.mxu0 0.0
    %1902 = vmatpush1.msra.mxu0 0.0
    %1903 = vmatprep.subr.mxu0 0.0
    %1904 = vmatpush1.msra.mxu0 0.0
    %1905 = vmatprep.subr.mxu0 0.0
    %1906 = vmatpush1.msra.mxu0 0.0
    %1907 = vmatprep.subr.mxu0 0.0
    %1908 = vmatpush1.msra.mxu0 0.0
    %1909 = vmatprep.subr.mxu0 0.0
    %1910 = vmatpush1.msra.mxu0 0.0
    %1911 = vmatprep.subr.mxu0 0.0
    %1912 = vmatpush1.msra.mxu0 0.0
    %1913 = vmatprep.subr.mxu0 0.0
    %1914 = vmatpush1.msra.mxu0 0.0
    %1915 = vmatprep.subr.mxu0 0.0
    %1916 = vmatpush1.msra.mxu0 0.0
    %1917 = vmatprep.subr.mxu0 0.0
    %1918 = vmatpush1.msra.mxu0 0.0
    %1919 = vmatprep.subr.mxu0 0.0
    %1920 = vmatpush1.msra.mxu0 0.0
    %1921 = vmatprep.subr.mxu0 0.0
    %1922 = vmatpush1.msra.mxu0 0.0
    %1923 = vmatprep.subr.mxu0 0.0
    %1924 = vmatpush1.msra.mxu0 0.0
    %1925 = vmatprep.subr.mxu0 0.0
    %1926 = vmatpush1.msra.mxu0 0.0
    %1927 = vmatprep.subr.mxu0 0.0
    %1928 = vmatpush1.msra.mxu0 0.0
    %1929 = vmatprep.subr.mxu0 0.0
    %1930 = vmatpush1.msra.mxu0 0.0
    %1931 = vmatprep.subr.mxu0 0.0
    %1932 = vmatpush1.msra.mxu0 0.0
    %1933 = vmatprep.mubr.f32.mxu0 0.0
    %1934 = vmatmul.mubr.f32.gmra.mrb[0].mxu0 %v1867
    %v1935 = vpop.f32.mrb[0].mxu0
    %v1936 = vadd.f32 %v358, %v1935
    %v1937 = vpop.f32.mrb[0].mxu0
    %1938 = vdwg.mxu0
    %1940 = vrot.lane.b32.xlu0 %v1763, 96
    %v1941 = vpop.permute.xlu0 %1940
    %v1942 = vsel %vm56, %v1941, 0
    %1944 = vmatprep.subr.mxu0 0.0
    %1945 = vmatpush1.msra.mxu0 %v339
    %1946 = vmatprep.subr.mxu0 0.0
    %1947 = vmatpush1.msra.mxu0 %v340
    %1948 = vmatprep.subr.mxu0 0.0
    %1949 = vmatpush1.msra.mxu0 0.0
    %1950 = vmatprep.subr.mxu0 0.0
    %1951 = vmatpush1.msra.mxu0 0.0
    %1952 = vmatprep.subr.mxu0 0.0
    %1953 = vmatpush1.msra.mxu0 0.0
    %1954 = vmatprep.subr.mxu0 0.0
    %1955 = vmatpush1.msra.mxu0 0.0
    %1956 = vmatprep.subr.mxu0 0.0
    %1957 = vmatpush1.msra.mxu0 0.0
    %1958 = vmatprep.subr.mxu0 0.0
    %1959 = vmatpush1.msra.mxu0 0.0
    %1960 = vmatprep.subr.mxu0 0.0
    %1961 = vmatpush1.msra.mxu0 0.0
    %1962 = vmatprep.subr.mxu0 0.0
    %1963 = vmatpush1.msra.mxu0 0.0
    %1964 = vmatprep.subr.mxu0 0.0
    %1965 = vmatpush1.msra.mxu0 0.0
    %1966 = vmatprep.subr.mxu0 0.0
    %1967 = vmatpush1.msra.mxu0 0.0
    %1968 = vmatprep.subr.mxu0 0.0
    %1969 = vmatpush1.msra.mxu0 0.0
    %1970 = vmatprep.subr.mxu0 0.0
    %1971 = vmatpush1.msra.mxu0 0.0
    %1972 = vmatprep.subr.mxu0 0.0
    %1973 = vmatpush1.msra.mxu0 0.0
    %1974 = vmatprep.subr.mxu0 0.0
    %1975 = vmatpush1.msra.mxu0 0.0
    %1976 = vmatprep.subr.mxu0 0.0
    %1977 = vmatpush1.msra.mxu0 0.0
    %1978 = vmatprep.subr.mxu0 0.0
    %1979 = vmatpush1.msra.mxu0 0.0
    %1980 = vmatprep.subr.mxu0 0.0
    %1981 = vmatpush1.msra.mxu0 0.0
    %1982 = vmatprep.subr.mxu0 0.0
    %1983 = vmatpush1.msra.mxu0 0.0
    %1984 = vmatprep.subr.mxu0 0.0
    %1985 = vmatpush1.msra.mxu0 0.0
    %1986 = vmatprep.subr.mxu0 0.0
    %1987 = vmatpush1.msra.mxu0 0.0
    %1988 = vmatprep.subr.mxu0 0.0
    %1989 = vmatpush1.msra.mxu0 0.0
    %1990 = vmatprep.subr.mxu0 0.0
    %1991 = vmatpush1.msra.mxu0 0.0
    %1992 = vmatprep.subr.mxu0 0.0
    %1993 = vmatpush1.msra.mxu0 0.0
    %1994 = vmatprep.subr.mxu0 0.0
    %1995 = vmatpush1.msra.mxu0 0.0
    %1996 = vmatprep.subr.mxu0 0.0
    %1997 = vmatpush1.msra.mxu0 0.0
    %1998 = vmatprep.subr.mxu0 0.0
    %1999 = vmatpush1.msra.mxu0 0.0
    %2000 = vmatprep.subr.mxu0 0.0
    %2001 = vmatpush1.msra.mxu0 0.0
    %2002 = vmatprep.subr.mxu0 0.0
    %2003 = vmatpush1.msra.mxu0 0.0
    %2004 = vmatprep.subr.mxu0 0.0
    %2005 = vmatpush1.msra.mxu0 0.0
    %2006 = vmatprep.subr.mxu0 0.0
    %2007 = vmatpush1.msra.mxu0 0.0
    %2008 = vmatprep.mubr.f32.mxu0 0.0
    %2009 = vmatmul.mubr.f32.gmra.mrb[0].mxu0 %v1942
    %v2010 = vpop.f32.mrb[0].mxu0
    %v2011 = vadd.f32 0.0, %v2010
    %v2012 = vpop.f32.mrb[0].mxu0
    %2013 = vdwg.mxu0
    %v2014 = vadd.f32 %v1936, %v2011
    %v2015 = vxor.u32 %v2014, 2147483648
    %v2016 = vmul.f32 %v2015, 1.442695
    %v2017 = vpow.pop %v2016
    %v2018 = vadd.f32 %v2017, 1.0
    %v2019 = vrcp.pop %v2018
    %v2020 = vmul.f32 1.0, %v2019
    %v2021 = vadd.f32 %v2011, %v619
    %2023 = vrot.lane.b32.xlu0 %v2021, 96
    %v2024 = vpop.permute.xlu0 %2023
    %v2026 = vmul.f32 %v2020, %v2024
    %2028 = vrot.lane.b32.xlu0 %v2026, 32
    %v2029 = vpop.permute.xlu0 %2028
    %v2031 = vadd.f32 %v1936, %v2029
    %v2032 = vtanh.pop %v2031
    %v2033 = vsub.f32 %v1763, %v2032
    %2035 = vrot.lane.b32.xlu0 %v2033, 112
    %v2036 = vpop.permute.xlu0 %2035
    %v2038 = vmul.f32 %v2020, %v2036
    %2040 = vrot.lane.b32.xlu0 %v2038, 16
    %v2041 = vpop.permute.xlu0 %2040
    %v2043 = vadd.f32 %v2032, %v2041
    %2044 = vmatprep.subr.mxu0 0.0
    %2045 = vmatpush1.msra.mxu0 %v335
    %2046 = vmatprep.subr.mxu0 0.0
    %2047 = vmatpush1.msra.mxu0 %v336
    %2048 = vmatprep.subr.mxu0 0.0
    %2049 = vmatpush1.msra.mxu0 0.0
    %2050 = vmatprep.subr.mxu0 0.0
    %2051 = vmatpush1.msra.mxu0 0.0
    %2052 = vmatprep.subr.mxu0 0.0
    %2053 = vmatpush1.msra.mxu0 0.0
    %2054 = vmatprep.subr.mxu0 0.0
    %2055 = vmatpush1.msra.mxu0 0.0
    %2056 = vmatprep.subr.mxu0 0.0
    %2057 = vmatpush1.msra.mxu0 0.0
    %2058 = vmatprep.subr.mxu0 0.0
    %2059 = vmatpush1.msra.mxu0 0.0
    %2060 = vmatprep.subr.mxu0 0.0
    %2061 = vmatpush1.msra.mxu0 0.0
    %2062 = vmatprep.subr.mxu0 0.0
    %2063 = vmatpush1.msra.mxu0 0.0
    %2064 = vmatprep.subr.mxu0 0.0
    %2065 = vmatpush1.msra.mxu0 0.0
    %2066 = vmatprep.subr.mxu0 0.0
    %2067 = vmatpush1.msra.mxu0 0.0
    %2068 = vmatprep.subr.mxu0 0.0
    %2069 = vmatpush1.msra.mxu0 0.0
    %2070 = vmatprep.subr.mxu0 0.0
    %2071 = vmatpush1.msra.mxu0 0.0
    %2072 = vmatprep.subr.mxu0 0.0
    %2073 = vmatpush1.msra.mxu0 0.0
    %2074 = vmatprep.subr.mxu0 0.0
    %2075 = vmatpush1.msra.mxu0 0.0
    %2076 = vmatprep.subr.mxu0 0.0
    %2077 = vmatpush1.msra.mxu0 0.0
    %2078 = vmatprep.subr.mxu0 0.0
    %2079 = vmatpush1.msra.mxu0 0.0
    %2080 = vmatprep.subr.mxu0 0.0
    %2081 = vmatpush1.msra.mxu0 0.0
    %2082 = vmatprep.subr.mxu0 0.0
    %2083 = vmatpush1.msra.mxu0 0.0
    %2084 = vmatprep.subr.mxu0 0.0
    %2085 = vmatpush1.msra.mxu0 0.0
    %2086 = vmatprep.subr.mxu0 0.0
    %2087 = vmatpush1.msra.mxu0 0.0
    %2088 = vmatprep.subr.mxu0 0.0
    %2089 = vmatpush1.msra.mxu0 0.0
    %2090 = vmatprep.subr.mxu0 0.0
    %2091 = vmatpush1.msra.mxu0 0.0
    %2092 = vmatprep.subr.mxu0 0.0
    %2093 = vmatpush1.msra.mxu0 0.0
    %2094 = vmatprep.subr.mxu0 0.0
    %2095 = vmatpush1.msra.mxu0 0.0
    %2096 = vmatprep.subr.mxu0 0.0
    %2097 = vmatpush1.msra.mxu0 0.0
    %2098 = vmatprep.subr.mxu0 0.0
    %2099 = vmatpush1.msra.mxu0 0.0
    %2100 = vmatprep.subr.mxu0 0.0
    %2101 = vmatpush1.msra.mxu0 0.0
    %2102 = vmatprep.subr.mxu0 0.0
    %2103 = vmatpush1.msra.mxu0 0.0
    %2104 = vmatprep.subr.mxu0 0.0
    %2105 = vmatpush1.msra.mxu0 0.0
    %2106 = vmatprep.subr.mxu0 0.0
    %2107 = vmatpush1.msra.mxu0 0.0
    %2108 = vmatprep.mubr.f32.mxu0 0.0
    %2109 = vmatmul.mubr.f32.gmra.mrb[0].mxu0 %v1867
    %v2110 = vpop.f32.mrb[0].mxu0
    %v2111 = vadd.f32 0.0, %v2110
    %v2112 = vpop.f32.mrb[0].mxu0
    %2113 = vdwg.mxu0
    %v2114 = vadd.f32 %v327, %v2111
    %v2115 = vxor.u32 %v2114, 2147483648
    %v2116 = vmul.f32 %v2115, 1.442695
    %v2117 = vpow.pop %v2116
    %v2118 = vadd.f32 %v2117, 1.0
    %v2119 = vrcp.pop %v2118
    %v2120 = vmul.f32 1.0, %v2119
    %v2121 = vadd.f32 %v2111, %v441
    %2123 = vrot.lane.b32.xlu0 %v2121, 96
    %v2124 = vpop.permute.xlu0 %2123
    %v2126 = vmul.f32 %v2120, %v2124
    %2128 = vrot.lane.b32.xlu0 %v2126, 32
    %v2129 = vpop.permute.xlu0 %2128
    %v2131 = vadd.f32 %v327, %v2129
    %v2132 = vtanh.pop %v2131
    %v2133 = vsub.f32 %v1863, %v2132
    %2135 = vrot.lane.b32.xlu0 %v2133, 112
    %v2136 = vpop.permute.xlu0 %2135
    %v2138 = vmul.f32 %v2120, %v2136
    %2140 = vrot.lane.b32.xlu0 %v2138, 16
    %v2141 = vpop.permute.xlu0 %2140
    %v2143 = vadd.f32 %v2132, %v2141
    %2145 = vrot.lane.b32.xlu0 %v2143, 96
    %v2146 = vpop.permute.xlu0 %2145
    %v2147 = vsel %vm56, %v2146, 0
    %2149 = vmatprep.subr.mxu0 0.0
    %2150 = vmatpush1.msra.mxu0 %v337
    %2151 = vmatprep.subr.mxu0 0.0
    %2152 = vmatpush1.msra.mxu0 %v338
    %2153 = vmatprep.subr.mxu0 0.0
    %2154 = vmatpush1.msra.mxu0 0.0
    %2155 = vmatprep.subr.mxu0 0.0
    %2156 = vmatpush1.msra.mxu0 0.0
    %2157 = vmatprep.subr.mxu0 0.0
    %2158 = vmatpush1.msra.mxu0 0.0
    %2159 = vmatprep.subr.mxu0 0.0
    %2160 = vmatpush1.msra.mxu0 0.0
    %2161 = vmatprep.subr.mxu0 0.0
    %2162 = vmatpush1.msra.mxu0 0.0
    %2163 = vmatprep.subr.mxu0 0.0
    %2164 = vmatpush1.msra.mxu0 0.0
    %2165 = vmatprep.subr.mxu0 0.0
    %2166 = vmatpush1.msra.mxu0 0.0
    %2167 = vmatprep.subr.mxu0 0.0
    %2168 = vmatpush1.msra.mxu0 0.0
    %2169 = vmatprep.subr.mxu0 0.0
    %2170 = vmatpush1.msra.mxu0 0.0
    %2171 = vmatprep.subr.mxu0 0.0
    %2172 = vmatpush1.msra.mxu0 0.0
    %2173 = vmatprep.subr.mxu0 0.0
    %2174 = vmatpush1.msra.mxu0 0.0
    %2175 = vmatprep.subr.mxu0 0.0
    %2176 = vmatpush1.msra.mxu0 0.0
    %2177 = vmatprep.subr.mxu0 0.0
    %2178 = vmatpush1.msra.mxu0 0.0
    %2179 = vmatprep.subr.mxu0 0.0
    %2180 = vmatpush1.msra.mxu0 0.0
    %2181 = vmatprep.subr.mxu0 0.0
    %2182 = vmatpush1.msra.mxu0 0.0
    %2183 = vmatprep.subr.mxu0 0.0
    %2184 = vmatpush1.msra.mxu0 0.0
    %2185 = vmatprep.subr.mxu0 0.0
    %2186 = vmatpush1.msra.mxu0 0.0
    %2187 = vmatprep.subr.mxu0 0.0
    %2188 = vmatpush1.msra.mxu0 0.0
    %2189 = vmatprep.subr.mxu0 0.0
    %2190 = vmatpush1.msra.mxu0 0.0
    %2191 = vmatprep.subr.mxu0 0.0
    %2192 = vmatpush1.msra.mxu0 0.0
    %2193 = vmatprep.subr.mxu0 0.0
    %2194 = vmatpush1.msra.mxu0 0.0
    %2195 = vmatprep.subr.mxu0 0.0
    %2196 = vmatpush1.msra.mxu0 0.0
    %2197 = vmatprep.subr.mxu0 0.0
    %2198 = vmatpush1.msra.mxu0 0.0
    %2199 = vmatprep.subr.mxu0 0.0
    %2200 = vmatpush1.msra.mxu0 0.0
    %2201 = vmatprep.subr.mxu0 0.0
    %2202 = vmatpush1.msra.mxu0 0.0
    %2203 = vmatprep.subr.mxu0 0.0
    %2204 = vmatpush1.msra.mxu0 0.0
    %2205 = vmatprep.subr.mxu0 0.0
    %2206 = vmatpush1.msra.mxu0 0.0
    %2207 = vmatprep.subr.mxu0 0.0
    %2208 = vmatpush1.msra.mxu0 0.0
    %2209 = vmatprep.subr.mxu0 0.0
    %2210 = vmatpush1.msra.mxu0 0.0
    %2211 = vmatprep.subr.mxu0 0.0
    %2212 = vmatpush1.msra.mxu0 0.0
    %2213 = vmatprep.mubr.f32.mxu0 0.0
    %2214 = vmatmul.mubr.f32.gmra.mrb[0].mxu0 %v2147
    %v2215 = vpop.f32.mrb[0].mxu0
    %v2216 = vadd.f32 %v358, %v2215
    %v2217 = vpop.f32.mrb[0].mxu0
    %2218 = vdwg.mxu0
    %2220 = vrot.lane.b32.xlu0 %v2043, 96
    %v2221 = vpop.permute.xlu0 %2220
    %v2222 = vsel %vm56, %v2221, 0
    %2224 = vmatprep.subr.mxu0 0.0
    %2225 = vmatpush1.msra.mxu0 %v339
    %2226 = vmatprep.subr.mxu0 0.0
    %2227 = vmatpush1.msra.mxu0 %v340
    %2228 = vmatprep.subr.mxu0 0.0
    %2229 = vmatpush1.msra.mxu0 0.0
    %2230 = vmatprep.subr.mxu0 0.0
    %2231 = vmatpush1.msra.mxu0 0.0
    %2232 = vmatprep.subr.mxu0 0.0
    %2233 = vmatpush1.msra.mxu0 0.0
    %2234 = vmatprep.subr.mxu0 0.0
    %2235 = vmatpush1.msra.mxu0 0.0
    %2236 = vmatprep.subr.mxu0 0.0
    %2237 = vmatpush1.msra.mxu0 0.0
    %2238 = vmatprep.subr.mxu0 0.0
    %2239 = vmatpush1.msra.mxu0 0.0
    %2240 = vmatprep.subr.mxu0 0.0
    %2241 = vmatpush1.msra.mxu0 0.0
    %2242 = vmatprep.subr.mxu0 0.0
    %2243 = vmatpush1.msra.mxu0 0.0
    %2244 = vmatprep.subr.mxu0 0.0
    %2245 = vmatpush1.msra.mxu0 0.0
    %2246 = vmatprep.subr.mxu0 0.0
    %2247 = vmatpush1.msra.mxu0 0.0
    %2248 = vmatprep.subr.mxu0 0.0
    %2249 = vmatpush1.msra.mxu0 0.0
    %2250 = vmatprep.subr.mxu0 0.0
    %2251 = vmatpush1.msra.mxu0 0.0
    %2252 = vmatprep.subr.mxu0 0.0
    %2253 = vmatpush1.msra.mxu0 0.0
    %2254 = vmatprep.subr.mxu0 0.0
    %2255 = vmatpush1.msra.mxu0 0.0
    %2256 = vmatprep.subr.mxu0 0.0
    %2257 = vmatpush1.msra.mxu0 0.0
    %2258 = vmatprep.subr.mxu0 0.0
    %2259 = vmatpush1.msra.mxu0 0.0
    %2260 = vmatprep.subr.mxu0 0.0
    %2261 = vmatpush1.msra.mxu0 0.0
    %2262 = vmatprep.subr.mxu0 0.0
    %2263 = vmatpush1.msra.mxu0 0.0
    %2264 = vmatprep.subr.mxu0 0.0
    %2265 = vmatpush1.msra.mxu0 0.0
    %2266 = vmatprep.subr.mxu0 0.0
    %2267 = vmatpush1.msra.mxu0 0.0
    %2268 = vmatprep.subr.mxu0 0.0
    %2269 = vmatpush1.msra.mxu0 0.0
    %2270 = vmatprep.subr.mxu0 0.0
    %2271 = vmatpush1.msra.mxu0 0.0
    %2272 = vmatprep.subr.mxu0 0.0
    %2273 = vmatpush1.msra.mxu0 0.0
    %2274 = vmatprep.subr.mxu0 0.0
    %2275 = vmatpush1.msra.mxu0 0.0
    %2276 = vmatprep.subr.mxu0 0.0
    %2277 = vmatpush1.msra.mxu0 0.0
    %2278 = vmatprep.subr.mxu0 0.0
    %2279 = vmatpush1.msra.mxu0 0.0
    %2280 = vmatprep.subr.mxu0 0.0
    %2281 = vmatpush1.msra.mxu0 0.0
    %2282 = vmatprep.subr.mxu0 0.0
    %2283 = vmatpush1.msra.mxu0 0.0
    %2284 = vmatprep.subr.mxu0 0.0
    %2285 = vmatpush1.msra.mxu0 0.0
    %2286 = vmatprep.subr.mxu0 0.0
    %2287 = vmatpush1.msra.mxu0 0.0
    %2288 = vmatprep.mubr.f32.mxu0 0.0
    %2289 = vmatmul.mubr.f32.gmra.mrb[0].mxu0 %v2222
    %v2290 = vpop.f32.mrb[0].mxu0
    %v2291 = vadd.f32 0.0, %v2290
    %v2292 = vpop.f32.mrb[0].mxu0
    %2293 = vdwg.mxu0
    %v2294 = vadd.f32 %v2216, %v2291
    %v2295 = vxor.u32 %v2294, 2147483648
    %v2296 = vmul.f32 %v2295, 1.442695
    %v2297 = vpow.pop %v2296
    %v2298 = vadd.f32 %v2297, 1.0
    %v2299 = vrcp.pop %v2298
    %v2300 = vmul.f32 1.0, %v2299
    %v2301 = vadd.f32 %v2291, %v619
    %2303 = vrot.lane.b32.xlu0 %v2301, 96
    %v2304 = vpop.permute.xlu0 %2303
    %v2306 = vmul.f32 %v2300, %v2304
    %2308 = vrot.lane.b32.xlu0 %v2306, 32
    %v2309 = vpop.permute.xlu0 %2308
    %v2311 = vadd.f32 %v2216, %v2309
    %v2312 = vtanh.pop %v2311
    %v2313 = vsub.f32 %v2043, %v2312
    %2315 = vrot.lane.b32.xlu0 %v2313, 112
    %v2316 = vpop.permute.xlu0 %2315
    %v2318 = vmul.f32 %v2300, %v2316
    %2320 = vrot.lane.b32.xlu0 %v2318, 16
    %v2321 = vpop.permute.xlu0 %2320
    %v2323 = vadd.f32 %v2312, %v2321
    %2324 = vmatprep.subr.mxu0 0.0
    %2325 = vmatpush1.msra.mxu0 %v335
    %2326 = vmatprep.subr.mxu0 0.0
    %2327 = vmatpush1.msra.mxu0 %v336
    %2328 = vmatprep.subr.mxu0 0.0
    %2329 = vmatpush1.msra.mxu0 0.0
    %2330 = vmatprep.subr.mxu0 0.0
    %2331 = vmatpush1.msra.mxu0 0.0
    %2332 = vmatprep.subr.mxu0 0.0
    %2333 = vmatpush1.msra.mxu0 0.0
    %2334 = vmatprep.subr.mxu0 0.0
    %2335 = vmatpush1.msra.mxu0 0.0
    %2336 = vmatprep.subr.mxu0 0.0
    %2337 = vmatpush1.msra.mxu0 0.0
    %2338 = vmatprep.subr.mxu0 0.0
    %2339 = vmatpush1.msra.mxu0 0.0
    %2340 = vmatprep.subr.mxu0 0.0
    %2341 = vmatpush1.msra.mxu0 0.0
    %2342 = vmatprep.subr.mxu0 0.0
    %2343 = vmatpush1.msra.mxu0 0.0
    %2344 = vmatprep.subr.mxu0 0.0
    %2345 = vmatpush1.msra.mxu0 0.0
    %2346 = vmatprep.subr.mxu0 0.0
    %2347 = vmatpush1.msra.mxu0 0.0
    %2348 = vmatprep.subr.mxu0 0.0
    %2349 = vmatpush1.msra.mxu0 0.0
    %2350 = vmatprep.subr.mxu0 0.0
    %2351 = vmatpush1.msra.mxu0 0.0
    %2352 = vmatprep.subr.mxu0 0.0
    %2353 = vmatpush1.msra.mxu0 0.0
    %2354 = vmatprep.subr.mxu0 0.0
    %2355 = vmatpush1.msra.mxu0 0.0
    %2356 = vmatprep.subr.mxu0 0.0
    %2357 = vmatpush1.msra.mxu0 0.0
    %2358 = vmatprep.subr.mxu0 0.0
    %2359 = vmatpush1.msra.mxu0 0.0
    %2360 = vmatprep.subr.mxu0 0.0
    %2361 = vmatpush1.msra.mxu0 0.0
    %2362 = vmatprep.subr.mxu0 0.0
    %2363 = vmatpush1.msra.mxu0 0.0
    %2364 = vmatprep.subr.mxu0 0.0
    %2365 = vmatpush1.msra.mxu0 0.0
    %2366 = vmatprep.subr.mxu0 0.0
    %2367 = vmatpush1.msra.mxu0 0.0
    %2368 = vmatprep.subr.mxu0 0.0
    %2369 = vmatpush1.msra.mxu0 0.0
    %2370 = vmatprep.subr.mxu0 0.0
    %2371 = vmatpush1.msra.mxu0 0.0
    %2372 = vmatprep.subr.mxu0 0.0
    %2373 = vmatpush1.msra.mxu0 0.0
    %2374 = vmatprep.subr.mxu0 0.0
    %2375 = vmatpush1.msra.mxu0 0.0
    %2376 = vmatprep.subr.mxu0 0.0
    %2377 = vmatpush1.msra.mxu0 0.0
    %2378 = vmatprep.subr.mxu0 0.0
    %2379 = vmatpush1.msra.mxu0 0.0
    %2380 = vmatprep.subr.mxu0 0.0
    %2381 = vmatpush1.msra.mxu0 0.0
    %2382 = vmatprep.subr.mxu0 0.0
    %2383 = vmatpush1.msra.mxu0 0.0
    %2384 = vmatprep.subr.mxu0 0.0
    %2385 = vmatpush1.msra.mxu0 0.0
    %2386 = vmatprep.subr.mxu0 0.0
    %2387 = vmatpush1.msra.mxu0 0.0
    %2388 = vmatprep.mubr.f32.mxu0 0.0
    %2389 = vmatmul.mubr.f32.gmra.mrb[0].mxu0 %v2147
    %v2390 = vpop.f32.mrb[0].mxu0
    %v2391 = vadd.f32 0.0, %v2390
    %v2392 = vpop.f32.mrb[0].mxu0
    %2393 = vdwg.mxu0
    %v2394 = vadd.f32 %v332, %v2391
    %v2395 = vxor.u32 %v2394, 2147483648
    %v2396 = vmul.f32 %v2395, 1.442695
    %v2397 = vpow.pop %v2396
    %v2398 = vadd.f32 %v2397, 1.0
    %v2399 = vrcp.pop %v2398
    %v2400 = vmul.f32 1.0, %v2399
    %v2401 = vadd.f32 %v2391, %v441
    %2403 = vrot.lane.b32.xlu0 %v2401, 96
    %v2404 = vpop.permute.xlu0 %2403
    %v2406 = vmul.f32 %v2400, %v2404
    %2408 = vrot.lane.b32.xlu0 %v2406, 32
    %v2409 = vpop.permute.xlu0 %2408
    %v2411 = vadd.f32 %v332, %v2409
    %v2412 = vtanh.pop %v2411
    %v2413 = vsub.f32 %v2143, %v2412
    %2415 = vrot.lane.b32.xlu0 %v2413, 112
    %v2416 = vpop.permute.xlu0 %2415
    %v2418 = vmul.f32 %v2400, %v2416
    %2420 = vrot.lane.b32.xlu0 %v2418, 16
    %v2421 = vpop.permute.xlu0 %2420
    %v2423 = vadd.f32 %v2412, %v2421
    %2425 = vrot.lane.b32.xlu0 %v2423, 96
    %v2426 = vpop.permute.xlu0 %2425
    %v2427 = vsel %vm56, %v2426, 0
    %2429 = vmatprep.subr.mxu0 0.0
    %2430 = vmatpush1.msra.mxu0 %v337
    %2431 = vmatprep.subr.mxu0 0.0
    %2432 = vmatpush1.msra.mxu0 %v338
    %2433 = vmatprep.subr.mxu0 0.0
    %2434 = vmatpush1.msra.mxu0 0.0
    %2435 = vmatprep.subr.mxu0 0.0
    %2436 = vmatpush1.msra.mxu0 0.0
    %2437 = vmatprep.subr.mxu0 0.0
    %2438 = vmatpush1.msra.mxu0 0.0
    %2439 = vmatprep.subr.mxu0 0.0
    %2440 = vmatpush1.msra.mxu0 0.0
    %2441 = vmatprep.subr.mxu0 0.0
    %2442 = vmatpush1.msra.mxu0 0.0
    %2443 = vmatprep.subr.mxu0 0.0
    %2444 = vmatpush1.msra.mxu0 0.0
    %2445 = vmatprep.subr.mxu0 0.0
    %2446 = vmatpush1.msra.mxu0 0.0
    %2447 = vmatprep.subr.mxu0 0.0
    %2448 = vmatpush1.msra.mxu0 0.0
    %2449 = vmatprep.subr.mxu0 0.0
    %2450 = vmatpush1.msra.mxu0 0.0
    %2451 = vmatprep.subr.mxu0 0.0
    %2452 = vmatpush1.msra.mxu0 0.0
    %2453 = vmatprep.subr.mxu0 0.0
    %2454 = vmatpush1.msra.mxu0 0.0
    %2455 = vmatprep.subr.mxu0 0.0
    %2456 = vmatpush1.msra.mxu0 0.0
    %2457 = vmatprep.subr.mxu0 0.0
    %2458 = vmatpush1.msra.mxu0 0.0
    %2459 = vmatprep.subr.mxu0 0.0
    %2460 = vmatpush1.msra.mxu0 0.0
    %2461 = vmatprep.subr.mxu0 0.0
    %2462 = vmatpush1.msra.mxu0 0.0
    %2463 = vmatprep.subr.mxu0 0.0
    %2464 = vmatpush1.msra.mxu0 0.0
    %2465 = vmatprep.subr.mxu0 0.0
    %2466 = vmatpush1.msra.mxu0 0.0
    %2467 = vmatprep.subr.mxu0 0.0
    %2468 = vmatpush1.msra.mxu0 0.0
    %2469 = vmatprep.subr.mxu0 0.0
    %2470 = vmatpush1.msra.mxu0 0.0
    %2471 = vmatprep.subr.mxu0 0.0
    %2472 = vmatpush1.msra.mxu0 0.0
    %2473 = vmatprep.subr.mxu0 0.0
    %2474 = vmatpush1.msra.mxu0 0.0
    %2475 = vmatprep.subr.mxu0 0.0
    %2476 = vmatpush1.msra.mxu0 0.0
    %2477 = vmatprep.subr.mxu0 0.0
    %2478 = vmatpush1.msra.mxu0 0.0
    %2479 = vmatprep.subr.mxu0 0.0
    %2480 = vmatpush1.msra.mxu0 0.0
    %2481 = vmatprep.subr.mxu0 0.0
    %2482 = vmatpush1.msra.mxu0 0.0
    %2483 = vmatprep.subr.mxu0 0.0
    %2484 = vmatpush1.msra.mxu0 0.0
    %2485 = vmatprep.subr.mxu0 0.0
    %2486 = vmatpush1.msra.mxu0 0.0
    %2487 = vmatprep.subr.mxu0 0.0
    %2488 = vmatpush1.msra.mxu0 0.0
    %2489 = vmatprep.subr.mxu0 0.0
    %2490 = vmatpush1.msra.mxu0 0.0
    %2491 = vmatprep.subr.mxu0 0.0
    %2492 = vmatpush1.msra.mxu0 0.0
    %2493 = vmatprep.mubr.f32.mxu0 0.0
    %2494 = vmatmul.mubr.f32.gmra.mrb[0].mxu0 %v2427
    %v2495 = vpop.f32.mrb[0].mxu0
    %v2496 = vadd.f32 %v358, %v2495
    %v2497 = vpop.f32.mrb[0].mxu0
    %2498 = vdwg.mxu0
    %2500 = vrot.lane.b32.xlu0 %v2323, 96
    %v2501 = vpop.permute.xlu0 %2500
    %v2502 = vsel %vm56, %v2501, 0
    %2504 = vmatprep.subr.mxu0 0.0
    %2505 = vmatpush1.msra.mxu0 %v339
    %2506 = vmatprep.subr.mxu0 0.0
    %2507 = vmatpush1.msra.mxu0 %v340
    %2508 = vmatprep.subr.mxu0 0.0
    %2509 = vmatpush1.msra.mxu0 0.0
    %2510 = vmatprep.subr.mxu0 0.0
    %2511 = vmatpush1.msra.mxu0 0.0
    %2512 = vmatprep.subr.mxu0 0.0
    %2513 = vmatpush1.msra.mxu0 0.0
    %2514 = vmatprep.subr.mxu0 0.0
    %2515 = vmatpush1.msra.mxu0 0.0
    %2516 = vmatprep.subr.mxu0 0.0
    %2517 = vmatpush1.msra.mxu0 0.0
    %2518 = vmatprep.subr.mxu0 0.0
    %2519 = vmatpush1.msra.mxu0 0.0
    %2520 = vmatprep.subr.mxu0 0.0
    %2521 = vmatpush1.msra.mxu0 0.0
    %2522 = vmatprep.subr.mxu0 0.0
    %2523 = vmatpush1.msra.mxu0 0.0
    %2524 = vmatprep.subr.mxu0 0.0
    %2525 = vmatpush1.msra.mxu0 0.0
    %2526 = vmatprep.subr.mxu0 0.0
    %2527 = vmatpush1.msra.mxu0 0.0
    %2528 = vmatprep.subr.mxu0 0.0
    %2529 = vmatpush1.msra.mxu0 0.0
    %2530 = vmatprep.subr.mxu0 0.0
    %2531 = vmatpush1.msra.mxu0 0.0
    %2532 = vmatprep.subr.mxu0 0.0
    %2533 = vmatpush1.msra.mxu0 0.0
    %2534 = vmatprep.subr.mxu0 0.0
    %2535 = vmatpush1.msra.mxu0 0.0
    %2536 = vmatprep.subr.mxu0 0.0
    %2537 = vmatpush1.msra.mxu0 0.0
    %2538 = vmatprep.subr.mxu0 0.0
    %2539 = vmatpush1.msra.mxu0 0.0
    %2540 = vmatprep.subr.mxu0 0.0
    %2541 = vmatpush1.msra.mxu0 0.0
    %2542 = vmatprep.subr.mxu0 0.0
    %2543 = vmatpush1.msra.mxu0 0.0
    %2544 = vmatprep.subr.mxu0 0.0
    %2545 = vmatpush1.msra.mxu0 0.0
    %2546 = vmatprep.subr.mxu0 0.0
    %2547 = vmatpush1.msra.mxu0 0.0
    %2548 = vmatprep.subr.mxu0 0.0
    %2549 = vmatpush1.msra.mxu0 0.0
    %2550 = vmatprep.subr.mxu0 0.0
    %2551 = vmatpush1.msra.mxu0 0.0
    %2552 = vmatprep.subr.mxu0 0.0
    %2553 = vmatpush1.msra.mxu0 0.0
    %2554 = vmatprep.subr.mxu0 0.0
    %2555 = vmatpush1.msra.mxu0 0.0
    %2556 = vmatprep.subr.mxu0 0.0
    %2557 = vmatpush1.msra.mxu0 0.0
    %2558 = vmatprep.subr.mxu0 0.0
    %2559 = vmatpush1.msra.mxu0 0.0
    %2560 = vmatprep.subr.mxu0 0.0
    %2561 = vmatpush1.msra.mxu0 0.0
    %2562 = vmatprep.subr.mxu0 0.0
    %2563 = vmatpush1.msra.mxu0 0.0
    %2564 = vmatprep.subr.mxu0 0.0
    %2565 = vmatpush1.msra.mxu0 0.0
    %2566 = vmatprep.subr.mxu0 0.0
    %2567 = vmatpush1.msra.mxu0 0.0
    %2568 = vmatprep.mubr.f32.mxu0 0.0
    %2569 = vmatmul.mubr.f32.gmra.mrb[0].mxu0 %v2502
    %v2570 = vpop.f32.mrb[0].mxu0
    %v2571 = vadd.f32 0.0, %v2570
    %v2572 = vpop.f32.mrb[0].mxu0
    %2573 = vdwg.mxu0
    %v2574 = vadd.f32 %v2496, %v2571
    %v2575 = vxor.u32 %v2574, 2147483648
    %v2576 = vmul.f32 %v2575, 1.442695
    %v2577 = vpow.pop %v2576
    %v2578 = vadd.f32 %v2577, 1.0
    %v2579 = vrcp.pop %v2578
    %v2580 = vmul.f32 1.0, %v2579
    %v2581 = vadd.f32 %v2571, %v619
    %2583 = vrot.lane.b32.xlu0 %v2581, 96
    %v2584 = vpop.permute.xlu0 %2583
    %v2586 = vmul.f32 %v2580, %v2584
    %2588 = vrot.lane.b32.xlu0 %v2586, 32
    %v2589 = vpop.permute.xlu0 %2588
    %v2591 = vadd.f32 %v2496, %v2589
    %v2592 = vtanh.pop %v2591
    %v2593 = vsub.f32 %v2323, %v2592
    %2595 = vrot.lane.b32.xlu0 %v2593, 112
    %v2596 = vpop.permute.xlu0 %2595
    %v2598 = vmul.f32 %v2580, %v2596
    %2600 = vrot.lane.b32.xlu0 %v2598, 16
    %v2601 = vpop.permute.xlu0 %2600
    %v2603 = vadd.f32 %v2592, %v2601
    %2605 = vrot.lane.b32.xlu0 %v2603, 96
    %v2606 = vpop.permute.xlu0 %2605
    %2608 = vst.msk [vmem:[#allocation2] sm:$0xff] %vm56, %v2606
    // Predicated region
    $region46: #{_lambda_.1} parent=1 // pred_check
      _
    $region47: #{_lambda_.1} parent=1 // pred_check_branch
      %2610 = sbr.rel (0) target = $region49
    $region48: #{_lambda_.1} parent=1 // pred_region
      %s2612 = ssub.s32 128, 128
      %2613 = vsyncadd [#allocation3], %s2612
      %s2615 = sshll.u32 [#allocation2], 4
      %s2616 = int_to_ptr.vmem [resolvable:$true] %s2615
      %2618 = dma.vmem_to_hbm [thread:$0]  %s2616, 128, %s11, [#allocation3]
    $region49: #{_lambda_.1} parent=1 // pred_fallthru
      _
    // Predicated region
    $region50: #{_lambda_.1} parent=1 // pred_check
      _
    $region51: #{_lambda_.1} parent=1 // pred_check_branch
      %2620 = sbr.rel (0) target = $region53
    $region52: #{_lambda_.1} parent=1 // pred_region
      %2621 = dma.done [#allocation3], 128
    $region53: #{_lambda_.1} parent=1 // pred_fallthru
      _
    %2622 = vsyncpa [#allocation3], 1

</llo_original>
